<compile_context>
chip_gen: v7x
topology: tpu7x:2x2x1
jax: 0.10.0
libtpu: 0.0.40
codegen_flags: <defaults>
</compile_context>

<pallas_src>
import functools

import jax
import jax.numpy as jnp
from jax.experimental import pallas as pl
from jax.experimental.pallas import tpu as pltpu


PAD_F = 128  # lane-dense padded width for the raw input features (>= 78, 54)


# ------------------------------ BlockSpecs ---------------------------------- #

def _branch_spec(*blk):
    """Per-branch block: leading branch axis squeezed out, rest full-array."""
    nd = len(blk)
    return pl.BlockSpec((None,) + blk, lambda b, _nd=nd: (b,) + (0,) * _nd)


def _full_spec(*blk):
    """Full-array block, same block for every grid step (stays resident)."""
    nd = len(blk)
    return pl.BlockSpec(blk, lambda b, _nd=nd: (0,) * _nd)


# --------------------------- fused model kernel ----------------------------- #

def _fused_kernel(a_ref, x_ref, w_in_ref, b_in_ref, w_gcn_ref, w_out_ref,
                  b_out_ref, w1_ref, b1_ref, w2_ref, b2_ref, w3_ref, b3_ref,
                  o_ref, branch_sc, *, alpha, num_layers):
    """grid=(2,): each step runs one full GCNII branch (mol / pro) in VMEM.

    Branch result is stashed in the persistent VMEM scratch `branch_sc`;
    the MLP head (concat folded into two stacked half-matmuls) runs under
    pl.when on the last grid step.  All matmuls are bf16 x bf16 -> f32.
    """
    b = pl.program_id(0)
    bf16 = jnp.bfloat16
    f32 = jnp.float32

    # ---- branch: Linear_in -> L x GCNII-dense layers -> Linear_out --------- #
    a = a_ref[...]                               # bf16, pre-scaled by (1 - alpha)
    h0 = jnp.maximum(
        jnp.dot(x_ref[...], w_in_ref[...], preferred_element_type=f32)
        + b_in_ref[...], 0.0)
    ah0 = alpha * h0                             # hoisted out of the layer loop
    h = h0
    # TODO(synk): switch to lax.fori_loop with dynamic w_gcn_ref[l] indexing if
    # num_layers is scaled back up (GCNII commonly uses 16-64 layers).
    for l in range(num_layers):                  # static unroll; L is small (3)
        agg = jnp.dot(a, h.astype(bf16), preferred_element_type=f32)
        support = agg + ah0                      # == (1-a)*A_hat@h + a*h0
        upd = support + jnp.dot(support.astype(bf16), w_gcn_ref[l],
                                preferred_element_type=f32)
        h = jnp.maximum(upd, 0.0) + h            # relu(...) + dense residual
    branch_sc[b] = (jnp.dot(h.astype(bf16), w_out_ref[...],
                            preferred_element_type=f32) + b_out_ref[...])

    # ---- MLP head, fused into the final (sequential) grid step ------------- #
    @pl.when(b == pl.num_programs(0) - 1)
    def _():
        mol_h = branch_sc[0].astype(bf16)
        pro_h = branch_sc[1].astype(bf16)
        # xc = concat([mol, pro], 1); fc1 folded as mol @ W1_top + pro @ W1_bot
        h1 = (jnp.dot(mol_h, w1_ref[0], preferred_element_type=f32)
              + jnp.dot(pro_h, w1_ref[1], preferred_element_type=f32)
              + b1_ref[...])
        h1 = jnp.maximum(h1, 0.0)                                   # relu (+ eval dropout)
        h2 = jnp.maximum(
            jnp.dot(h1.astype(bf16), w2_ref[...], preferred_element_type=f32)
            + b2_ref[...], 0.0)                                     # fc2 + relu
        o_ref[...] = (jnp.dot(h2.astype(bf16), w3_ref[...],
                              preferred_element_type=f32)
                      + b3_ref[...]).astype(o_ref.dtype)            # lane-dense padded out


def pallas_gcnii_model(a, x, p, *, alpha):
    """Single pallas_call running both branches + the MLP head."""
    B, n, _ = x.shape
    L, hdim = p["w_gcn"].shape[1], p["w_gcn"].shape[2]
    d = p["w_out"].shape[2]
    h1 = p["w1"].shape[2]
    h2 = p["w2"].shape[1]
    opad = p["w3"].shape[1]

    # ---- cost estimate (advisory, lets XLA schedule around the call) ------- #
    flops_branch = B * (2 * n * PAD_F * hdim
                        + L * (2 * n * n * hdim + 2 * n * hdim * hdim)
                        + 2 * n * hdim * d)
    flops_head = 2 * n * (2 * d) * h1 + 2 * n * h1 * h2 + 2 * n * h2 * opad
    weight_ops = (p["w_in"], p["b_in"], p["w_gcn"], p["w_out"], p["b_out"],
                  p["w1"], p["b1"], p["w2"], p["b2"], p["w3"], p["b3"])
    bytes_accessed = (a.size * a.dtype.itemsize + x.size * x.dtype.itemsize
                      + sum(int(w.size) * w.dtype.itemsize for w in weight_ops)
                      + n * opad * 4)

    # ---- explicit VMEM limit sized from the resident set ------------------- #
    itb, itf = 2, 4
    per_branch = ((n * n + n * PAD_F + PAD_F * hdim + L * hdim * hdim
                   + hdim * d) * itb + (hdim + d) * itf)
    head_w = ((2 * d * h1 + h1 * h2 + h2 * opad) * itb
              + (h1 + h2 + opad) * itf)
    resident = 2 * (per_branch + head_w + n * opad * itf)   # x2 double-buffering
    resident += B * n * d * itf                             # persistent scratch
    resident += 12 * n * hdim * itf                         # live intermediates
    vmem_limit = int(min(max(resident * 3 // 2, 32 << 20), 60 << 20))

    return pl.pallas_call(
        functools.partial(_fused_kernel, alpha=alpha, num_layers=L),
        out_shape=jax.ShapeDtypeStruct((n, opad), jnp.float32),
        grid=(B,),
        in_specs=[
            _branch_spec(n, n),            # A_hat, (1-alpha)-scaled, bf16
            _branch_spec(n, PAD_F),        # padded input features, bf16
            _branch_spec(PAD_F, hdim),     # W_in
            _branch_spec(1, hdim),         # b_in
            _branch_spec(L, hdim, hdim),   # stacked GCNII layer weights
            _branch_spec(hdim, d),         # W_out
            _branch_spec(1, d),            # b_out
            _full_spec(2, d, h1),          # fc1 split into [top; bottom] halves
            _full_spec(1, h1),             # fc1 bias
            _full_spec(h1, h2),            # fc2
            _full_spec(1, h2),
            _full_spec(h2, opad),          # out (padded to lane-dense slab)
            _full_spec(1, opad),
        ],
        out_specs=pl.BlockSpec((n, opad), lambda b: (0, 0)),
        scratch_shapes=[pltpu.VMEM((B, n, d), jnp.float32)],  # branch stash
        compiler_params=pltpu.CompilerParams(
            # "arbitrary": the fused head needs branch 0's scratch from step 0,
            # so the two steps must run sequentially on one TensorCore.
            dimension_semantics=("arbitrary",),
            vmem_limit_bytes=vmem_limit),
        cost_estimate=pl.CostEstimate(flops=int(flops_branch + flops_head),
                                      transcendentals=0,
                                      bytes_accessed=int(bytes_accessed)),
    )(a, x, p["w_in"], p["b_in"], p["w_gcn"], p["w_out"], p["b_out"],
      p["w1"], p["b1"], p["w2"], p["b2"], p["w3"], p["b3"])


# ------------------------------- JAX glue ------------------------------------ #

def normalized_adjacency(edge_index, num_nodes, scale=1.0):
    """scale * D^-1/2 (A + I) D^-1/2 (dense)."""
    # TODO(synk): dense O(N^2) build; switch to sparse/gather aggregation at scale.
    # TODO(synk): double-counts self-loops if edge_index already contains them
    # (PyG's gcn_norm removes and re-adds them).
    src, dst = edge_index[0], edge_index[1]
    a = jnp.zeros((num_nodes, num_nodes), jnp.float32)
    a = a.at[dst, src].add(1.0)
    a = a + jnp.eye(num_nodes, dtype=jnp.float32)
    deg = a.sum(axis=1)
    dinv = jax.lax.rsqrt(jnp.maximum(deg, 1e-12))
    return scale * a * dinv[:, None] * dinv[None, :]


def init_params(key, num_features_mol, num_features_pro, hidden, out_dim,
                num_layers, head1, head2, n_output, out_pad):
    """Deterministic synthetic parameters, zero-padded to lane-dense shapes.

    MXU operands (weights) are stored in bf16 (f32 accumulation in-kernel);
    biases stay f32 and are pre-shaped to [1, out].  Zero-padded weight
    rows/cols are exact no-ops, so padded matmuls match the unpadded math.
    """
    def dense(k, fan_in, fan_out, pad_in=None, pad_out=None):
        kw, kb = jax.random.split(k)
        scale = (2.0 / (fan_in + fan_out)) ** 0.5
        w = scale * jax.random.normal(kw, (fan_in, fan_out), jnp.float32)
        b = 0.01 * jax.random.normal(kb, (fan_out,), jnp.float32)
        pi = pad_in or fan_in
        po = pad_out or fan_out
        wp = jnp.zeros((pi, po), jnp.float32).at[:fan_in, :fan_out].set(w)
        bp = jnp.zeros((1, po), jnp.float32).at[0, :fan_out].set(b)
        return wp.astype(jnp.bfloat16), bp

    keys = jax.random.split(key, 8)
    ki = iter(keys)
    p = {}

    # branch input projections (stacked along branch axis: 0=mol, 1=pro)
    w_in_m, b_in_m = dense(next(ki), num_features_mol, hidden, pad_in=PAD_F)
    w_in_p, b_in_p = dense(next(ki), num_features_pro, hidden, pad_in=PAD_F)
    p["w_in"] = jnp.stack([w_in_m, w_in_p])          # [2, PAD_F, H] bf16
    p["b_in"] = jnp.stack([b_in_m, b_in_p])          # [2, 1, H]     f32

    # GCNII layer weights, stacked: [2, L, H, H]
    gcn_scale = (2.0 / (hidden + hidden)) ** 0.5
    p["w_gcn"] = (gcn_scale * jax.random.normal(
        next(ki), (2, num_layers, hidden, hidden), jnp.float32)
        ).astype(jnp.bfloat16)

    # branch output projections
    w_out_m, b_out_m = dense(next(ki), hidden, out_dim)
    w_out_p, b_out_p = dense(next(ki), hidden, out_dim)
    p["w_out"] = jnp.stack([w_out_m, w_out_p])       # [2, H, D] bf16
    p["b_out"] = jnp.stack([b_out_m, b_out_p])       # [2, 1, D] f32

    # MLP head: fc1 over concat([mol, pro]) split into two stacked halves
    w1, b1 = dense(next(ki), 2 * out_dim, head1)
    p["w1"] = jnp.stack([w1[:out_dim], w1[out_dim:]])  # [2, D, HEAD1] bf16
    p["b1"] = b1                                       # [1, HEAD1]    f32
    p["w2"], p["b2"] = dense(next(ki), head1, head2)
    # final layer padded to a lane-dense 128-wide slab; real column is [:, :n_output]
    p["w3"], p["b3"] = dense(next(ki), head2, n_output, pad_out=out_pad)
    return p


def gcnii_dense_model(params, mol_x, mol_edge_index, pro_x, pro_edge_index,
                      *, alpha, n_output):
    n_mol, n_pro = mol_x.shape[0], pro_x.shape[0]
    # TODO(synk): branch stacking requires equal node counts; real mol/protein
    # pairs need row-padding of the smaller graph + masking in the head.
    assert n_mol == n_pro, "demo uses equal node counts for the two branches"

    # fold (1 - alpha) into A_hat here (fuses for free) and cast to bf16 for MXU
    a_mol = normalized_adjacency(mol_edge_index, n_mol, scale=1.0 - alpha)
    a_pro = normalized_adjacency(pro_edge_index, n_pro, scale=1.0 - alpha)
    a = jnp.stack([a_mol, a_pro]).astype(jnp.bfloat16)          # [2, N, N]

    # zero-pad raw features to the lane-dense width, stack branches, cast bf16
    def pad_feats(xf):
        z = jnp.zeros((xf.shape[0], PAD_F), jnp.float32)
        return z.at[:, :xf.shape[1]].set(xf)

    x = jnp.stack([pad_feats(mol_x), pad_feats(pro_x)]).astype(jnp.bfloat16)

    out_pad = pallas_gcnii_model(a, x, params, alpha=alpha)     # [N, 128] slab
    return out_pad[:, :n_output]


# ------------------------------- demo / test --------------------------------- #

def ring_edges(n):
    """Undirected ring graph as edge_index [2, 2n]."""
    i = jnp.arange(n, dtype=jnp.int32)
    j = (i + 1) % n
    src = jnp.concatenate([i, j])
    dst = jnp.concatenate([j, i])
    return jnp.stack([src, dst], axis=0)


if __name__ == "__main__":
    # Small, lane-dense shapes consistent with the module (feature dims from
    # __init__ defaults; hidden/head dims scaled down to 128 so every VMEM tile
    # has a 128-wide last dim).  N_NODES=128 feeds a full MXU row tile.
    NUM_FEATURES_MOL = 78
    NUM_FEATURES_PRO = 54
    HIDDEN = 128        # hidden_channels=512 scaled down
    OUT_DIM = 128       # output_dim=128 (as original)
    HEAD1 = 128         # fc1: 1024 scaled down
    HEAD2 = 128         # fc2: 512 scaled down
    NUM_LAYERS = 3
    N_OUTPUT = 1
    OUT_PAD = 128       # lane-dense padded width of the final output slab
    ALPHA = 0.2
    N_NODES = 128       # same node count for mol & protein graphs (forward cats dim 1)

    key = jax.random.PRNGKey(0)
    k_params, k_mol, k_pro = jax.random.split(key, 3)

    params = init_params(k_params, NUM_FEATURES_MOL, NUM_FEATURES_PRO,
                         HIDDEN, OUT_DIM, NUM_LAYERS, HEAD1, HEAD2,
                         N_OUTPUT, OUT_PAD)

    mol_x = jax.random.normal(k_mol, (N_NODES, NUM_FEATURES_MOL), jnp.float32)
    pro_x = jax.random.normal(k_pro, (N_NODES, NUM_FEATURES_PRO), jnp.float32)
    mol_edge_index = ring_edges(N_NODES)
    pro_edge_index = ring_edges(N_NODES)

    fwd = jax.jit(functools.partial(gcnii_dense_model, alpha=ALPHA,
                                    n_output=N_OUTPUT))
    out = fwd(params, mol_x, mol_edge_index, pro_x, pro_edge_index)
    jax.block_until_ready(out)

    assert out.shape == (N_NODES, N_OUTPUT), out.shape
    assert jnp.all(jnp.isfinite(out))
    print("KERNEL_OK")
</pallas_src>

<mosaic_0001>
module attributes {stable_mosaic.version = 11 : i64} {
  func.func private @main(%arg0: i32) attributes {dimension_semantics = [#tpu.dimension_semantics<core_parallel>], iteration_bounds = array<i64: 2>, tpu.core_type = #tpu.core_type<sc_scalar_subcore>, window_params = []} {
    return
  }
}

module attributes {stable_mosaic.version = 11 : i64} {
  func.func private @main(%arg0: i32) attributes {dimension_semantics = [#tpu.dimension_semantics<core_parallel>], iteration_bounds = array<i64: 2>, tpu.core_type = #tpu.core_type<sc_scalar_subcore>, window_params = []} {
    return
  }
}

module attributes {stable_mosaic.version = 11 : i64} {
  func.func @_fused_kernel(%arg0: i32, %arg1: memref<1x128x128xbf16, #tpu.memory_space<vmem>>, %arg2: memref<1x128x128xbf16, #tpu.memory_space<vmem>>, %arg3: memref<1x128x128xbf16, #tpu.memory_space<vmem>>, %arg4: memref<1x1x128xf32, #tpu.memory_space<vmem>>, %arg5: memref<1x3x128x128xbf16, #tpu.memory_space<vmem>>, %arg6: memref<1x128x128xbf16, #tpu.memory_space<vmem>>, %arg7: memref<1x1x128xf32, #tpu.memory_space<vmem>>, %arg8: memref<2x128x128xbf16, #tpu.memory_space<vmem>>, %arg9: memref<1x128xf32, #tpu.memory_space<vmem>>, %arg10: memref<128x128xbf16, #tpu.memory_space<vmem>>, %arg11: memref<1x128xf32, #tpu.memory_space<vmem>>, %arg12: memref<128x128xbf16, #tpu.memory_space<vmem>>, %arg13: memref<1x128xf32, #tpu.memory_space<vmem>>, %arg14: memref<128x128xf32, #tpu.memory_space<vmem>>, %arg15: memref<2x128x128xf32, #tpu.memory_space<vmem>>) attributes {dimension_semantics = [#tpu.dimension_semantics<arbitrary>], iteration_bounds = array<i64: 2>, scalar_prefetch = 0 : i64, scratch_operands = 1 : i64, tpu.core_type = #tpu.core_type<tc>, window_params = [{transform_indices = @transform_0, window_bounds = array<i64: 1, 128, 128>}, {transform_indices = @transform_1, window_bounds = array<i64: 1, 128, 128>}, {transform_indices = @transform_2, window_bounds = array<i64: 1, 128, 128>}, {transform_indices = @transform_3, window_bounds = array<i64: 1, 1, 128>}, {transform_indices = @transform_4, window_bounds = array<i64: 1, 3, 128, 128>}, {transform_indices = @transform_5, window_bounds = array<i64: 1, 128, 128>}, {transform_indices = @transform_6, window_bounds = array<i64: 1, 1, 128>}, {pipeline_mode = #tpu.pipeline_mode<synchronous>, transform_indices = @transform_7, window_bounds = array<i64: 2, 128, 128>}, {pipeline_mode = #tpu.pipeline_mode<synchronous>, transform_indices = @transform_8, window_bounds = array<i64: 1, 128>}, {pipeline_mode = #tpu.pipeline_mode<synchronous>, transform_indices = @transform_9, window_bounds = array<i64: 128, 128>}, {pipeline_mode = #tpu.pipeline_mode<synchronous>, transform_indices = @transform_10, window_bounds = array<i64: 1, 128>}, {pipeline_mode = #tpu.pipeline_mode<synchronous>, transform_indices = @transform_11, window_bounds = array<i64: 128, 128>}, {pipeline_mode = #tpu.pipeline_mode<synchronous>, transform_indices = @transform_12, window_bounds = array<i64: 1, 128>}, {pipeline_mode = #tpu.pipeline_mode<synchronous>, transform_indices = @transform_13, window_bounds = array<i64: 128, 128>}]} {
    %c0 = arith.constant 0 : index
    %c0_0 = arith.constant 0 : index
    %c0_1 = arith.constant 0 : index
    %0 = vector.load %arg1[%c0, %c0_0, %c0_1] : memref<1x128x128xbf16, #tpu.memory_space<vmem>>, vector<1x128x128xbf16>
    %1 = vector.shape_cast %0 : vector<1x128x128xbf16> to vector<128x128xbf16>
    %c0_2 = arith.constant 0 : index
    %c0_3 = arith.constant 0 : index
    %c0_4 = arith.constant 0 : index
    %2 = vector.load %arg2[%c0_2, %c0_3, %c0_4] : memref<1x128x128xbf16, #tpu.memory_space<vmem>>, vector<1x128x128xbf16>
    %3 = vector.shape_cast %2 : vector<1x128x128xbf16> to vector<128x128xbf16>
    %c0_5 = arith.constant 0 : index
    %c0_6 = arith.constant 0 : index
    %c0_7 = arith.constant 0 : index
    %4 = vector.load %arg3[%c0_5, %c0_6, %c0_7] : memref<1x128x128xbf16, #tpu.memory_space<vmem>>, vector<1x128x128xbf16>
    %5 = vector.shape_cast %4 : vector<1x128x128xbf16> to vector<128x128xbf16>
    %cst = arith.constant dense<0.000000e+00> : vector<128x128xf32>
    %6 = tpu.matmul %3, %5, %cst {dimension_numbers = #tpu.dot_dimension_numbers<[1], [0], [0], [1], [0, 0, 1, 1], [], []>} : vector<128x128xbf16>, vector<128x128xbf16>, vector<128x128xf32> -> vector<128x128xf32>
    %c0_8 = arith.constant 0 : index
    %c0_9 = arith.constant 0 : index
    %c0_10 = arith.constant 0 : index
    %7 = vector.load %arg4[%c0_8, %c0_9, %c0_10] : memref<1x1x128xf32, #tpu.memory_space<vmem>>, vector<1x1x128xf32>
    %8 = vector.shape_cast %7 : vector<1x1x128xf32> to vector<1x128xf32>
    %9 = vector.broadcast %8 : vector<1x128xf32> to vector<128x128xf32>
    %10 = arith.addf %6, %9 : vector<128x128xf32>
    %cst_11 = arith.constant 0.000000e+00 : f32
    %11 = vector.broadcast %cst_11 : f32 to vector<128x128xf32>
    %12 = arith.maximumf %10, %11 : vector<128x128xf32>
    %cst_12 = arith.constant 2.000000e-01 : f32
    %13 = vector.broadcast %cst_12 : f32 to vector<128x128xf32>
    %14 = arith.mulf %13, %12 : vector<128x128xf32>
    %15 = arith.truncf %12 : vector<128x128xf32> to vector<128x128xbf16>
    %cst_13 = arith.constant dense<0.000000e+00> : vector<128x128xf32>
    %16 = tpu.matmul %1, %15, %cst_13 {dimension_numbers = #tpu.dot_dimension_numbers<[1], [0], [0], [1], [0, 0, 1, 1], [], []>} : vector<128x128xbf16>, vector<128x128xbf16>, vector<128x128xf32> -> vector<128x128xf32>
    %17 = arith.addf %16, %14 : vector<128x128xf32>
    %18 = arith.truncf %17 : vector<128x128xf32> to vector<128x128xbf16>
    %c0_14 = arith.constant 0 : index
    %c0_15 = arith.constant 0 : index
    %c0_16 = arith.constant 0 : index
    %c0_17 = arith.constant 0 : index
    %19 = vector.load %arg5[%c0_14, %c0_15, %c0_16, %c0_17] : memref<1x3x128x128xbf16, #tpu.memory_space<vmem>>, vector<1x1x128x128xbf16>
    %20 = vector.shape_cast %19 : vector<1x1x128x128xbf16> to vector<128x128xbf16>
    %cst_18 = arith.constant dense<0.000000e+00> : vector<128x128xf32>
    %21 = tpu.matmul %18, %20, %cst_18 {dimension_numbers = #tpu.dot_dimension_numbers<[1], [0], [0], [1], [0, 0, 1, 1], [], []>} : vector<128x128xbf16>, vector<128x128xbf16>, vector<128x128xf32> -> vector<128x128xf32>
    %22 = arith.addf %17, %21 : vector<128x128xf32>
    %cst_19 = arith.constant 0.000000e+00 : f32
    %23 = vector.broadcast %cst_19 : f32 to vector<128x128xf32>
    %24 = arith.maximumf %22, %23 : vector<128x128xf32>
    %25 = arith.addf %24, %12 : vector<128x128xf32>
    %26 = arith.truncf %25 : vector<128x128xf32> to vector<128x128xbf16>
    %cst_20 = arith.constant dense<0.000000e+00> : vector<128x128xf32>
    %27 = tpu.matmul %1, %26, %cst_20 {dimension_numbers = #tpu.dot_dimension_numbers<[1], [0], [0], [1], [0, 0, 1, 1], [], []>} : vector<128x128xbf16>, vector<128x128xbf16>, vector<128x128xf32> -> vector<128x128xf32>
    %28 = arith.addf %27, %14 : vector<128x128xf32>
    %29 = arith.truncf %28 : vector<128x128xf32> to vector<128x128xbf16>
    %c0_21 = arith.constant 0 : index
    %c1 = arith.constant 1 : index
    %c0_22 = arith.constant 0 : index
    %c0_23 = arith.constant 0 : index
    %30 = vector.load %arg5[%c0_21, %c1, %c0_22, %c0_23] : memref<1x3x128x128xbf16, #tpu.memory_space<vmem>>, vector<1x1x128x128xbf16>
    %31 = vector.shape_cast %30 : vector<1x1x128x128xbf16> to vector<128x128xbf16>
    %cst_24 = arith.constant dense<0.000000e+00> : vector<128x128xf32>
    %32 = tpu.matmul %29, %31, %cst_24 {dimension_numbers = #tpu.dot_dimension_numbers<[1], [0], [0], [1], [0, 0, 1, 1], [], []>} : vector<128x128xbf16>, vector<128x128xbf16>, vector<128x128xf32> -> vector<128x128xf32>
    %33 = arith.addf %28, %32 : vector<128x128xf32>
    %cst_25 = arith.constant 0.000000e+00 : f32
    %34 = vector.broadcast %cst_25 : f32 to vector<128x128xf32>
    %35 = arith.maximumf %33, %34 : vector<128x128xf32>
    %36 = arith.addf %35, %25 : vector<128x128xf32>
    %37 = arith.truncf %36 : vector<128x128xf32> to vector<128x128xbf16>
    %cst_26 = arith.constant dense<0.000000e+00> : vector<128x128xf32>
    %38 = tpu.matmul %1, %37, %cst_26 {dimension_numbers = #tpu.dot_dimension_numbers<[1], [0], [0], [1], [0, 0, 1, 1], [], []>} : vector<128x128xbf16>, vector<128x128xbf16>, vector<128x128xf32> -> vector<128x128xf32>
    %39 = arith.addf %38, %14 : vector<128x128xf32>
    %40 = arith.truncf %39 : vector<128x128xf32> to vector<128x128xbf16>
    %c0_27 = arith.constant 0 : index
    %c2 = arith.constant 2 : index
    %c0_28 = arith.constant 0 : index
    %c0_29 = arith.constant 0 : index
    %41 = vector.load %arg5[%c0_27, %c2, %c0_28, %c0_29] : memref<1x3x128x128xbf16, #tpu.memory_space<vmem>>, vector<1x1x128x128xbf16>
    %42 = vector.shape_cast %41 : vector<1x1x128x128xbf16> to vector<128x128xbf16>
    %cst_30 = arith.constant dense<0.000000e+00> : vector<128x128xf32>
    %43 = tpu.matmul %40, %42, %cst_30 {dimension_numbers = #tpu.dot_dimension_numbers<[1], [0], [0], [1], [0, 0, 1, 1], [], []>} : vector<128x128xbf16>, vector<128x128xbf16>, vector<128x128xf32> -> vector<128x128xf32>
    %44 = arith.addf %39, %43 : vector<128x128xf32>
    %cst_31 = arith.constant 0.000000e+00 : f32
    %45 = vector.broadcast %cst_31 : f32 to vector<128x128xf32>
    %46 = arith.maximumf %44, %45 : vector<128x128xf32>
    %47 = arith.addf %46, %36 : vector<128x128xf32>
    %48 = arith.truncf %47 : vector<128x128xf32> to vector<128x128xbf16>
    %c0_32 = arith.constant 0 : index
    %c0_33 = arith.constant 0 : index
    %c0_34 = arith.constant 0 : index
    %49 = vector.load %arg6[%c0_32, %c0_33, %c0_34] : memref<1x128x128xbf16, #tpu.memory_space<vmem>>, vector<1x128x128xbf16>
    %50 = vector.shape_cast %49 : vector<1x128x128xbf16> to vector<128x128xbf16>
    %cst_35 = arith.constant dense<0.000000e+00> : vector<128x128xf32>
    %51 = tpu.matmul %48, %50, %cst_35 {dimension_numbers = #tpu.dot_dimension_numbers<[1], [0], [0], [1], [0, 0, 1, 1], [], []>} : vector<128x128xbf16>, vector<128x128xbf16>, vector<128x128xf32> -> vector<128x128xf32>
    %c0_36 = arith.constant 0 : index
    %c0_37 = arith.constant 0 : index
    %c0_38 = arith.constant 0 : index
    %52 = vector.load %arg7[%c0_36, %c0_37, %c0_38] : memref<1x1x128xf32, #tpu.memory_space<vmem>>, vector<1x1x128xf32>
    %53 = vector.shape_cast %52 : vector<1x1x128xf32> to vector<1x128xf32>
    %54 = vector.broadcast %53 : vector<1x128xf32> to vector<128x128xf32>
    %55 = arith.addf %51, %54 : vector<128x128xf32>
    %56 = arith.index_cast %arg0 : i32 to index
    %c0_39 = arith.constant 0 : index
    %c0_40 = arith.constant 0 : index
    %57 = vector.load %arg15[%56, %c0_39, %c0_40] : memref<2x128x128xf32, #tpu.memory_space<vmem>>, vector<1x128x128xf32>
    %58 = vector.shape_cast %57 : vector<1x128x128xf32> to vector<128x128xf32>
    %59 = vector.shape_cast %55 : vector<128x128xf32> to vector<1x128x128xf32>
    tpu.vector_store %arg15[%56, %c0_39, %c0_40], %59 {strides = array<i32>} : memref<2x128x128xf32, #tpu.memory_space<vmem>>, vector<1x128x128xf32>,
    %c1_i32 = arith.constant 1 : i32
    %60 = arith.cmpi eq, %arg0, %c1_i32 : i32
    %61 = arith.extui %60 : i1 to i32
    %c0_i32 = arith.constant 0 : i32
    %62 = arith.cmpi ne, %61, %c0_i32 : i32
    scf.if %62 {
      %c0_41 = arith.constant 0 : index
      %c0_42 = arith.constant 0 : index
      %c0_43 = arith.constant 0 : index
      %63 = vector.load %arg15[%c0_41, %c0_42, %c0_43] : memref<2x128x128xf32, #tpu.memory_space<vmem>>, vector<1x128x128xf32>
      %64 = vector.shape_cast %63 : vector<1x128x128xf32> to vector<128x128xf32>
      %65 = arith.truncf %64 : vector<128x128xf32> to vector<128x128xbf16>
      %c1_44 = arith.constant 1 : index
      %c0_45 = arith.constant 0 : index
      %c0_46 = arith.constant 0 : index
      %66 = vector.load %arg15[%c1_44, %c0_45, %c0_46] : memref<2x128x128xf32, #tpu.memory_space<vmem>>, vector<1x128x128xf32>
      %67 = vector.shape_cast %66 : vector<1x128x128xf32> to vector<128x128xf32>
      %68 = arith.truncf %67 : vector<128x128xf32> to vector<128x128xbf16>
      %c0_47 = arith.constant 0 : index
      %c0_48 = arith.constant 0 : index
      %c0_49 = arith.constant 0 : index
      %69 = vector.load %arg8[%c0_47, %c0_48, %c0_49] : memref<2x128x128xbf16, #tpu.memory_space<vmem>>, vector<1x128x128xbf16>
      %70 = vector.shape_cast %69 : vector<1x128x128xbf16> to vector<128x128xbf16>
      %cst_50 = arith.constant dense<0.000000e+00> : vector<128x128xf32>
      %71 = tpu.matmul %65, %70, %cst_50 {dimension_numbers = #tpu.dot_dimension_numbers<[1], [0], [0], [1], [0, 0, 1, 1], [], []>} : vector<128x128xbf16>, vector<128x128xbf16>, vector<128x128xf32> -> vector<128x128xf32>
      %c1_51 = arith.constant 1 : index
      %c0_52 = arith.constant 0 : index
      %c0_53 = arith.constant 0 : index
      %72 = vector.load %arg8[%c1_51, %c0_52, %c0_53] : memref<2x128x128xbf16, #tpu.memory_space<vmem>>, vector<1x128x128xbf16>
      %73 = vector.shape_cast %72 : vector<1x128x128xbf16> to vector<128x128xbf16>
      %cst_54 = arith.constant dense<0.000000e+00> : vector<128x128xf32>
      %74 = tpu.matmul %68, %73, %cst_54 {dimension_numbers = #tpu.dot_dimension_numbers<[1], [0], [0], [1], [0, 0, 1, 1], [], []>} : vector<128x128xbf16>, vector<128x128xbf16>, vector<128x128xf32> -> vector<128x128xf32>
      %75 = arith.addf %71, %74 : vector<128x128xf32>
      %c0_55 = arith.constant 0 : index
      %c0_56 = arith.constant 0 : index
      %76 = vector.load %arg9[%c0_55, %c0_56] : memref<1x128xf32, #tpu.memory_space<vmem>>, vector<1x128xf32>
      %77 = vector.broadcast %76 : vector<1x128xf32> to vector<128x128xf32>
      %78 = arith.addf %75, %77 : vector<128x128xf32>
      %cst_57 = arith.constant 0.000000e+00 : f32
      %79 = vector.broadcast %cst_57 : f32 to vector<128x128xf32>
      %80 = arith.maximumf %78, %79 : vector<128x128xf32>
      %81 = arith.truncf %80 : vector<128x128xf32> to vector<128x128xbf16>
      %c0_58 = arith.constant 0 : index
      %c0_59 = arith.constant 0 : index
      %82 = vector.load %arg10[%c0_58, %c0_59] : memref<128x128xbf16, #tpu.memory_space<vmem>>, vector<128x128xbf16>
      %cst_60 = arith.constant dense<0.000000e+00> : vector<128x128xf32>
      %83 = tpu.matmul %81, %82, %cst_60 {dimension_numbers = #tpu.dot_dimension_numbers<[1], [0], [0], [1], [0, 0, 1, 1], [], []>} : vector<128x128xbf16>, vector<128x128xbf16>, vector<128x128xf32> -> vector<128x128xf32>
      %c0_61 = arith.constant 0 : index
      %c0_62 = arith.constant 0 : index
      %84 = vector.load %arg11[%c0_61, %c0_62] : memref<1x128xf32, #tpu.memory_space<vmem>>, vector<1x128xf32>
      %85 = vector.broadcast %84 : vector<1x128xf32> to vector<128x128xf32>
      %86 = arith.addf %83, %85 : vector<128x128xf32>
      %cst_63 = arith.constant 0.000000e+00 : f32
      %87 = vector.broadcast %cst_63 : f32 to vector<128x128xf32>
      %88 = arith.maximumf %86, %87 : vector<128x128xf32>
      %89 = arith.truncf %88 : vector<128x128xf32> to vector<128x128xbf16>
      %c0_64 = arith.constant 0 : index
      %c0_65 = arith.constant 0 : index
      %90 = vector.load %arg12[%c0_64, %c0_65] : memref<128x128xbf16, #tpu.memory_space<vmem>>, vector<128x128xbf16>
      %cst_66 = arith.constant dense<0.000000e+00> : vector<128x128xf32>
      %91 = tpu.matmul %89, %90, %cst_66 {dimension_numbers = #tpu.dot_dimension_numbers<[1], [0], [0], [1], [0, 0, 1, 1], [], []>} : vector<128x128xbf16>, vector<128x128xbf16>, vector<128x128xf32> -> vector<128x128xf32>
      %c0_67 = arith.constant 0 : index
      %c0_68 = arith.constant 0 : index
      %92 = vector.load %arg13[%c0_67, %c0_68] : memref<1x128xf32, #tpu.memory_space<vmem>>, vector<1x128xf32>
      %93 = vector.broadcast %92 : vector<1x128xf32> to vector<128x128xf32>
      %94 = arith.addf %91, %93 : vector<128x128xf32>
      %c0_69 = arith.constant 0 : index
      %c0_70 = arith.constant 0 : index
      %95 = vector.load %arg14[%c0_69, %c0_70] : memref<128x128xf32, #tpu.memory_space<vmem>>, vector<128x128xf32>
      tpu.vector_store %arg14[%c0_69, %c0_70], %94 {strides = array<i32>} : memref<128x128xf32, #tpu.memory_space<vmem>>, vector<128x128xf32>,
    } else {
    }
    return
  }
  func.func @transform_0(%arg0: i32) -> (i32, i32, i32) {
    %c0_i32 = arith.constant 0 : i32
    %c0_i32_0 = arith.constant 0 : i32
    %c0_i32_1 = arith.constant 0 : i32
    return %arg0, %c0_i32, %c0_i32_0 : i32, i32, i32
  }
  func.func @transform_1(%arg0: i32) -> (i32, i32, i32) {
    %c0_i32 = arith.constant 0 : i32
    %c0_i32_0 = arith.constant 0 : i32
    %c0_i32_1 = arith.constant 0 : i32
    return %arg0, %c0_i32, %c0_i32_0 : i32, i32, i32
  }
  func.func @transform_2(%arg0: i32) -> (i32, i32, i32) {
    %c0_i32 = arith.constant 0 : i32
    %c0_i32_0 = arith.constant 0 : i32
    %c0_i32_1 = arith.constant 0 : i32
    return %arg0, %c0_i32, %c0_i32_0 : i32, i32, i32
  }
  func.func @transform_3(%arg0: i32) -> (i32, i32, i32) {
    %c0_i32 = arith.constant 0 : i32
    %c0_i32_0 = arith.constant 0 : i32
    %c0_i32_1 = arith.constant 0 : i32
    return %arg0, %c0_i32, %c0_i32_0 : i32, i32, i32
  }
  func.func @transform_4(%arg0: i32) -> (i32, i32, i32, i32) {
    %c0_i32 = arith.constant 0 : i32
    %c0_i32_0 = arith.constant 0 : i32
    %c0_i32_1 = arith.constant 0 : i32
    %c0_i32_2 = arith.constant 0 : i32
    return %arg0, %c0_i32, %c0_i32_0, %c0_i32_1 : i32, i32, i32, i32
  }
  func.func @transform_5(%arg0: i32) -> (i32, i32, i32) {
    %c0_i32 = arith.constant 0 : i32
    %c0_i32_0 = arith.constant 0 : i32
    %c0_i32_1 = arith.constant 0 : i32
    return %arg0, %c0_i32, %c0_i32_0 : i32, i32, i32
  }
  func.func @transform_6(%arg0: i32) -> (i32, i32, i32) {
    %c0_i32 = arith.constant 0 : i32
    %c0_i32_0 = arith.constant 0 : i32
    %c0_i32_1 = arith.constant 0 : i32
    return %arg0, %c0_i32, %c0_i32_0 : i32, i32, i32
  }
  func.func @transform_7(%arg0: i32) -> (i32, i32, i32) {
    %c0_i32 = arith.constant 0 : i32
    %c0_i32_0 = arith.constant 0 : i32
    %c0_i32_1 = arith.constant 0 : i32
    %c0_i32_2 = arith.constant 0 : i32
    return %c0_i32, %c0_i32_0, %c0_i32_1 : i32, i32, i32
  }
  func.func @transform_8(%arg0: i32) -> (i32, i32) {
    %c0_i32 = arith.constant 0 : i32
    %c0_i32_0 = arith.constant 0 : i32
    %c0_i32_1 = arith.constant 0 : i32
    return %c0_i32, %c0_i32_0 : i32, i32
  }
  func.func @transform_9(%arg0: i32) -> (i32, i32) {
    %c0_i32 = arith.constant 0 : i32
    %c0_i32_0 = arith.constant 0 : i32
    %c0_i32_1 = arith.constant 0 : i32
    return %c0_i32, %c0_i32_0 : i32, i32
  }
  func.func @transform_10(%arg0: i32) -> (i32, i32) {
    %c0_i32 = arith.constant 0 : i32
    %c0_i32_0 = arith.constant 0 : i32
    %c0_i32_1 = arith.constant 0 : i32
    return %c0_i32, %c0_i32_0 : i32, i32
  }
  func.func @transform_11(%arg0: i32) -> (i32, i32) {
    %c0_i32 = arith.constant 0 : i32
    %c0_i32_0 = arith.constant 0 : i32
    %c0_i32_1 = arith.constant 0 : i32
    return %c0_i32, %c0_i32_0 : i32, i32
  }
  func.func @transform_12(%arg0: i32) -> (i32, i32) {
    %c0_i32 = arith.constant 0 : i32
    %c0_i32_0 = arith.constant 0 : i32
    %c0_i32_1 = arith.constant 0 : i32
    return %c0_i32, %c0_i32_0 : i32, i32
  }
  func.func @transform_13(%arg0: i32) -> (i32, i32) {
    %c0_i32 = arith.constant 0 : i32
    %c0_i32_0 = arith.constant 0 : i32
    %c0_i32_1 = arith.constant 0 : i32
    return %c0_i32, %c0_i32_0 : i32, i32
  }
}

</mosaic_0001>

<llo_original>
// kernel: gcnii_dense_model.1
$region0: #{gcnii_dense_model.1}
  #allocation0 [shape = 'u32[]', space=smem, size = 0x4, offset = 0x4, fixed_abs, tag = 'smem constant byte address 0x4 - core index']
  #allocation1 [shape = 'u32[144,128]{1,0:T(1,128)}', space=vmem, size = 0x12000, scoped, tag = 'internal scratch']
  #allocation2 [shape = 'f32[2,128,128]{2,1,0:T(8,128)}', space=vmem, size = 0x20000, scoped, tag = 'scratch operand']
  %s0 = inlined_call_operand.vmem [shape: bf16[2,128,128], index: 0, kind: input, shape index: {}]
  %s1 = inlined_call_operand.vmem [shape: bf16[2,128,128], index: 1, kind: input, shape index: {}]
  %s2 = inlined_call_operand.vmem [shape: bf16[2,128,128], index: 2, kind: input, shape index: {}]
  %s3 = inlined_call_operand.vmem [shape: f32[2,1,128], index: 3, kind: input, shape index: {}]
  %s4 = inlined_call_operand.vmem [shape: bf16[2,3,128,128], index: 4, kind: input, shape index: {}]
  %s5 = inlined_call_operand.vmem [shape: bf16[2,128,128], index: 5, kind: input, shape index: {}]
  %s6 = inlined_call_operand.vmem [shape: f32[2,1,128], index: 6, kind: input, shape index: {}]
  %s7 = inlined_call_operand.vmem [shape: bf16[2,128,128], index: 7, kind: input, shape index: {}]
  %s8 = inlined_call_operand.vmem [shape: f32[1,128], index: 8, kind: input, shape index: {}]
  %s9 = inlined_call_operand.vmem [shape: bf16[128,128], index: 9, kind: input, shape index: {}]
  %s10 = inlined_call_operand.vmem [shape: f32[1,128], index: 10, kind: input, shape index: {}]
  %s11 = inlined_call_operand.vmem [shape: bf16[128,128], index: 11, kind: input, shape index: {}]
  %s12 = inlined_call_operand.vmem [shape: f32[1,128], index: 12, kind: input, shape index: {}]
  %s13 = inlined_call_operand.vmem [shape: f32[128,128], index: 13, kind: output, shape index: {}]
  %s14 = sld [smem:[#allocation0]]
  $region89: #{gcnii_dense_model.1} parent=0
    _
  %s16 = ssub.s32 1, %s14
  %s17 = scalar_select 0, %s16, %s14
  loop: start=0, step=1, limit=4
  $region2: #{gcnii_dense_model.1} parent=0 // loop_pre_header
    _
  $region3: #{gcnii_dense_model.1} parent=0 // loop_header
    %s19 = sphi 0, %s23
    %p20 = scmp.ge.s32.totalorder %s19, 4
    %s29 = sphi 0, %s31
    %s32 = sphi 0, %s29
    %s33 = sphi 0, %s32
    %s49 = sphi 0, %s33
    %s55 = sphi 0, %s57
    %s58 = sphi 0, %s55
    %s59 = sphi 0, %s58
    %s75 = sphi 0, %s59
    %s81 = sphi 0, %s83
    %s84 = sphi 0, %s81
    %s85 = sphi 0, %s84
    %s101 = sphi 0, %s85
    %s107 = sphi 0, %s109
    %s110 = sphi 0, %s107
    %s111 = sphi 0, %s110
    %s127 = sphi 0, %s111
    %s133 = sphi 0, %s135
    %s136 = sphi 0, %s133
    %s137 = sphi 0, %s136
    %s153 = sphi 0, %s137
    %s159 = sphi 0, %s161
    %s162 = sphi 0, %s159
    %s163 = sphi 0, %s162
    %s179 = sphi 0, %s163
    %s185 = sphi 0, %s187
    %s188 = sphi 0, %s185
    %s189 = sphi 0, %s188
    %s205 = sphi 0, %s189
    %s209 = sphi 0, %s209
    %s211 = sphi 0, %s209
    %s212 = sphi 0, %s211
    %s226 = sphi 0, %s212
    %s230 = sphi 0, %s230
    %s232 = sphi 0, %s230
    %s233 = sphi 0, %s232
    %s247 = sphi 0, %s233
    %s251 = sphi 0, %s251
    %s253 = sphi 0, %s251
    %s254 = sphi 0, %s253
    %s268 = sphi 0, %s254
    %s272 = sphi 0, %s272
    %s274 = sphi 0, %s272
    %s275 = sphi 0, %s274
    %s289 = sphi 0, %s275
    %s293 = sphi 0, %s293
    %s295 = sphi 0, %s293
    %s296 = sphi 0, %s295
    %s310 = sphi 0, %s296
    %s314 = sphi 0, %s314
    %s316 = sphi 0, %s314
    %s317 = sphi 0, %s316
    %s331 = sphi 0, %s317
    %s335 = sphi 0, %s335
    %s337 = sphi 0, %s335
    %s338 = sphi 0, %s337
    %s352 = sphi 0, %s338
  $region4: #{gcnii_dense_model.1} parent=0 // loop_header_branch
    %22 = sbr.rel (%p20) target = $region8
  $region5: #{gcnii_dense_model.1} parent=0 // loop_body
    %s24 = ssub.s32 %s19, 1
    %s25 = ssub.s32 %s19, 2
    %s26 = sadd.s32 %s19, 1
    %s27 = ssub.s32 %s19, %s26
    %p28 = scmp.eq.s32.totalorder %s27, 0
    %s30 = sadd.s32 %s29, 1
    %s31 = scalar_select %p28, %s29, %s30
    %p34 = pneg %p28
    %p35 = scmp.eq.s32.totalorder %s19, 1
    %p36 = por %p34, %p35
    %p37 = scmp.ne.s32.totalorder %s29, %s32
    %p38 = scmp.eq.s32.totalorder %s19, 0
    %p39 = por %p37, %p38
    %p40 = scmp.ne.s32.totalorder %s29, %s32
    %p41 = scmp.eq.s32.totalorder %s24, 1
    %p42 = por %p40, %p41
    %p43 = scmp.ne.s32.totalorder %s32, %s33
    %p44 = scmp.eq.s32.totalorder %s24, 0
    %p45 = por %p43, %p44
    %p46 = scmp.ne.s32.totalorder %s32, %s33
    %p47 = scmp.eq.s32.totalorder %s25, 1
    %p48 = por %p46, %p47
    %p50 = scmp.ne.s32.totalorder %s33, %s49
    %p51 = scmp.eq.s32.totalorder %s25, 0
    %p52 = por %p50, %p51
    %s53 = ssub.s32 %s19, %s26
    %p54 = scmp.eq.s32.totalorder %s53, 0
    %s56 = sadd.s32 %s55, 1
    %s57 = scalar_select %p54, %s55, %s56
    %p60 = pneg %p54
    %p61 = scmp.eq.s32.totalorder %s19, 1
    %p62 = por %p60, %p61
    %p63 = scmp.ne.s32.totalorder %s55, %s58
    %p64 = scmp.eq.s32.totalorder %s19, 0
    %p65 = por %p63, %p64
    %p66 = scmp.ne.s32.totalorder %s55, %s58
    %p67 = scmp.eq.s32.totalorder %s24, 1
    %p68 = por %p66, %p67
    %p69 = scmp.ne.s32.totalorder %s58, %s59
    %p70 = scmp.eq.s32.totalorder %s24, 0
    %p71 = por %p69, %p70
    %p72 = scmp.ne.s32.totalorder %s58, %s59
    %p73 = scmp.eq.s32.totalorder %s25, 1
    %p74 = por %p72, %p73
    %p76 = scmp.ne.s32.totalorder %s59, %s75
    %p77 = scmp.eq.s32.totalorder %s25, 0
    %p78 = por %p76, %p77
    %s79 = ssub.s32 %s19, %s26
    %p80 = scmp.eq.s32.totalorder %s79, 0
    %s82 = sadd.s32 %s81, 1
    %s83 = scalar_select %p80, %s81, %s82
    %p86 = pneg %p80
    %p87 = scmp.eq.s32.totalorder %s19, 1
    %p88 = por %p86, %p87
    %p89 = scmp.ne.s32.totalorder %s81, %s84
    %p90 = scmp.eq.s32.totalorder %s19, 0
    %p91 = por %p89, %p90
    %p92 = scmp.ne.s32.totalorder %s81, %s84
    %p93 = scmp.eq.s32.totalorder %s24, 1
    %p94 = por %p92, %p93
    %p95 = scmp.ne.s32.totalorder %s84, %s85
    %p96 = scmp.eq.s32.totalorder %s24, 0
    %p97 = por %p95, %p96
    %p98 = scmp.ne.s32.totalorder %s84, %s85
    %p99 = scmp.eq.s32.totalorder %s25, 1
    %p100 = por %p98, %p99
    %p102 = scmp.ne.s32.totalorder %s85, %s101
    %p103 = scmp.eq.s32.totalorder %s25, 0
    %p104 = por %p102, %p103
    %s105 = ssub.s32 %s19, %s26
    %p106 = scmp.eq.s32.totalorder %s105, 0
    %s108 = sadd.s32 %s107, 1
    %s109 = scalar_select %p106, %s107, %s108
    %p112 = pneg %p106
    %p113 = scmp.eq.s32.totalorder %s19, 1
    %p114 = por %p112, %p113
    %p115 = scmp.ne.s32.totalorder %s107, %s110
    %p116 = scmp.eq.s32.totalorder %s19, 0
    %p117 = por %p115, %p116
    %p118 = scmp.ne.s32.totalorder %s107, %s110
    %p119 = scmp.eq.s32.totalorder %s24, 1
    %p120 = por %p118, %p119
    %p121 = scmp.ne.s32.totalorder %s110, %s111
    %p122 = scmp.eq.s32.totalorder %s24, 0
    %p123 = por %p121, %p122
    %p124 = scmp.ne.s32.totalorder %s110, %s111
    %p125 = scmp.eq.s32.totalorder %s25, 1
    %p126 = por %p124, %p125
    %p128 = scmp.ne.s32.totalorder %s111, %s127
    %p129 = scmp.eq.s32.totalorder %s25, 0
    %p130 = por %p128, %p129
    %s131 = ssub.s32 %s19, %s26
    %p132 = scmp.eq.s32.totalorder %s131, 0
    %s134 = sadd.s32 %s133, 1
    %s135 = scalar_select %p132, %s133, %s134
    %p138 = pneg %p132
    %p139 = scmp.eq.s32.totalorder %s19, 1
    %p140 = por %p138, %p139
    %p141 = scmp.ne.s32.totalorder %s133, %s136
    %p142 = scmp.eq.s32.totalorder %s19, 0
    %p143 = por %p141, %p142
    %p144 = scmp.ne.s32.totalorder %s133, %s136
    %p145 = scmp.eq.s32.totalorder %s24, 1
    %p146 = por %p144, %p145
    %p147 = scmp.ne.s32.totalorder %s136, %s137
    %p148 = scmp.eq.s32.totalorder %s24, 0
    %p149 = por %p147, %p148
    %p150 = scmp.ne.s32.totalorder %s136, %s137
    %p151 = scmp.eq.s32.totalorder %s25, 1
    %p152 = por %p150, %p151
    %p154 = scmp.ne.s32.totalorder %s137, %s153
    %p155 = scmp.eq.s32.totalorder %s25, 0
    %p156 = por %p154, %p155
    %s157 = ssub.s32 %s19, %s26
    %p158 = scmp.eq.s32.totalorder %s157, 0
    %s160 = sadd.s32 %s159, 1
    %s161 = scalar_select %p158, %s159, %s160
    %p164 = pneg %p158
    %p165 = scmp.eq.s32.totalorder %s19, 1
    %p166 = por %p164, %p165
    %p167 = scmp.ne.s32.totalorder %s159, %s162
    %p168 = scmp.eq.s32.totalorder %s19, 0
    %p169 = por %p167, %p168
    %p170 = scmp.ne.s32.totalorder %s159, %s162
    %p171 = scmp.eq.s32.totalorder %s24, 1
    %p172 = por %p170, %p171
    %p173 = scmp.ne.s32.totalorder %s162, %s163
    %p174 = scmp.eq.s32.totalorder %s24, 0
    %p175 = por %p173, %p174
    %p176 = scmp.ne.s32.totalorder %s162, %s163
    %p177 = scmp.eq.s32.totalorder %s25, 1
    %p178 = por %p176, %p177
    %p180 = scmp.ne.s32.totalorder %s163, %s179
    %p181 = scmp.eq.s32.totalorder %s25, 0
    %p182 = por %p180, %p181
    %s183 = ssub.s32 %s19, %s26
    %p184 = scmp.eq.s32.totalorder %s183, 0
    %s186 = sadd.s32 %s185, 1
    %s187 = scalar_select %p184, %s185, %s186
    %p190 = pneg %p184
    %p191 = scmp.eq.s32.totalorder %s19, 1
    %p192 = por %p190, %p191
    %p193 = scmp.ne.s32.totalorder %s185, %s188
    %p194 = scmp.eq.s32.totalorder %s19, 0
    %p195 = por %p193, %p194
    %p196 = scmp.ne.s32.totalorder %s185, %s188
    %p197 = scmp.eq.s32.totalorder %s24, 1
    %p198 = por %p196, %p197
    %p199 = scmp.ne.s32.totalorder %s188, %s189
    %p200 = scmp.eq.s32.totalorder %s24, 0
    %p201 = por %p199, %p200
    %p202 = scmp.ne.s32.totalorder %s188, %s189
    %p203 = scmp.eq.s32.totalorder %s25, 1
    %p204 = por %p202, %p203
    %p206 = scmp.ne.s32.totalorder %s189, %s205
    %p207 = scmp.eq.s32.totalorder %s25, 0
    %p208 = por %p206, %p207
    %s210 = sadd.s32 %s209, 1
    %p213 = scmp.eq.s32.totalorder %s19, 1
    %p214 = scmp.ne.s32.totalorder %s209, %s211
    %p215 = scmp.eq.s32.totalorder %s19, 0
    %p216 = por %p214, %p215
    %p217 = scmp.ne.s32.totalorder %s209, %s211
    %p218 = scmp.eq.s32.totalorder %s24, 1
    %p219 = por %p217, %p218
    %p220 = scmp.ne.s32.totalorder %s211, %s212
    %p221 = scmp.eq.s32.totalorder %s24, 0
    %p222 = por %p220, %p221
    %p223 = scmp.ne.s32.totalorder %s211, %s212
    %p224 = scmp.eq.s32.totalorder %s25, 1
    %p225 = por %p223, %p224
    %p227 = scmp.ne.s32.totalorder %s212, %s226
    %p228 = scmp.eq.s32.totalorder %s25, 0
    %p229 = por %p227, %p228
    %s231 = sadd.s32 %s230, 1
    %p234 = scmp.eq.s32.totalorder %s19, 1
    %p235 = scmp.ne.s32.totalorder %s230, %s232
    %p236 = scmp.eq.s32.totalorder %s19, 0
    %p237 = por %p235, %p236
    %p238 = scmp.ne.s32.totalorder %s230, %s232
    %p239 = scmp.eq.s32.totalorder %s24, 1
    %p240 = por %p238, %p239
    %p241 = scmp.ne.s32.totalorder %s232, %s233
    %p242 = scmp.eq.s32.totalorder %s24, 0
    %p243 = por %p241, %p242
    %p244 = scmp.ne.s32.totalorder %s232, %s233
    %p245 = scmp.eq.s32.totalorder %s25, 1
    %p246 = por %p244, %p245
    %p248 = scmp.ne.s32.totalorder %s233, %s247
    %p249 = scmp.eq.s32.totalorder %s25, 0
    %p250 = por %p248, %p249
    %s252 = sadd.s32 %s251, 1
    %p255 = scmp.eq.s32.totalorder %s19, 1
    %p256 = scmp.ne.s32.totalorder %s251, %s253
    %p257 = scmp.eq.s32.totalorder %s19, 0
    %p258 = por %p256, %p257
    %p259 = scmp.ne.s32.totalorder %s251, %s253
    %p260 = scmp.eq.s32.totalorder %s24, 1
    %p261 = por %p259, %p260
    %p262 = scmp.ne.s32.totalorder %s253, %s254
    %p263 = scmp.eq.s32.totalorder %s24, 0
    %p264 = por %p262, %p263
    %p265 = scmp.ne.s32.totalorder %s253, %s254
    %p266 = scmp.eq.s32.totalorder %s25, 1
    %p267 = por %p265, %p266
    %p269 = scmp.ne.s32.totalorder %s254, %s268
    %p270 = scmp.eq.s32.totalorder %s25, 0
    %p271 = por %p269, %p270
    %s273 = sadd.s32 %s272, 1
    %p276 = scmp.eq.s32.totalorder %s19, 1
    %p277 = scmp.ne.s32.totalorder %s272, %s274
    %p278 = scmp.eq.s32.totalorder %s19, 0
    %p279 = por %p277, %p278
    %p280 = scmp.ne.s32.totalorder %s272, %s274
    %p281 = scmp.eq.s32.totalorder %s24, 1
    %p282 = por %p280, %p281
    %p283 = scmp.ne.s32.totalorder %s274, %s275
    %p284 = scmp.eq.s32.totalorder %s24, 0
    %p285 = por %p283, %p284
    %p286 = scmp.ne.s32.totalorder %s274, %s275
    %p287 = scmp.eq.s32.totalorder %s25, 1
    %p288 = por %p286, %p287
    %p290 = scmp.ne.s32.totalorder %s275, %s289
    %p291 = scmp.eq.s32.totalorder %s25, 0
    %p292 = por %p290, %p291
    %s294 = sadd.s32 %s293, 1
    %p297 = scmp.eq.s32.totalorder %s19, 1
    %p298 = scmp.ne.s32.totalorder %s293, %s295
    %p299 = scmp.eq.s32.totalorder %s19, 0
    %p300 = por %p298, %p299
    %p301 = scmp.ne.s32.totalorder %s293, %s295
    %p302 = scmp.eq.s32.totalorder %s24, 1
    %p303 = por %p301, %p302
    %p304 = scmp.ne.s32.totalorder %s295, %s296
    %p305 = scmp.eq.s32.totalorder %s24, 0
    %p306 = por %p304, %p305
    %p307 = scmp.ne.s32.totalorder %s295, %s296
    %p308 = scmp.eq.s32.totalorder %s25, 1
    %p309 = por %p307, %p308
    %p311 = scmp.ne.s32.totalorder %s296, %s310
    %p312 = scmp.eq.s32.totalorder %s25, 0
    %p313 = por %p311, %p312
    %s315 = sadd.s32 %s314, 1
    %p318 = scmp.eq.s32.totalorder %s19, 1
    %p319 = scmp.ne.s32.totalorder %s314, %s316
    %p320 = scmp.eq.s32.totalorder %s19, 0
    %p321 = por %p319, %p320
    %p322 = scmp.ne.s32.totalorder %s314, %s316
    %p323 = scmp.eq.s32.totalorder %s24, 1
    %p324 = por %p322, %p323
    %p325 = scmp.ne.s32.totalorder %s316, %s317
    %p326 = scmp.eq.s32.totalorder %s24, 0
    %p327 = por %p325, %p326
    %p328 = scmp.ne.s32.totalorder %s316, %s317
    %p329 = scmp.eq.s32.totalorder %s25, 1
    %p330 = por %p328, %p329
    %p332 = scmp.ne.s32.totalorder %s317, %s331
    %p333 = scmp.eq.s32.totalorder %s25, 0
    %p334 = por %p332, %p333
    %s336 = sadd.s32 %s335, 1
    %p339 = scmp.eq.s32.totalorder %s19, 1
    %p340 = scmp.ne.s32.totalorder %s335, %s337
    %p341 = scmp.eq.s32.totalorder %s19, 0
    %p342 = por %p340, %p341
    %p343 = scmp.ne.s32.totalorder %s335, %s337
    %p344 = scmp.eq.s32.totalorder %s24, 1
    %p345 = por %p343, %p344
    %p346 = scmp.ne.s32.totalorder %s337, %s338
    %p347 = scmp.eq.s32.totalorder %s24, 0
    %p348 = por %p346, %p347
    %p349 = scmp.ne.s32.totalorder %s337, %s338
    %p350 = scmp.eq.s32.totalorder %s25, 1
    %p351 = por %p349, %p350
    %p353 = scmp.ne.s32.totalorder %s338, %s352
    %p354 = scmp.eq.s32.totalorder %s25, 0
    %p355 = por %p353, %p354
    %p356 = scmp.le.s32.totalorder 1, %s19
    %p357 = scmp.lt.s32.totalorder %s19, 3
    %p358 = pnand %p356, %p357
    %p359 = pneg %p358
    // Predicated region
    $region9: #{gcnii_dense_model.1} parent=5 // pred_check
      _
    $region10: #{gcnii_dense_model.1} parent=5 // pred_check_branch
      %361 = sbr.rel (%p358) target = $region12
    $region11: #{gcnii_dense_model.1} parent=5 // pred_region
      %s362 = ssub.s32 %s19, 1
      // Predicated region
      $region13: #{gcnii_dense_model.1} parent=11 // pred_check
        %p363 = pneg %p222
      $region14: #{gcnii_dense_model.1} parent=11 // pred_check_branch
        %365 = sbr.rel (%p363) target = $region16
      $region15: #{gcnii_dense_model.1} parent=11 // pred_region
        _
      $region16: #{gcnii_dense_model.1} parent=11 // pred_fallthru
        _
      // Predicated region
      $region17: #{gcnii_dense_model.1} parent=11 // pred_check
        %p366 = pneg %p243
      $region18: #{gcnii_dense_model.1} parent=11 // pred_check_branch
        %368 = sbr.rel (%p366) target = $region20
      $region19: #{gcnii_dense_model.1} parent=11 // pred_region
        _
      $region20: #{gcnii_dense_model.1} parent=11 // pred_fallthru
        _
      // Predicated region
      $region21: #{gcnii_dense_model.1} parent=11 // pred_check
        %p369 = pneg %p264
      $region22: #{gcnii_dense_model.1} parent=11 // pred_check_branch
        %371 = sbr.rel (%p369) target = $region24
      $region23: #{gcnii_dense_model.1} parent=11 // pred_region
        _
      $region24: #{gcnii_dense_model.1} parent=11 // pred_fallthru
        _
      // Predicated region
      $region25: #{gcnii_dense_model.1} parent=11 // pred_check
        %p372 = pneg %p285
      $region26: #{gcnii_dense_model.1} parent=11 // pred_check_branch
        %374 = sbr.rel (%p372) target = $region28
      $region27: #{gcnii_dense_model.1} parent=11 // pred_region
        _
      $region28: #{gcnii_dense_model.1} parent=11 // pred_fallthru
        _
      // Predicated region
      $region29: #{gcnii_dense_model.1} parent=11 // pred_check
        %p375 = pneg %p306
      $region30: #{gcnii_dense_model.1} parent=11 // pred_check_branch
        %377 = sbr.rel (%p375) target = $region32
      $region31: #{gcnii_dense_model.1} parent=11 // pred_region
        _
      $region32: #{gcnii_dense_model.1} parent=11 // pred_fallthru
        _
      // Predicated region
      $region33: #{gcnii_dense_model.1} parent=11 // pred_check
        %p378 = pneg %p327
      $region34: #{gcnii_dense_model.1} parent=11 // pred_check_branch
        %380 = sbr.rel (%p378) target = $region36
      $region35: #{gcnii_dense_model.1} parent=11 // pred_region
        _
      $region36: #{gcnii_dense_model.1} parent=11 // pred_fallthru
        _
    $region12: #{gcnii_dense_model.1} parent=5 // pred_fallthru
      _
    %p381 = scmp.lt.s32.totalorder %s19, 2
    // Predicated region
    $region37: #{gcnii_dense_model.1} parent=5 // pred_check
      %p382 = pneg %p381
    $region38: #{gcnii_dense_model.1} parent=5 // pred_check_branch
      %384 = sbr.rel (%p382) target = $region40
    $region39: #{gcnii_dense_model.1} parent=5 // pred_region
      // Predicated region
      $region41: #{gcnii_dense_model.1} parent=39 // pred_check
        %p385 = pneg %p39
      $region42: #{gcnii_dense_model.1} parent=39 // pred_check_branch
        %387 = sbr.rel (%p385) target = $region44
      $region43: #{gcnii_dense_model.1} parent=39 // pred_region
        %p388 = scmp.lt.s32.totalorder %s19, 1
        %s389 = scalar_select %p388, %s19, 1
        %s390 = smul.addr %s389, 16
        %s391 = smul.addr %s390, 4
        %s392 = scalar_lea.vmem %s0, %s391
      $region44: #{gcnii_dense_model.1} parent=39 // pred_fallthru
        _
      // Predicated region
      $region45: #{gcnii_dense_model.1} parent=39 // pred_check
        %p393 = pneg %p65
      $region46: #{gcnii_dense_model.1} parent=39 // pred_check_branch
        %395 = sbr.rel (%p393) target = $region48
      $region47: #{gcnii_dense_model.1} parent=39 // pred_region
        %p396 = scmp.lt.s32.totalorder %s19, 1
        %s397 = scalar_select %p396, %s19, 1
        %s398 = smul.addr %s397, 16
        %s399 = smul.addr %s398, 4
        %s400 = scalar_lea.vmem %s1, %s399
      $region48: #{gcnii_dense_model.1} parent=39 // pred_fallthru
        _
      // Predicated region
      $region49: #{gcnii_dense_model.1} parent=39 // pred_check
        %p401 = pneg %p91
      $region50: #{gcnii_dense_model.1} parent=39 // pred_check_branch
        %403 = sbr.rel (%p401) target = $region52
      $region51: #{gcnii_dense_model.1} parent=39 // pred_region
        %p404 = scmp.lt.s32.totalorder %s19, 1
        %s405 = scalar_select %p404, %s19, 1
        %s406 = smul.addr %s405, 16
        %s407 = smul.addr %s406, 4
        %s408 = scalar_lea.vmem %s2, %s407
      $region52: #{gcnii_dense_model.1} parent=39 // pred_fallthru
        _
      // Predicated region
      $region53: #{gcnii_dense_model.1} parent=39 // pred_check
        %p409 = pneg %p117
      $region54: #{gcnii_dense_model.1} parent=39 // pred_check_branch
        %411 = sbr.rel (%p409) target = $region56
      $region55: #{gcnii_dense_model.1} parent=39 // pred_region
        %p412 = scmp.lt.s32.totalorder %s19, 1
        %s413 = scalar_select %p412, %s19, 1
        %s414 = scalar_lea.vmem %s3, %s413
      $region56: #{gcnii_dense_model.1} parent=39 // pred_fallthru
        _
      // Predicated region
      $region57: #{gcnii_dense_model.1} parent=39 // pred_check
        %p415 = pneg %p143
      $region58: #{gcnii_dense_model.1} parent=39 // pred_check_branch
        %417 = sbr.rel (%p415) target = $region60
      $region59: #{gcnii_dense_model.1} parent=39 // pred_region
        %p418 = scmp.lt.s32.totalorder %s19, 1
        %s419 = scalar_select %p418, %s19, 1
        %s420 = smul.addr %s419, 48
        %s421 = smul.addr %s420, 4
        %s422 = scalar_lea.vmem %s4, %s421
      $region60: #{gcnii_dense_model.1} parent=39 // pred_fallthru
        _
      // Predicated region
      $region61: #{gcnii_dense_model.1} parent=39 // pred_check
        %p423 = pneg %p169
      $region62: #{gcnii_dense_model.1} parent=39 // pred_check_branch
        %425 = sbr.rel (%p423) target = $region64
      $region63: #{gcnii_dense_model.1} parent=39 // pred_region
        %p426 = scmp.lt.s32.totalorder %s19, 1
        %s427 = scalar_select %p426, %s19, 1
        %s428 = smul.addr %s427, 16
        %s429 = smul.addr %s428, 4
        %s430 = scalar_lea.vmem %s5, %s429
      $region64: #{gcnii_dense_model.1} parent=39 // pred_fallthru
        _
      // Predicated region
      $region65: #{gcnii_dense_model.1} parent=39 // pred_check
        %p431 = pneg %p195
      $region66: #{gcnii_dense_model.1} parent=39 // pred_check_branch
        %433 = sbr.rel (%p431) target = $region68
      $region67: #{gcnii_dense_model.1} parent=39 // pred_region
        %p434 = scmp.lt.s32.totalorder %s19, 1
        %s435 = scalar_select %p434, %s19, 1
        %s436 = scalar_lea.vmem %s6, %s435
      $region68: #{gcnii_dense_model.1} parent=39 // pred_fallthru
        _
    $region40: #{gcnii_dense_model.1} parent=5 // pred_fallthru
      _
    %p437 = scmp.le.s32.totalorder 1, %s19
    %p438 = scmp.lt.s32.totalorder %s19, 3
    %p439 = pnand %p437, %p438
    %p440 = pneg %p439
    // Predicated region
    $region69: #{gcnii_dense_model.1} parent=5 // pred_check
      _
    $region70: #{gcnii_dense_model.1} parent=5 // pred_check_branch
      %442 = sbr.rel (%p439) target = $region72
    $region71: #{gcnii_dense_model.1} parent=5 // pred_region
      %s443 = ssub.s32 %s19, 1
      %p444 = scmp.lt.s32.totalorder %s24, 1
      %s445 = scalar_select %p444, %s24, 1
      %s446 = smul.addr %s445, 16
      %s447 = smul.addr %s446, 4
      %s448 = scalar_lea.vmem %s0, %s447
      %p449 = pneg %p45
      %p450 = pneg %p42
      %p451 = scmp.lt.s32.totalorder %s24, 1
      %s452 = scalar_select %p451, %s24, 1
      %s453 = smul.addr %s452, 16
      %s454 = smul.addr %s453, 4
      %s455 = scalar_lea.vmem %s1, %s454
      %p456 = pneg %p71
      %p457 = pneg %p68
      %p458 = scmp.lt.s32.totalorder %s24, 1
      %s459 = scalar_select %p458, %s24, 1
      %s460 = smul.addr %s459, 16
      %s461 = smul.addr %s460, 4
      %s462 = scalar_lea.vmem %s2, %s461
      %p463 = pneg %p97
      %p464 = pneg %p94
      %p465 = scmp.lt.s32.totalorder %s24, 1
      %s466 = scalar_select %p465, %s24, 1
      %s467 = scalar_lea.vmem %s3, %s466
      %p468 = pneg %p123
      %p469 = pneg %p120
      %p470 = scmp.lt.s32.totalorder %s24, 1
      %s471 = scalar_select %p470, %s24, 1
      %s472 = smul.addr %s471, 48
      %s473 = smul.addr %s472, 4
      %s474 = scalar_lea.vmem %s4, %s473
      %p475 = pneg %p149
      %p476 = pneg %p146
      %p477 = scmp.lt.s32.totalorder %s24, 1
      %s478 = scalar_select %p477, %s24, 1
      %s479 = smul.addr %s478, 16
      %s480 = smul.addr %s479, 4
      %s481 = scalar_lea.vmem %s5, %s480
      %p482 = pneg %p175
      %p483 = pneg %p172
      %p484 = scmp.lt.s32.totalorder %s24, 1
      %s485 = scalar_select %p484, %s24, 1
      %s486 = scalar_lea.vmem %s6, %s485
      %p487 = pneg %p201
      %p488 = pneg %p198
      %p489 = pneg %p222
      %p490 = pneg %p219
      %p491 = pneg %p243
      %p492 = pneg %p240
      %p493 = pneg %p264
      %p494 = pneg %p261
      %p495 = pneg %p285
      %p496 = pneg %p282
      %p497 = pneg %p306
      %p498 = pneg %p303
      %p499 = pneg %p327
      %p500 = pneg %p324
      %p501 = pneg %p348
      %p502 = pneg %p345
      %p503 = scmp.lt.s32.totalorder %s24, 1
      %s504 = scalar_select %p503, %s24, 1
      %s505 = smul.addr %s504, 16
      %s506 = smul.addr %s505, 4
      %s507 = scalar_lea.vmem %s0, %s506
      %p508 = scmp.lt.s32.totalorder %s24, 1
      %s509 = scalar_select %p508, %s24, 1
      %s510 = smul.addr %s509, 16
      %s511 = smul.addr %s510, 4
      %s512 = scalar_lea.vmem %s1, %s511
      %p513 = scmp.lt.s32.totalorder %s24, 1
      %s514 = scalar_select %p513, %s24, 1
      %s515 = smul.addr %s514, 16
      %s516 = smul.addr %s515, 4
      %s517 = scalar_lea.vmem %s2, %s516
      %p518 = scmp.lt.s32.totalorder %s24, 1
      %s519 = scalar_select %p518, %s24, 1
      %s520 = scalar_lea.vmem %s3, %s519
      %p521 = scmp.lt.s32.totalorder %s24, 1
      %s522 = scalar_select %p521, %s24, 1
      %s523 = smul.addr %s522, 48
      %s524 = smul.addr %s523, 4
      %s525 = scalar_lea.vmem %s4, %s524
      %p526 = scmp.lt.s32.totalorder %s24, 1
      %s527 = scalar_select %p526, %s24, 1
      %s528 = smul.addr %s527, 16
      %s529 = smul.addr %s528, 4
      %s530 = scalar_lea.vmem %s5, %s529
      %p531 = scmp.lt.s32.totalorder %s24, 1
      %s532 = scalar_select %p531, %s24, 1
      %s533 = scalar_lea.vmem %s6, %s532
      %v535 = vld [vmem:[%s507] sm:$0xf]
      %v536 = vld [vmem:[%s507 + $0x4] sm:$0xf]
      %v537 = vld [vmem:[%s507 + $0x8] sm:$0xf]
      %v538 = vld [vmem:[%s507 + $0xc] sm:$0xf]
      %v539 = vld [vmem:[%s507 + $0x10] sm:$0xf]
      %v540 = vld [vmem:[%s507 + $0x14] sm:$0xf]
      %v541 = vld [vmem:[%s507 + $0x18] sm:$0xf]
      %v542 = vld [vmem:[%s507 + $0x1c] sm:$0xf]
      %v543 = vld [vmem:[%s507 + $0x20] sm:$0xf]
      %v544 = vld [vmem:[%s507 + $0x24] sm:$0xf]
      %v545 = vld [vmem:[%s507 + $0x28] sm:$0xf]
      %v546 = vld [vmem:[%s507 + $0x2c] sm:$0xf]
      %v547 = vld [vmem:[%s507 + $0x30] sm:$0xf]
      %v548 = vld [vmem:[%s507 + $0x34] sm:$0xf]
      %v549 = vld [vmem:[%s507 + $0x38] sm:$0xf]
      %v550 = vld [vmem:[%s507 + $0x3c] sm:$0xf]
      %v551 = vld [vmem:[%s512] sm:$0xf]
      %v552 = vld [vmem:[%s512 + $0x4] sm:$0xf]
      %v553 = vld [vmem:[%s512 + $0x8] sm:$0xf]
      %v554 = vld [vmem:[%s512 + $0xc] sm:$0xf]
      %v555 = vld [vmem:[%s512 + $0x10] sm:$0xf]
      %v556 = vld [vmem:[%s512 + $0x14] sm:$0xf]
      %v557 = vld [vmem:[%s512 + $0x18] sm:$0xf]
      %v558 = vld [vmem:[%s512 + $0x1c] sm:$0xf]
      %v559 = vld [vmem:[%s512 + $0x20] sm:$0xf]
      %v560 = vld [vmem:[%s512 + $0x24] sm:$0xf]
      %v561 = vld [vmem:[%s512 + $0x28] sm:$0xf]
      %v562 = vld [vmem:[%s512 + $0x2c] sm:$0xf]
      %v563 = vld [vmem:[%s512 + $0x30] sm:$0xf]
      %v564 = vld [vmem:[%s512 + $0x34] sm:$0xf]
      %v565 = vld [vmem:[%s512 + $0x38] sm:$0xf]
      %v566 = vld [vmem:[%s512 + $0x3c] sm:$0xf]
      %v567 = vld [vmem:[%s517] sm:$0xf]
      %v568 = vld [vmem:[%s517 + $0x4] sm:$0xf]
      %v569 = vld [vmem:[%s517 + $0x8] sm:$0xf]
      %v570 = vld [vmem:[%s517 + $0xc] sm:$0xf]
      %v571 = vld [vmem:[%s517 + $0x10] sm:$0xf]
      %v572 = vld [vmem:[%s517 + $0x14] sm:$0xf]
      %v573 = vld [vmem:[%s517 + $0x18] sm:$0xf]
      %v574 = vld [vmem:[%s517 + $0x1c] sm:$0xf]
      %v575 = vld [vmem:[%s517 + $0x20] sm:$0xf]
      %v576 = vld [vmem:[%s517 + $0x24] sm:$0xf]
      %v577 = vld [vmem:[%s517 + $0x28] sm:$0xf]
      %v578 = vld [vmem:[%s517 + $0x2c] sm:$0xf]
      %v579 = vld [vmem:[%s517 + $0x30] sm:$0xf]
      %v580 = vld [vmem:[%s517 + $0x34] sm:$0xf]
      %v581 = vld [vmem:[%s517 + $0x38] sm:$0xf]
      %v582 = vld [vmem:[%s517 + $0x3c] sm:$0xf]
      %v583 = vld [vmem:[%s520] sm:$0x1]
      %v585 = vlaneseq
      %v586 = vshrl.u32 %v585, 7
      %v587 = vsub.s32 0, %v586
      %v588 = vrot.slane %v583, %v587
      %v606 = vunpack.c.l.b16 %v551
      %v607 = vunpack.c.l.b16 %v552
      %v608 = vunpack.c.l.b16 %v553
      %v609 = vunpack.c.l.b16 %v554
      %v610 = vunpack.c.l.b16 %v555
      %v611 = vunpack.c.l.b16 %v556
      %v612 = vunpack.c.l.b16 %v557
      %v613 = vunpack.c.l.b16 %v558
      %v614 = vunpack.c.l.b16 %v559
      %v615 = vunpack.c.l.b16 %v560
      %v616 = vunpack.c.l.b16 %v561
      %v617 = vunpack.c.l.b16 %v562
      %v618 = vunpack.c.l.b16 %v563
      %v619 = vunpack.c.l.b16 %v564
      %v620 = vunpack.c.l.b16 %v565
      %v621 = vunpack.c.l.b16 %v566
      %v622 = vpack.c.b16 %v607, %v606
      %v623 = vpack.c.b16 %v609, %v608
      %v624 = vpack.c.b16 %v611, %v610
      %v625 = vpack.c.b16 %v613, %v612
      %v626 = vpack.c.b16 %v615, %v614
      %v627 = vpack.c.b16 %v617, %v616
      %v628 = vpack.c.b16 %v619, %v618
      %v629 = vpack.c.b16 %v621, %v620
      %v654 = vunpack.c.l.b16 %v567
      %v655 = vunpack.c.l.b16 %v568
      %v656 = vunpack.c.l.b16 %v569
      %v657 = vunpack.c.l.b16 %v570
      %v658 = vunpack.c.l.b16 %v571
      %v659 = vunpack.c.l.b16 %v572
      %v660 = vunpack.c.l.b16 %v573
      %v661 = vunpack.c.l.b16 %v574
      %v662 = vunpack.c.l.b16 %v575
      %v663 = vunpack.c.l.b16 %v576
      %v664 = vunpack.c.l.b16 %v577
      %v665 = vunpack.c.l.b16 %v578
      %v666 = vunpack.c.l.b16 %v579
      %v667 = vunpack.c.l.b16 %v580
      %v668 = vunpack.c.l.b16 %v581
      %v669 = vunpack.c.l.b16 %v582
      %v670 = vpack.c.b16 %v655, %v654
      %v671 = vpack.c.b16 %v657, %v656
      %v672 = vpack.c.b16 %v659, %v658
      %v673 = vpack.c.b16 %v661, %v660
      %v674 = vpack.c.b16 %v663, %v662
      %v675 = vpack.c.b16 %v665, %v664
      %v676 = vpack.c.b16 %v667, %v666
      %v677 = vpack.c.b16 %v669, %v668
      %686 = vmatprep.subr.bf16.mxu0 0
      %687 = vmatpush1.bf16.msra.mxu0 %v670
      %688 = vmatprep.subr.bf16.mxu0 0
      %689 = vmatpush1.bf16.msra.mxu0 %v671
      %690 = vmatprep.subr.bf16.mxu0 0
      %691 = vmatpush1.bf16.msra.mxu0 %v672
      %692 = vmatprep.subr.bf16.mxu0 0
      %693 = vmatpush1.bf16.msra.mxu0 %v673
      %694 = vmatprep.subr.bf16.mxu0 0
      %695 = vmatpush1.bf16.msra.mxu0 %v674
      %696 = vmatprep.subr.bf16.mxu0 0
      %697 = vmatpush1.bf16.msra.mxu0 %v675
      %698 = vmatprep.subr.bf16.mxu0 0
      %699 = vmatpush1.bf16.msra.mxu0 %v676
      %700 = vmatprep.subr.bf16.mxu0 0
      %701 = vmatpush1.bf16.msra.mxu0 %v677
      %702 = vmatprep.subr.bf16.mxu0 0
      %703 = vmatpush1.bf16.msra.mxu0 0
      %704 = vmatprep.subr.bf16.mxu0 0
      %705 = vmatpush1.bf16.msra.mxu0 0
      %706 = vmatprep.subr.bf16.mxu0 0
      %707 = vmatpush1.bf16.msra.mxu0 0
      %708 = vmatprep.subr.bf16.mxu0 0
      %709 = vmatpush1.bf16.msra.mxu0 0
      %710 = vmatprep.subr.bf16.mxu0 0
      %711 = vmatpush1.bf16.msra.mxu0 0
      %712 = vmatprep.subr.bf16.mxu0 0
      %713 = vmatpush1.bf16.msra.mxu0 0
      %714 = vmatprep.subr.bf16.mxu0 0
      %715 = vmatpush1.bf16.msra.mxu0 0
      %716 = vmatprep.subr.bf16.mxu0 0
      %717 = vmatpush1.bf16.msra.mxu0 0
      %718 = vmatprep.mubr.bf16.mxu0 0
      %719 = vmatmul.mubr.bf16.gmra.mrb[0].mxu0 %v622
      %v720 = vpop.f32.mrb[0].mxu0
      %v721 = vadd.f32 %v588, %v720
      %v722 = vpop.f32.mrb[0].mxu0
      %v723 = vpop.f32.mrb[0].mxu0
      %v724 = vadd.f32 %v588, %v723
      %v725 = vpop.f32.mrb[0].mxu0
      %726 = vmatprep.mubr.bf16.mxu0 0
      %727 = vmatmul.mubr.bf16.gmra.mrb[0].mxu0 %v623
      %v728 = vpop.f32.mrb[0].mxu0
      %v729 = vadd.f32 %v588, %v728
      %v730 = vpop.f32.mrb[0].mxu0
      %v731 = vpop.f32.mrb[0].mxu0
      %v732 = vadd.f32 %v588, %v731
      %v733 = vpop.f32.mrb[0].mxu0
      %734 = vmatprep.mubr.bf16.mxu0 0
      %735 = vmatmul.mubr.bf16.gmra.mrb[0].mxu0 %v624
      %v736 = vpop.f32.mrb[0].mxu0
      %v737 = vadd.f32 %v588, %v736
      %v738 = vpop.f32.mrb[0].mxu0
      %v739 = vpop.f32.mrb[0].mxu0
      %v740 = vadd.f32 %v588, %v739
      %v741 = vpop.f32.mrb[0].mxu0
      %742 = vmatprep.mubr.bf16.mxu0 0
      %743 = vmatmul.mubr.bf16.gmra.mrb[0].mxu0 %v625
      %v744 = vpop.f32.mrb[0].mxu0
      %v745 = vadd.f32 %v588, %v744
      %v746 = vpop.f32.mrb[0].mxu0
      %v747 = vpop.f32.mrb[0].mxu0
      %v748 = vadd.f32 %v588, %v747
      %v749 = vpop.f32.mrb[0].mxu0
      %750 = vmatprep.mubr.bf16.mxu0 0
      %751 = vmatmul.mubr.bf16.gmra.mrb[0].mxu0 %v626
      %v752 = vpop.f32.mrb[0].mxu0
      %v753 = vadd.f32 %v588, %v752
      %v754 = vpop.f32.mrb[0].mxu0
      %v755 = vpop.f32.mrb[0].mxu0
      %v756 = vadd.f32 %v588, %v755
      %v757 = vpop.f32.mrb[0].mxu0
      %758 = vmatprep.mubr.bf16.mxu0 0
      %759 = vmatmul.mubr.bf16.gmra.mrb[0].mxu0 %v627
      %v760 = vpop.f32.mrb[0].mxu0
      %v761 = vadd.f32 %v588, %v760
      %v762 = vpop.f32.mrb[0].mxu0
      %v763 = vpop.f32.mrb[0].mxu0
      %v764 = vadd.f32 %v588, %v763
      %v765 = vpop.f32.mrb[0].mxu0
      %766 = vmatprep.mubr.bf16.mxu0 0
      %767 = vmatmul.mubr.bf16.gmra.mrb[0].mxu0 %v628
      %v768 = vpop.f32.mrb[0].mxu0
      %v769 = vadd.f32 %v588, %v768
      %v770 = vpop.f32.mrb[0].mxu0
      %v771 = vpop.f32.mrb[0].mxu0
      %v772 = vadd.f32 %v588, %v771
      %v773 = vpop.f32.mrb[0].mxu0
      %774 = vmatprep.mubr.bf16.mxu0 0
      %775 = vmatmul.mubr.bf16.gmra.mrb[0].mxu0 %v629
      %v776 = vpop.f32.mrb[0].mxu0
      %v777 = vadd.f32 %v588, %v776
      %v778 = vpop.f32.mrb[0].mxu0
      %v779 = vpop.f32.mrb[0].mxu0
      %v780 = vadd.f32 %v588, %v779
      %v781 = vpop.f32.mrb[0].mxu0
      %782 = vdwg.mxu0
      %v783 = vmax.f32 %v721, 0.0
      %v784 = vmax.f32 %v724, 0.0
      %v785 = vmax.f32 %v729, 0.0
      %v786 = vmax.f32 %v732, 0.0
      %v787 = vmax.f32 %v737, 0.0
      %v788 = vmax.f32 %v740, 0.0
      %v789 = vmax.f32 %v745, 0.0
      %v790 = vmax.f32 %v748, 0.0
      %v791 = vmax.f32 %v753, 0.0
      %v792 = vmax.f32 %v756, 0.0
      %v793 = vmax.f32 %v761, 0.0
      %v794 = vmax.f32 %v764, 0.0
      %v795 = vmax.f32 %v769, 0.0
      %v796 = vmax.f32 %v772, 0.0
      %v797 = vmax.f32 %v777, 0.0
      %v798 = vmax.f32 %v780, 0.0
      %v799 = vmul.f32 %v783, 0.2
      %v800 = vmul.f32 %v784, 0.2
      %v801 = vmul.f32 %v785, 0.2
      %v802 = vmul.f32 %v786, 0.2
      %v803 = vmul.f32 %v787, 0.2
      %v804 = vmul.f32 %v788, 0.2
      %v805 = vmul.f32 %v789, 0.2
      %v806 = vmul.f32 %v790, 0.2
      %v807 = vmul.f32 %v791, 0.2
      %v808 = vmul.f32 %v792, 0.2
      %v809 = vmul.f32 %v793, 0.2
      %v810 = vmul.f32 %v794, 0.2
      %v811 = vmul.f32 %v795, 0.2
      %v812 = vmul.f32 %v796, 0.2
      %v813 = vmul.f32 %v797, 0.2
      %v814 = vmul.f32 %v798, 0.2
      %v815 = vpack.c.bf16 %v784, %v783
      %v816 = vpack.c.bf16 %v786, %v785
      %v817 = vpack.c.bf16 %v788, %v787
      %v818 = vpack.c.bf16 %v790, %v789
      %v819 = vpack.c.bf16 %v792, %v791
      %v820 = vpack.c.bf16 %v794, %v793
      %v821 = vpack.c.bf16 %v796, %v795
      %v822 = vpack.c.bf16 %v798, %v797
      %v839 = vunpack.c.l.b16 %v535
      %v840 = vunpack.c.l.b16 %v536
      %v841 = vunpack.c.l.b16 %v537
      %v842 = vunpack.c.l.b16 %v538
      %v843 = vunpack.c.l.b16 %v539
      %v844 = vunpack.c.l.b16 %v540
      %v845 = vunpack.c.l.b16 %v541
      %v846 = vunpack.c.l.b16 %v542
      %v847 = vunpack.c.l.b16 %v543
      %v848 = vunpack.c.l.b16 %v544
      %v849 = vunpack.c.l.b16 %v545
      %v850 = vunpack.c.l.b16 %v546
      %v851 = vunpack.c.l.b16 %v547
      %v852 = vunpack.c.l.b16 %v548
      %v853 = vunpack.c.l.b16 %v549
      %v854 = vunpack.c.l.b16 %v550
      %v855 = vpack.c.b16 %v840, %v839
      %v856 = vpack.c.b16 %v842, %v841
      %v857 = vpack.c.b16 %v844, %v843
      %v858 = vpack.c.b16 %v846, %v845
      %v859 = vpack.c.b16 %v848, %v847
      %v860 = vpack.c.b16 %v850, %v849
      %v861 = vpack.c.b16 %v852, %v851
      %v862 = vpack.c.b16 %v854, %v853
      %871 = vmatprep.subr.bf16.mxu0 0
      %872 = vmatpush1.bf16.msra.mxu0 %v815
      %873 = vmatprep.subr.bf16.mxu0 0
      %874 = vmatpush1.bf16.msra.mxu0 %v816
      %875 = vmatprep.subr.bf16.mxu0 0
      %876 = vmatpush1.bf16.msra.mxu0 %v817
      %877 = vmatprep.subr.bf16.mxu0 0
      %878 = vmatpush1.bf16.msra.mxu0 %v818
      %879 = vmatprep.subr.bf16.mxu0 0
      %880 = vmatpush1.bf16.msra.mxu0 %v819
      %881 = vmatprep.subr.bf16.mxu0 0
      %882 = vmatpush1.bf16.msra.mxu0 %v820
      %883 = vmatprep.subr.bf16.mxu0 0
      %884 = vmatpush1.bf16.msra.mxu0 %v821
      %885 = vmatprep.subr.bf16.mxu0 0
      %886 = vmatpush1.bf16.msra.mxu0 %v822
      %887 = vmatprep.subr.bf16.mxu0 0
      %888 = vmatpush1.bf16.msra.mxu0 0
      %889 = vmatprep.subr.bf16.mxu0 0
      %890 = vmatpush1.bf16.msra.mxu0 0
      %891 = vmatprep.subr.bf16.mxu0 0
      %892 = vmatpush1.bf16.msra.mxu0 0
      %893 = vmatprep.subr.bf16.mxu0 0
      %894 = vmatpush1.bf16.msra.mxu0 0
      %895 = vmatprep.subr.bf16.mxu0 0
      %896 = vmatpush1.bf16.msra.mxu0 0
      %897 = vmatprep.subr.bf16.mxu0 0
      %898 = vmatpush1.bf16.msra.mxu0 0
      %899 = vmatprep.subr.bf16.mxu0 0
      %900 = vmatpush1.bf16.msra.mxu0 0
      %901 = vmatprep.subr.bf16.mxu0 0
      %902 = vmatpush1.bf16.msra.mxu0 0
      %903 = vmatprep.mubr.bf16.mxu0 0
      %904 = vmatmul.mubr.bf16.gmra.mrb[0].mxu0 %v855
      %v905 = vpop.f32.mrb[0].mxu0
      %v906 = vadd.f32 %v799, %v905
      %v907 = vpop.f32.mrb[0].mxu0
      %v908 = vpop.f32.mrb[0].mxu0
      %v909 = vadd.f32 %v800, %v908
      %v910 = vpop.f32.mrb[0].mxu0
      %911 = vmatprep.mubr.bf16.mxu0 0
      %912 = vmatmul.mubr.bf16.gmra.mrb[0].mxu0 %v856
      %v913 = vpop.f32.mrb[0].mxu0
      %v914 = vadd.f32 %v801, %v913
      %v915 = vpop.f32.mrb[0].mxu0
      %v916 = vpop.f32.mrb[0].mxu0
      %v917 = vadd.f32 %v802, %v916
      %v918 = vpop.f32.mrb[0].mxu0
      %919 = vmatprep.mubr.bf16.mxu0 0
      %920 = vmatmul.mubr.bf16.gmra.mrb[0].mxu0 %v857
      %v921 = vpop.f32.mrb[0].mxu0
      %v922 = vadd.f32 %v803, %v921
      %v923 = vpop.f32.mrb[0].mxu0
      %v924 = vpop.f32.mrb[0].mxu0
      %v925 = vadd.f32 %v804, %v924
      %v926 = vpop.f32.mrb[0].mxu0
      %927 = vmatprep.mubr.bf16.mxu0 0
      %928 = vmatmul.mubr.bf16.gmra.mrb[0].mxu0 %v858
      %v929 = vpop.f32.mrb[0].mxu0
      %v930 = vadd.f32 %v805, %v929
      %v931 = vpop.f32.mrb[0].mxu0
      %v932 = vpop.f32.mrb[0].mxu0
      %v933 = vadd.f32 %v806, %v932
      %v934 = vpop.f32.mrb[0].mxu0
      %935 = vmatprep.mubr.bf16.mxu0 0
      %936 = vmatmul.mubr.bf16.gmra.mrb[0].mxu0 %v859
      %v937 = vpop.f32.mrb[0].mxu0
      %v938 = vadd.f32 %v807, %v937
      %v939 = vpop.f32.mrb[0].mxu0
      %v940 = vpop.f32.mrb[0].mxu0
      %v941 = vadd.f32 %v808, %v940
      %v942 = vpop.f32.mrb[0].mxu0
      %943 = vmatprep.mubr.bf16.mxu0 0
      %944 = vmatmul.mubr.bf16.gmra.mrb[0].mxu0 %v860
      %v945 = vpop.f32.mrb[0].mxu0
      %v946 = vadd.f32 %v809, %v945
      %v947 = vpop.f32.mrb[0].mxu0
      %v948 = vpop.f32.mrb[0].mxu0
      %v949 = vadd.f32 %v810, %v948
      %v950 = vpop.f32.mrb[0].mxu0
      %951 = vmatprep.mubr.bf16.mxu0 0
      %952 = vmatmul.mubr.bf16.gmra.mrb[0].mxu0 %v861
      %v953 = vpop.f32.mrb[0].mxu0
      %v954 = vadd.f32 %v811, %v953
      %v955 = vpop.f32.mrb[0].mxu0
      %v956 = vpop.f32.mrb[0].mxu0
      %v957 = vadd.f32 %v812, %v956
      %v958 = vpop.f32.mrb[0].mxu0
      %959 = vmatprep.mubr.bf16.mxu0 0
      %960 = vmatmul.mubr.bf16.gmra.mrb[0].mxu0 %v862
      %v961 = vpop.f32.mrb[0].mxu0
      %v962 = vadd.f32 %v813, %v961
      %v963 = vpop.f32.mrb[0].mxu0
      %v964 = vpop.f32.mrb[0].mxu0
      %v965 = vadd.f32 %v814, %v964
      %v966 = vpop.f32.mrb[0].mxu0
      %967 = vdwg.mxu0
      %v968 = vpack.c.bf16 %v909, %v906
      %v969 = vpack.c.bf16 %v917, %v914
      %v970 = vpack.c.bf16 %v925, %v922
      %v971 = vpack.c.bf16 %v933, %v930
      %v972 = vpack.c.bf16 %v941, %v938
      %v973 = vpack.c.bf16 %v949, %v946
      %v974 = vpack.c.bf16 %v957, %v954
      %v975 = vpack.c.bf16 %v965, %v962
      %v976 = vld [vmem:[%s525] sm:$0xf]
      %v977 = vld [vmem:[%s525 + $0x4] sm:$0xf]
      %v978 = vld [vmem:[%s525 + $0x8] sm:$0xf]
      %v979 = vld [vmem:[%s525 + $0xc] sm:$0xf]
      %v980 = vld [vmem:[%s525 + $0x10] sm:$0xf]
      %v981 = vld [vmem:[%s525 + $0x14] sm:$0xf]
      %v982 = vld [vmem:[%s525 + $0x18] sm:$0xf]
      %v983 = vld [vmem:[%s525 + $0x1c] sm:$0xf]
      %v984 = vld [vmem:[%s525 + $0x20] sm:$0xf]
      %v985 = vld [vmem:[%s525 + $0x24] sm:$0xf]
      %v986 = vld [vmem:[%s525 + $0x28] sm:$0xf]
      %v987 = vld [vmem:[%s525 + $0x2c] sm:$0xf]
      %v988 = vld [vmem:[%s525 + $0x30] sm:$0xf]
      %v989 = vld [vmem:[%s525 + $0x34] sm:$0xf]
      %v990 = vld [vmem:[%s525 + $0x38] sm:$0xf]
      %v991 = vld [vmem:[%s525 + $0x3c] sm:$0xf]
      %v1008 = vunpack.c.l.b16 %v976
      %v1009 = vunpack.c.l.b16 %v977
      %v1010 = vunpack.c.l.b16 %v978
      %v1011 = vunpack.c.l.b16 %v979
      %v1012 = vunpack.c.l.b16 %v980
      %v1013 = vunpack.c.l.b16 %v981
      %v1014 = vunpack.c.l.b16 %v982
      %v1015 = vunpack.c.l.b16 %v983
      %v1016 = vunpack.c.l.b16 %v984
      %v1017 = vunpack.c.l.b16 %v985
      %v1018 = vunpack.c.l.b16 %v986
      %v1019 = vunpack.c.l.b16 %v987
      %v1020 = vunpack.c.l.b16 %v988
      %v1021 = vunpack.c.l.b16 %v989
      %v1022 = vunpack.c.l.b16 %v990
      %v1023 = vunpack.c.l.b16 %v991
      %v1024 = vpack.c.b16 %v1009, %v1008
      %v1025 = vpack.c.b16 %v1011, %v1010
      %v1026 = vpack.c.b16 %v1013, %v1012
      %v1027 = vpack.c.b16 %v1015, %v1014
      %v1028 = vpack.c.b16 %v1017, %v1016
      %v1029 = vpack.c.b16 %v1019, %v1018
      %v1030 = vpack.c.b16 %v1021, %v1020
      %v1031 = vpack.c.b16 %v1023, %v1022
      %1040 = vmatprep.subr.bf16.mxu0 0
      %1041 = vmatpush1.bf16.msra.mxu0 %v1024
      %1042 = vmatprep.subr.bf16.mxu0 0
      %1043 = vmatpush1.bf16.msra.mxu0 %v1025
      %1044 = vmatprep.subr.bf16.mxu0 0
      %1045 = vmatpush1.bf16.msra.mxu0 %v1026
      %1046 = vmatprep.subr.bf16.mxu0 0
      %1047 = vmatpush1.bf16.msra.mxu0 %v1027
      %1048 = vmatprep.subr.bf16.mxu0 0
      %1049 = vmatpush1.bf16.msra.mxu0 %v1028
      %1050 = vmatprep.subr.bf16.mxu0 0
      %1051 = vmatpush1.bf16.msra.mxu0 %v1029
      %1052 = vmatprep.subr.bf16.mxu0 0
      %1053 = vmatpush1.bf16.msra.mxu0 %v1030
      %1054 = vmatprep.subr.bf16.mxu0 0
      %1055 = vmatpush1.bf16.msra.mxu0 %v1031
      %1056 = vmatprep.subr.bf16.mxu0 0
      %1057 = vmatpush1.bf16.msra.mxu0 0
      %1058 = vmatprep.subr.bf16.mxu0 0
      %1059 = vmatpush1.bf16.msra.mxu0 0
      %1060 = vmatprep.subr.bf16.mxu0 0
      %1061 = vmatpush1.bf16.msra.mxu0 0
      %1062 = vmatprep.subr.bf16.mxu0 0
      %1063 = vmatpush1.bf16.msra.mxu0 0
      %1064 = vmatprep.subr.bf16.mxu0 0
      %1065 = vmatpush1.bf16.msra.mxu0 0
      %1066 = vmatprep.subr.bf16.mxu0 0
      %1067 = vmatpush1.bf16.msra.mxu0 0
      %1068 = vmatprep.subr.bf16.mxu0 0
      %1069 = vmatpush1.bf16.msra.mxu0 0
      %1070 = vmatprep.subr.bf16.mxu0 0
      %1071 = vmatpush1.bf16.msra.mxu0 0
      %1072 = vmatprep.mubr.bf16.mxu0 0
      %1073 = vmatmul.mubr.bf16.gmra.mrb[0].mxu0 %v968
      %v1074 = vpop.f32.mrb[0].mxu0
      %v1075 = vadd.f32 0.0, %v1074
      %v1076 = vpop.f32.mrb[0].mxu0
      %v1077 = vpop.f32.mrb[0].mxu0
      %v1078 = vadd.f32 0.0, %v1077
      %v1079 = vpop.f32.mrb[0].mxu0
      %1080 = vmatprep.mubr.bf16.mxu0 0
      %1081 = vmatmul.mubr.bf16.gmra.mrb[0].mxu0 %v969
      %v1082 = vpop.f32.mrb[0].mxu0
      %v1083 = vadd.f32 0.0, %v1082
      %v1084 = vpop.f32.mrb[0].mxu0
      %v1085 = vpop.f32.mrb[0].mxu0
      %v1086 = vadd.f32 0.0, %v1085
      %v1087 = vpop.f32.mrb[0].mxu0
      %1088 = vmatprep.mubr.bf16.mxu0 0
      %1089 = vmatmul.mubr.bf16.gmra.mrb[0].mxu0 %v970
      %v1090 = vpop.f32.mrb[0].mxu0
      %v1091 = vadd.f32 0.0, %v1090
      %v1092 = vpop.f32.mrb[0].mxu0
      %v1093 = vpop.f32.mrb[0].mxu0
      %v1094 = vadd.f32 0.0, %v1093
      %v1095 = vpop.f32.mrb[0].mxu0
      %1096 = vmatprep.mubr.bf16.mxu0 0
      %1097 = vmatmul.mubr.bf16.gmra.mrb[0].mxu0 %v971
      %v1098 = vpop.f32.mrb[0].mxu0
      %v1099 = vadd.f32 0.0, %v1098
      %v1100 = vpop.f32.mrb[0].mxu0
      %v1101 = vpop.f32.mrb[0].mxu0
      %v1102 = vadd.f32 0.0, %v1101
      %v1103 = vpop.f32.mrb[0].mxu0
      %1104 = vmatprep.mubr.bf16.mxu0 0
      %1105 = vmatmul.mubr.bf16.gmra.mrb[0].mxu0 %v972
      %v1106 = vpop.f32.mrb[0].mxu0
      %v1107 = vadd.f32 0.0, %v1106
      %v1108 = vpop.f32.mrb[0].mxu0
      %v1109 = vpop.f32.mrb[0].mxu0
      %v1110 = vadd.f32 0.0, %v1109
      %v1111 = vpop.f32.mrb[0].mxu0
      %1112 = vmatprep.mubr.bf16.mxu0 0
      %1113 = vmatmul.mubr.bf16.gmra.mrb[0].mxu0 %v973
      %v1114 = vpop.f32.mrb[0].mxu0
      %v1115 = vadd.f32 0.0, %v1114
      %v1116 = vpop.f32.mrb[0].mxu0
      %v1117 = vpop.f32.mrb[0].mxu0
      %v1118 = vadd.f32 0.0, %v1117
      %v1119 = vpop.f32.mrb[0].mxu0
      %1120 = vmatprep.mubr.bf16.mxu0 0
      %1121 = vmatmul.mubr.bf16.gmra.mrb[0].mxu0 %v974
      %v1122 = vpop.f32.mrb[0].mxu0
      %v1123 = vadd.f32 0.0, %v1122
      %v1124 = vpop.f32.mrb[0].mxu0
      %v1125 = vpop.f32.mrb[0].mxu0
      %v1126 = vadd.f32 0.0, %v1125
      %v1127 = vpop.f32.mrb[0].mxu0
      %1128 = vmatprep.mubr.bf16.mxu0 0
      %1129 = vmatmul.mubr.bf16.gmra.mrb[0].mxu0 %v975
      %v1130 = vpop.f32.mrb[0].mxu0
      %v1131 = vadd.f32 0.0, %v1130
      %v1132 = vpop.f32.mrb[0].mxu0
      %v1133 = vpop.f32.mrb[0].mxu0
      %v1134 = vadd.f32 0.0, %v1133
      %v1135 = vpop.f32.mrb[0].mxu0
      %1136 = vdwg.mxu0
      %v1137 = vadd.f32 %v906, %v1075
      %v1138 = vadd.f32 %v909, %v1078
      %v1139 = vadd.f32 %v914, %v1083
      %v1140 = vadd.f32 %v917, %v1086
      %v1141 = vadd.f32 %v922, %v1091
      %v1142 = vadd.f32 %v925, %v1094
      %v1143 = vadd.f32 %v930, %v1099
      %v1144 = vadd.f32 %v933, %v1102
      %v1145 = vadd.f32 %v938, %v1107
      %v1146 = vadd.f32 %v941, %v1110
      %v1147 = vadd.f32 %v946, %v1115
      %v1148 = vadd.f32 %v949, %v1118
      %v1149 = vadd.f32 %v954, %v1123
      %v1150 = vadd.f32 %v957, %v1126
      %v1151 = vadd.f32 %v962, %v1131
      %v1152 = vadd.f32 %v965, %v1134
      %v1153 = vmax.f32 %v1137, 0.0
      %v1154 = vmax.f32 %v1138, 0.0
      %v1155 = vmax.f32 %v1139, 0.0
      %v1156 = vmax.f32 %v1140, 0.0
      %v1157 = vmax.f32 %v1141, 0.0
      %v1158 = vmax.f32 %v1142, 0.0
      %v1159 = vmax.f32 %v1143, 0.0
      %v1160 = vmax.f32 %v1144, 0.0
      %v1161 = vmax.f32 %v1145, 0.0
      %v1162 = vmax.f32 %v1146, 0.0
      %v1163 = vmax.f32 %v1147, 0.0
      %v1164 = vmax.f32 %v1148, 0.0
      %v1165 = vmax.f32 %v1149, 0.0
      %v1166 = vmax.f32 %v1150, 0.0
      %v1167 = vmax.f32 %v1151, 0.0
      %v1168 = vmax.f32 %v1152, 0.0
      %v1169 = vadd.f32 %v1153, %v783
      %v1170 = vadd.f32 %v1154, %v784
      %v1171 = vadd.f32 %v1155, %v785
      %v1172 = vadd.f32 %v1156, %v786
      %v1173 = vadd.f32 %v1157, %v787
      %v1174 = vadd.f32 %v1158, %v788
      %v1175 = vadd.f32 %v1159, %v789
      %v1176 = vadd.f32 %v1160, %v790
      %v1177 = vadd.f32 %v1161, %v791
      %v1178 = vadd.f32 %v1162, %v792
      %v1179 = vadd.f32 %v1163, %v793
      %v1180 = vadd.f32 %v1164, %v794
      %v1181 = vadd.f32 %v1165, %v795
      %v1182 = vadd.f32 %v1166, %v796
      %v1183 = vadd.f32 %v1167, %v797
      %v1184 = vadd.f32 %v1168, %v798
      %v1185 = vpack.c.bf16 %v1170, %v1169
      %v1186 = vpack.c.bf16 %v1172, %v1171
      %v1187 = vpack.c.bf16 %v1174, %v1173
      %v1188 = vpack.c.bf16 %v1176, %v1175
      %v1189 = vpack.c.bf16 %v1178, %v1177
      %v1190 = vpack.c.bf16 %v1180, %v1179
      %v1191 = vpack.c.bf16 %v1182, %v1181
      %v1192 = vpack.c.bf16 %v1184, %v1183
      %1193 = vmatprep.subr.bf16.mxu0 0
      %1194 = vmatpush1.bf16.msra.mxu0 %v1185
      %1195 = vmatprep.subr.bf16.mxu0 0
      %1196 = vmatpush1.bf16.msra.mxu0 %v1186
      %1197 = vmatprep.subr.bf16.mxu0 0
      %1198 = vmatpush1.bf16.msra.mxu0 %v1187
      %1199 = vmatprep.subr.bf16.mxu0 0
      %1200 = vmatpush1.bf16.msra.mxu0 %v1188
      %1201 = vmatprep.subr.bf16.mxu0 0
      %1202 = vmatpush1.bf16.msra.mxu0 %v1189
      %1203 = vmatprep.subr.bf16.mxu0 0
      %1204 = vmatpush1.bf16.msra.mxu0 %v1190
      %1205 = vmatprep.subr.bf16.mxu0 0
      %1206 = vmatpush1.bf16.msra.mxu0 %v1191
      %1207 = vmatprep.subr.bf16.mxu0 0
      %1208 = vmatpush1.bf16.msra.mxu0 %v1192
      %1209 = vmatprep.subr.bf16.mxu0 0
      %1210 = vmatpush1.bf16.msra.mxu0 0
      %1211 = vmatprep.subr.bf16.mxu0 0
      %1212 = vmatpush1.bf16.msra.mxu0 0
      %1213 = vmatprep.subr.bf16.mxu0 0
      %1214 = vmatpush1.bf16.msra.mxu0 0
      %1215 = vmatprep.subr.bf16.mxu0 0
      %1216 = vmatpush1.bf16.msra.mxu0 0
      %1217 = vmatprep.subr.bf16.mxu0 0
      %1218 = vmatpush1.bf16.msra.mxu0 0
      %1219 = vmatprep.subr.bf16.mxu0 0
      %1220 = vmatpush1.bf16.msra.mxu0 0
      %1221 = vmatprep.subr.bf16.mxu0 0
      %1222 = vmatpush1.bf16.msra.mxu0 0
      %1223 = vmatprep.subr.bf16.mxu0 0
      %1224 = vmatpush1.bf16.msra.mxu0 0
      %1225 = vmatprep.mubr.bf16.mxu0 0
      %1226 = vmatmul.mubr.bf16.gmra.mrb[0].mxu0 %v855
      %v1227 = vpop.f32.mrb[0].mxu0
      %v1228 = vadd.f32 %v799, %v1227
      %v1229 = vpop.f32.mrb[0].mxu0
      %v1230 = vpop.f32.mrb[0].mxu0
      %v1231 = vadd.f32 %v800, %v1230
      %v1232 = vpop.f32.mrb[0].mxu0
      %1233 = vmatprep.mubr.bf16.mxu0 0
      %1234 = vmatmul.mubr.bf16.gmra.mrb[0].mxu0 %v856
      %v1235 = vpop.f32.mrb[0].mxu0
      %v1236 = vadd.f32 %v801, %v1235
      %v1237 = vpop.f32.mrb[0].mxu0
      %v1238 = vpop.f32.mrb[0].mxu0
      %v1239 = vadd.f32 %v802, %v1238
      %v1240 = vpop.f32.mrb[0].mxu0
      %1241 = vmatprep.mubr.bf16.mxu0 0
      %1242 = vmatmul.mubr.bf16.gmra.mrb[0].mxu0 %v857
      %v1243 = vpop.f32.mrb[0].mxu0
      %v1244 = vadd.f32 %v803, %v1243
      %v1245 = vpop.f32.mrb[0].mxu0
      %v1246 = vpop.f32.mrb[0].mxu0
      %v1247 = vadd.f32 %v804, %v1246
      %v1248 = vpop.f32.mrb[0].mxu0
      %1249 = vmatprep.mubr.bf16.mxu0 0
      %1250 = vmatmul.mubr.bf16.gmra.mrb[0].mxu0 %v858
      %v1251 = vpop.f32.mrb[0].mxu0
      %v1252 = vadd.f32 %v805, %v1251
      %v1253 = vpop.f32.mrb[0].mxu0
      %v1254 = vpop.f32.mrb[0].mxu0
      %v1255 = vadd.f32 %v806, %v1254
      %v1256 = vpop.f32.mrb[0].mxu0
      %1257 = vmatprep.mubr.bf16.mxu0 0
      %1258 = vmatmul.mubr.bf16.gmra.mrb[0].mxu0 %v859
      %v1259 = vpop.f32.mrb[0].mxu0
      %v1260 = vadd.f32 %v807, %v1259
      %v1261 = vpop.f32.mrb[0].mxu0
      %v1262 = vpop.f32.mrb[0].mxu0
      %v1263 = vadd.f32 %v808, %v1262
      %v1264 = vpop.f32.mrb[0].mxu0
      %1265 = vmatprep.mubr.bf16.mxu0 0
      %1266 = vmatmul.mubr.bf16.gmra.mrb[0].mxu0 %v860
      %v1267 = vpop.f32.mrb[0].mxu0
      %v1268 = vadd.f32 %v809, %v1267
      %v1269 = vpop.f32.mrb[0].mxu0
      %v1270 = vpop.f32.mrb[0].mxu0
      %v1271 = vadd.f32 %v810, %v1270
      %v1272 = vpop.f32.mrb[0].mxu0
      %1273 = vmatprep.mubr.bf16.mxu0 0
      %1274 = vmatmul.mubr.bf16.gmra.mrb[0].mxu0 %v861
      %v1275 = vpop.f32.mrb[0].mxu0
      %v1276 = vadd.f32 %v811, %v1275
      %v1277 = vpop.f32.mrb[0].mxu0
      %v1278 = vpop.f32.mrb[0].mxu0
      %v1279 = vadd.f32 %v812, %v1278
      %v1280 = vpop.f32.mrb[0].mxu0
      %1281 = vmatprep.mubr.bf16.mxu0 0
      %1282 = vmatmul.mubr.bf16.gmra.mrb[0].mxu0 %v862
      %v1283 = vpop.f32.mrb[0].mxu0
      %v1284 = vadd.f32 %v813, %v1283
      %v1285 = vpop.f32.mrb[0].mxu0
      %v1286 = vpop.f32.mrb[0].mxu0
      %v1287 = vadd.f32 %v814, %v1286
      %v1288 = vpop.f32.mrb[0].mxu0
      %1289 = vdwg.mxu0
      %v1290 = vpack.c.bf16 %v1231, %v1228
      %v1291 = vpack.c.bf16 %v1239, %v1236
      %v1292 = vpack.c.bf16 %v1247, %v1244
      %v1293 = vpack.c.bf16 %v1255, %v1252
      %v1294 = vpack.c.bf16 %v1263, %v1260
      %v1295 = vpack.c.bf16 %v1271, %v1268
      %v1296 = vpack.c.bf16 %v1279, %v1276
      %v1297 = vpack.c.bf16 %v1287, %v1284
      %s1298 = scalar_lea.vmem %s525, 64
      %v1299 = vld [vmem:[%s1298] sm:$0xf]
      %v1300 = vld [vmem:[%s1298 + $0x4] sm:$0xf]
      %v1301 = vld [vmem:[%s1298 + $0x8] sm:$0xf]
      %v1302 = vld [vmem:[%s1298 + $0xc] sm:$0xf]
      %v1303 = vld [vmem:[%s1298 + $0x10] sm:$0xf]
      %v1304 = vld [vmem:[%s1298 + $0x14] sm:$0xf]
      %v1305 = vld [vmem:[%s1298 + $0x18] sm:$0xf]
      %v1306 = vld [vmem:[%s1298 + $0x1c] sm:$0xf]
      %v1307 = vld [vmem:[%s1298 + $0x20] sm:$0xf]
      %v1308 = vld [vmem:[%s1298 + $0x24] sm:$0xf]
      %v1309 = vld [vmem:[%s1298 + $0x28] sm:$0xf]
      %v1310 = vld [vmem:[%s1298 + $0x2c] sm:$0xf]
      %v1311 = vld [vmem:[%s1298 + $0x30] sm:$0xf]
      %v1312 = vld [vmem:[%s1298 + $0x34] sm:$0xf]
      %v1313 = vld [vmem:[%s1298 + $0x38] sm:$0xf]
      %v1314 = vld [vmem:[%s1298 + $0x3c] sm:$0xf]
      %v1331 = vunpack.c.l.b16 %v1299
      %v1332 = vunpack.c.l.b16 %v1300
      %v1333 = vunpack.c.l.b16 %v1301
      %v1334 = vunpack.c.l.b16 %v1302
      %v1335 = vunpack.c.l.b16 %v1303
      %v1336 = vunpack.c.l.b16 %v1304
      %v1337 = vunpack.c.l.b16 %v1305
      %v1338 = vunpack.c.l.b16 %v1306
      %v1339 = vunpack.c.l.b16 %v1307
      %v1340 = vunpack.c.l.b16 %v1308
      %v1341 = vunpack.c.l.b16 %v1309
      %v1342 = vunpack.c.l.b16 %v1310
      %v1343 = vunpack.c.l.b16 %v1311
      %v1344 = vunpack.c.l.b16 %v1312
      %v1345 = vunpack.c.l.b16 %v1313
      %v1346 = vunpack.c.l.b16 %v1314
      %v1347 = vpack.c.b16 %v1332, %v1331
      %v1348 = vpack.c.b16 %v1334, %v1333
      %v1349 = vpack.c.b16 %v1336, %v1335
      %v1350 = vpack.c.b16 %v1338, %v1337
      %v1351 = vpack.c.b16 %v1340, %v1339
      %v1352 = vpack.c.b16 %v1342, %v1341
      %v1353 = vpack.c.b16 %v1344, %v1343
      %v1354 = vpack.c.b16 %v1346, %v1345
      %1363 = vmatprep.subr.bf16.mxu0 0
      %1364 = vmatpush1.bf16.msra.mxu0 %v1347
      %1365 = vmatprep.subr.bf16.mxu0 0
      %1366 = vmatpush1.bf16.msra.mxu0 %v1348
      %1367 = vmatprep.subr.bf16.mxu0 0
      %1368 = vmatpush1.bf16.msra.mxu0 %v1349
      %1369 = vmatprep.subr.bf16.mxu0 0
      %1370 = vmatpush1.bf16.msra.mxu0 %v1350
      %1371 = vmatprep.subr.bf16.mxu0 0
      %1372 = vmatpush1.bf16.msra.mxu0 %v1351
      %1373 = vmatprep.subr.bf16.mxu0 0
      %1374 = vmatpush1.bf16.msra.mxu0 %v1352
      %1375 = vmatprep.subr.bf16.mxu0 0
      %1376 = vmatpush1.bf16.msra.mxu0 %v1353
      %1377 = vmatprep.subr.bf16.mxu0 0
      %1378 = vmatpush1.bf16.msra.mxu0 %v1354
      %1379 = vmatprep.subr.bf16.mxu0 0
      %1380 = vmatpush1.bf16.msra.mxu0 0
      %1381 = vmatprep.subr.bf16.mxu0 0
      %1382 = vmatpush1.bf16.msra.mxu0 0
      %1383 = vmatprep.subr.bf16.mxu0 0
      %1384 = vmatpush1.bf16.msra.mxu0 0
      %1385 = vmatprep.subr.bf16.mxu0 0
      %1386 = vmatpush1.bf16.msra.mxu0 0
      %1387 = vmatprep.subr.bf16.mxu0 0
      %1388 = vmatpush1.bf16.msra.mxu0 0
      %1389 = vmatprep.subr.bf16.mxu0 0
      %1390 = vmatpush1.bf16.msra.mxu0 0
      %1391 = vmatprep.subr.bf16.mxu0 0
      %1392 = vmatpush1.bf16.msra.mxu0 0
      %1393 = vmatprep.subr.bf16.mxu0 0
      %1394 = vmatpush1.bf16.msra.mxu0 0
      %1395 = vmatprep.mubr.bf16.mxu0 0
      %1396 = vmatmul.mubr.bf16.gmra.mrb[0].mxu0 %v1290
      %v1397 = vpop.f32.mrb[0].mxu0
      %v1398 = vadd.f32 0.0, %v1397
      %v1399 = vpop.f32.mrb[0].mxu0
      %v1400 = vpop.f32.mrb[0].mxu0
      %v1401 = vadd.f32 0.0, %v1400
      %v1402 = vpop.f32.mrb[0].mxu0
      %1403 = vmatprep.mubr.bf16.mxu0 0
      %1404 = vmatmul.mubr.bf16.gmra.mrb[0].mxu0 %v1291
      %v1405 = vpop.f32.mrb[0].mxu0
      %v1406 = vadd.f32 0.0, %v1405
      %v1407 = vpop.f32.mrb[0].mxu0
      %v1408 = vpop.f32.mrb[0].mxu0
      %v1409 = vadd.f32 0.0, %v1408
      %v1410 = vpop.f32.mrb[0].mxu0
      %1411 = vmatprep.mubr.bf16.mxu0 0
      %1412 = vmatmul.mubr.bf16.gmra.mrb[0].mxu0 %v1292
      %v1413 = vpop.f32.mrb[0].mxu0
      %v1414 = vadd.f32 0.0, %v1413
      %v1415 = vpop.f32.mrb[0].mxu0
      %v1416 = vpop.f32.mrb[0].mxu0
      %v1417 = vadd.f32 0.0, %v1416
      %v1418 = vpop.f32.mrb[0].mxu0
      %1419 = vmatprep.mubr.bf16.mxu0 0
      %1420 = vmatmul.mubr.bf16.gmra.mrb[0].mxu0 %v1293
      %v1421 = vpop.f32.mrb[0].mxu0
      %v1422 = vadd.f32 0.0, %v1421
      %v1423 = vpop.f32.mrb[0].mxu0
      %v1424 = vpop.f32.mrb[0].mxu0
      %v1425 = vadd.f32 0.0, %v1424
      %v1426 = vpop.f32.mrb[0].mxu0
      %1427 = vmatprep.mubr.bf16.mxu0 0
      %1428 = vmatmul.mubr.bf16.gmra.mrb[0].mxu0 %v1294
      %v1429 = vpop.f32.mrb[0].mxu0
      %v1430 = vadd.f32 0.0, %v1429
      %v1431 = vpop.f32.mrb[0].mxu0
      %v1432 = vpop.f32.mrb[0].mxu0
      %v1433 = vadd.f32 0.0, %v1432
      %v1434 = vpop.f32.mrb[0].mxu0
      %1435 = vmatprep.mubr.bf16.mxu0 0
      %1436 = vmatmul.mubr.bf16.gmra.mrb[0].mxu0 %v1295
      %v1437 = vpop.f32.mrb[0].mxu0
      %v1438 = vadd.f32 0.0, %v1437
      %v1439 = vpop.f32.mrb[0].mxu0
      %v1440 = vpop.f32.mrb[0].mxu0
      %v1441 = vadd.f32 0.0, %v1440
      %v1442 = vpop.f32.mrb[0].mxu0
      %1443 = vmatprep.mubr.bf16.mxu0 0
      %1444 = vmatmul.mubr.bf16.gmra.mrb[0].mxu0 %v1296
      %v1445 = vpop.f32.mrb[0].mxu0
      %v1446 = vadd.f32 0.0, %v1445
      %v1447 = vpop.f32.mrb[0].mxu0
      %v1448 = vpop.f32.mrb[0].mxu0
      %v1449 = vadd.f32 0.0, %v1448
      %v1450 = vpop.f32.mrb[0].mxu0
      %1451 = vmatprep.mubr.bf16.mxu0 0
      %1452 = vmatmul.mubr.bf16.gmra.mrb[0].mxu0 %v1297
      %v1453 = vpop.f32.mrb[0].mxu0
      %v1454 = vadd.f32 0.0, %v1453
      %v1455 = vpop.f32.mrb[0].mxu0
      %v1456 = vpop.f32.mrb[0].mxu0
      %v1457 = vadd.f32 0.0, %v1456
      %v1458 = vpop.f32.mrb[0].mxu0
      %1459 = vdwg.mxu0
      %v1460 = vadd.f32 %v1228, %v1398
      %v1461 = vadd.f32 %v1231, %v1401
      %v1462 = vadd.f32 %v1236, %v1406
      %v1463 = vadd.f32 %v1239, %v1409
      %v1464 = vadd.f32 %v1244, %v1414
      %v1465 = vadd.f32 %v1247, %v1417
      %v1466 = vadd.f32 %v1252, %v1422
      %v1467 = vadd.f32 %v1255, %v1425
      %v1468 = vadd.f32 %v1260, %v1430
      %v1469 = vadd.f32 %v1263, %v1433
      %v1470 = vadd.f32 %v1268, %v1438
      %v1471 = vadd.f32 %v1271, %v1441
      %v1472 = vadd.f32 %v1276, %v1446
      %v1473 = vadd.f32 %v1279, %v1449
      %v1474 = vadd.f32 %v1284, %v1454
      %v1475 = vadd.f32 %v1287, %v1457
      %v1476 = vmax.f32 %v1460, 0.0
      %v1477 = vmax.f32 %v1461, 0.0
      %v1478 = vmax.f32 %v1462, 0.0
      %v1479 = vmax.f32 %v1463, 0.0
      %v1480 = vmax.f32 %v1464, 0.0
      %v1481 = vmax.f32 %v1465, 0.0
      %v1482 = vmax.f32 %v1466, 0.0
      %v1483 = vmax.f32 %v1467, 0.0
      %v1484 = vmax.f32 %v1468, 0.0
      %v1485 = vmax.f32 %v1469, 0.0
      %v1486 = vmax.f32 %v1470, 0.0
      %v1487 = vmax.f32 %v1471, 0.0
      %v1488 = vmax.f32 %v1472, 0.0
      %v1489 = vmax.f32 %v1473, 0.0
      %v1490 = vmax.f32 %v1474, 0.0
      %v1491 = vmax.f32 %v1475, 0.0
      %v1492 = vadd.f32 %v1476, %v1169
      %v1493 = vadd.f32 %v1477, %v1170
      %v1494 = vadd.f32 %v1478, %v1171
      %v1495 = vadd.f32 %v1479, %v1172
      %v1496 = vadd.f32 %v1480, %v1173
      %v1497 = vadd.f32 %v1481, %v1174
      %v1498 = vadd.f32 %v1482, %v1175
      %v1499 = vadd.f32 %v1483, %v1176
      %v1500 = vadd.f32 %v1484, %v1177
      %v1501 = vadd.f32 %v1485, %v1178
      %v1502 = vadd.f32 %v1486, %v1179
      %v1503 = vadd.f32 %v1487, %v1180
      %v1504 = vadd.f32 %v1488, %v1181
      %v1505 = vadd.f32 %v1489, %v1182
      %v1506 = vadd.f32 %v1490, %v1183
      %v1507 = vadd.f32 %v1491, %v1184
      %v1508 = vpack.c.bf16 %v1493, %v1492
      %v1509 = vpack.c.bf16 %v1495, %v1494
      %v1510 = vpack.c.bf16 %v1497, %v1496
      %v1511 = vpack.c.bf16 %v1499, %v1498
      %v1512 = vpack.c.bf16 %v1501, %v1500
      %v1513 = vpack.c.bf16 %v1503, %v1502
      %v1514 = vpack.c.bf16 %v1505, %v1504
      %v1515 = vpack.c.bf16 %v1507, %v1506
      %1516 = vmatprep.subr.bf16.mxu0 0
      %1517 = vmatpush1.bf16.msra.mxu0 %v1508
      %1518 = vmatprep.subr.bf16.mxu0 0
      %1519 = vmatpush1.bf16.msra.mxu0 %v1509
      %1520 = vmatprep.subr.bf16.mxu0 0
      %1521 = vmatpush1.bf16.msra.mxu0 %v1510
      %1522 = vmatprep.subr.bf16.mxu0 0
      %1523 = vmatpush1.bf16.msra.mxu0 %v1511
      %1524 = vmatprep.subr.bf16.mxu0 0
      %1525 = vmatpush1.bf16.msra.mxu0 %v1512
      %1526 = vmatprep.subr.bf16.mxu0 0
      %1527 = vmatpush1.bf16.msra.mxu0 %v1513
      %1528 = vmatprep.subr.bf16.mxu0 0
      %1529 = vmatpush1.bf16.msra.mxu0 %v1514
      %1530 = vmatprep.subr.bf16.mxu0 0
      %1531 = vmatpush1.bf16.msra.mxu0 %v1515
      %1532 = vmatprep.subr.bf16.mxu0 0
      %1533 = vmatpush1.bf16.msra.mxu0 0
      %1534 = vmatprep.subr.bf16.mxu0 0
      %1535 = vmatpush1.bf16.msra.mxu0 0
      %1536 = vmatprep.subr.bf16.mxu0 0
      %1537 = vmatpush1.bf16.msra.mxu0 0
      %1538 = vmatprep.subr.bf16.mxu0 0
      %1539 = vmatpush1.bf16.msra.mxu0 0
      %1540 = vmatprep.subr.bf16.mxu0 0
      %1541 = vmatpush1.bf16.msra.mxu0 0
      %1542 = vmatprep.subr.bf16.mxu0 0
      %1543 = vmatpush1.bf16.msra.mxu0 0
      %1544 = vmatprep.subr.bf16.mxu0 0
      %1545 = vmatpush1.bf16.msra.mxu0 0
      %1546 = vmatprep.subr.bf16.mxu0 0
      %1547 = vmatpush1.bf16.msra.mxu0 0
      %1548 = vmatprep.mubr.bf16.mxu0 0
      %1549 = vmatmul.mubr.bf16.gmra.mrb[0].mxu0 %v855
      %v1550 = vpop.f32.mrb[0].mxu0
      %v1551 = vadd.f32 %v799, %v1550
      %v1552 = vpop.f32.mrb[0].mxu0
      %v1553 = vpop.f32.mrb[0].mxu0
      %v1554 = vadd.f32 %v800, %v1553
      %v1555 = vpop.f32.mrb[0].mxu0
      %1556 = vmatprep.mubr.bf16.mxu0 0
      %1557 = vmatmul.mubr.bf16.gmra.mrb[0].mxu0 %v856
      %v1558 = vpop.f32.mrb[0].mxu0
      %v1559 = vadd.f32 %v801, %v1558
      %v1560 = vpop.f32.mrb[0].mxu0
      %v1561 = vpop.f32.mrb[0].mxu0
      %v1562 = vadd.f32 %v802, %v1561
      %v1563 = vpop.f32.mrb[0].mxu0
      %1564 = vmatprep.mubr.bf16.mxu0 0
      %1565 = vmatmul.mubr.bf16.gmra.mrb[0].mxu0 %v857
      %v1566 = vpop.f32.mrb[0].mxu0
      %v1567 = vadd.f32 %v803, %v1566
      %v1568 = vpop.f32.mrb[0].mxu0
      %v1569 = vpop.f32.mrb[0].mxu0
      %v1570 = vadd.f32 %v804, %v1569
      %v1571 = vpop.f32.mrb[0].mxu0
      %1572 = vmatprep.mubr.bf16.mxu0 0
      %1573 = vmatmul.mubr.bf16.gmra.mrb[0].mxu0 %v858
      %v1574 = vpop.f32.mrb[0].mxu0
      %v1575 = vadd.f32 %v805, %v1574
      %v1576 = vpop.f32.mrb[0].mxu0
      %v1577 = vpop.f32.mrb[0].mxu0
      %v1578 = vadd.f32 %v806, %v1577
      %v1579 = vpop.f32.mrb[0].mxu0
      %1580 = vmatprep.mubr.bf16.mxu0 0
      %1581 = vmatmul.mubr.bf16.gmra.mrb[0].mxu0 %v859
      %v1582 = vpop.f32.mrb[0].mxu0
      %v1583 = vadd.f32 %v807, %v1582
      %v1584 = vpop.f32.mrb[0].mxu0
      %v1585 = vpop.f32.mrb[0].mxu0
      %v1586 = vadd.f32 %v808, %v1585
      %v1587 = vpop.f32.mrb[0].mxu0
      %1588 = vmatprep.mubr.bf16.mxu0 0
      %1589 = vmatmul.mubr.bf16.gmra.mrb[0].mxu0 %v860
      %v1590 = vpop.f32.mrb[0].mxu0
      %v1591 = vadd.f32 %v809, %v1590
      %v1592 = vpop.f32.mrb[0].mxu0
      %v1593 = vpop.f32.mrb[0].mxu0
      %v1594 = vadd.f32 %v810, %v1593
      %v1595 = vpop.f32.mrb[0].mxu0
      %1596 = vmatprep.mubr.bf16.mxu0 0
      %1597 = vmatmul.mubr.bf16.gmra.mrb[0].mxu0 %v861
      %v1598 = vpop.f32.mrb[0].mxu0
      %v1599 = vadd.f32 %v811, %v1598
      %v1600 = vpop.f32.mrb[0].mxu0
      %v1601 = vpop.f32.mrb[0].mxu0
      %v1602 = vadd.f32 %v812, %v1601
      %v1603 = vpop.f32.mrb[0].mxu0
      %1604 = vmatprep.mubr.bf16.mxu0 0
      %1605 = vmatmul.mubr.bf16.gmra.mrb[0].mxu0 %v862
      %v1606 = vpop.f32.mrb[0].mxu0
      %v1607 = vadd.f32 %v813, %v1606
      %v1608 = vpop.f32.mrb[0].mxu0
      %v1609 = vpop.f32.mrb[0].mxu0
      %v1610 = vadd.f32 %v814, %v1609
      %v1611 = vpop.f32.mrb[0].mxu0
      %1612 = vdwg.mxu0
      %v1613 = vpack.c.bf16 %v1554, %v1551
      %v1614 = vpack.c.bf16 %v1562, %v1559
      %v1615 = vpack.c.bf16 %v1570, %v1567
      %v1616 = vpack.c.bf16 %v1578, %v1575
      %v1617 = vpack.c.bf16 %v1586, %v1583
      %v1618 = vpack.c.bf16 %v1594, %v1591
      %v1619 = vpack.c.bf16 %v1602, %v1599
      %v1620 = vpack.c.bf16 %v1610, %v1607
      %s1621 = scalar_lea.vmem %s525, 128
      %v1622 = vld [vmem:[%s1621] sm:$0xf]
      %v1623 = vld [vmem:[%s1621 + $0x4] sm:$0xf]
      %v1624 = vld [vmem:[%s1621 + $0x8] sm:$0xf]
      %v1625 = vld [vmem:[%s1621 + $0xc] sm:$0xf]
      %v1626 = vld [vmem:[%s1621 + $0x10] sm:$0xf]
      %v1627 = vld [vmem:[%s1621 + $0x14] sm:$0xf]
      %v1628 = vld [vmem:[%s1621 + $0x18] sm:$0xf]
      %v1629 = vld [vmem:[%s1621 + $0x1c] sm:$0xf]
      %v1630 = vld [vmem:[%s1621 + $0x20] sm:$0xf]
      %v1631 = vld [vmem:[%s1621 + $0x24] sm:$0xf]
      %v1632 = vld [vmem:[%s1621 + $0x28] sm:$0xf]
      %v1633 = vld [vmem:[%s1621 + $0x2c] sm:$0xf]
      %v1634 = vld [vmem:[%s1621 + $0x30] sm:$0xf]
      %v1635 = vld [vmem:[%s1621 + $0x34] sm:$0xf]
      %v1636 = vld [vmem:[%s1621 + $0x38] sm:$0xf]
      %v1637 = vld [vmem:[%s1621 + $0x3c] sm:$0xf]
      %v1654 = vunpack.c.l.b16 %v1622
      %v1655 = vunpack.c.l.b16 %v1623
      %v1656 = vunpack.c.l.b16 %v1624
      %v1657 = vunpack.c.l.b16 %v1625
      %v1658 = vunpack.c.l.b16 %v1626
      %v1659 = vunpack.c.l.b16 %v1627
      %v1660 = vunpack.c.l.b16 %v1628
      %v1661 = vunpack.c.l.b16 %v1629
      %v1662 = vunpack.c.l.b16 %v1630
      %v1663 = vunpack.c.l.b16 %v1631
      %v1664 = vunpack.c.l.b16 %v1632
      %v1665 = vunpack.c.l.b16 %v1633
      %v1666 = vunpack.c.l.b16 %v1634
      %v1667 = vunpack.c.l.b16 %v1635
      %v1668 = vunpack.c.l.b16 %v1636
      %v1669 = vunpack.c.l.b16 %v1637
      %v1670 = vpack.c.b16 %v1655, %v1654
      %v1671 = vpack.c.b16 %v1657, %v1656
      %v1672 = vpack.c.b16 %v1659, %v1658
      %v1673 = vpack.c.b16 %v1661, %v1660
      %v1674 = vpack.c.b16 %v1663, %v1662
      %v1675 = vpack.c.b16 %v1665, %v1664
      %v1676 = vpack.c.b16 %v1667, %v1666
      %v1677 = vpack.c.b16 %v1669, %v1668
      %1686 = vmatprep.subr.bf16.mxu0 0
      %1687 = vmatpush1.bf16.msra.mxu0 %v1670
      %1688 = vmatprep.subr.bf16.mxu0 0
      %1689 = vmatpush1.bf16.msra.mxu0 %v1671
      %1690 = vmatprep.subr.bf16.mxu0 0
      %1691 = vmatpush1.bf16.msra.mxu0 %v1672
      %1692 = vmatprep.subr.bf16.mxu0 0
      %1693 = vmatpush1.bf16.msra.mxu0 %v1673
      %1694 = vmatprep.subr.bf16.mxu0 0
      %1695 = vmatpush1.bf16.msra.mxu0 %v1674
      %1696 = vmatprep.subr.bf16.mxu0 0
      %1697 = vmatpush1.bf16.msra.mxu0 %v1675
      %1698 = vmatprep.subr.bf16.mxu0 0
      %1699 = vmatpush1.bf16.msra.mxu0 %v1676
      %1700 = vmatprep.subr.bf16.mxu0 0
      %1701 = vmatpush1.bf16.msra.mxu0 %v1677
      %1702 = vmatprep.subr.bf16.mxu0 0
      %1703 = vmatpush1.bf16.msra.mxu0 0
      %1704 = vmatprep.subr.bf16.mxu0 0
      %1705 = vmatpush1.bf16.msra.mxu0 0
      %1706 = vmatprep.subr.bf16.mxu0 0
      %1707 = vmatpush1.bf16.msra.mxu0 0
      %1708 = vmatprep.subr.bf16.mxu0 0
      %1709 = vmatpush1.bf16.msra.mxu0 0
      %1710 = vmatprep.subr.bf16.mxu0 0
      %1711 = vmatpush1.bf16.msra.mxu0 0
      %1712 = vmatprep.subr.bf16.mxu0 0
      %1713 = vmatpush1.bf16.msra.mxu0 0
      %1714 = vmatprep.subr.bf16.mxu0 0
      %1715 = vmatpush1.bf16.msra.mxu0 0
      %1716 = vmatprep.subr.bf16.mxu0 0
      %1717 = vmatpush1.bf16.msra.mxu0 0
      %1718 = vmatprep.mubr.bf16.mxu0 0
      %1719 = vmatmul.mubr.bf16.gmra.mrb[0].mxu0 %v1613
      %v1720 = vpop.f32.mrb[0].mxu0
      %v1721 = vadd.f32 0.0, %v1720
      %v1722 = vpop.f32.mrb[0].mxu0
      %v1723 = vpop.f32.mrb[0].mxu0
      %v1724 = vadd.f32 0.0, %v1723
      %v1725 = vpop.f32.mrb[0].mxu0
      %1726 = vmatprep.mubr.bf16.mxu0 0
      %1727 = vmatmul.mubr.bf16.gmra.mrb[0].mxu0 %v1614
      %v1728 = vpop.f32.mrb[0].mxu0
      %v1729 = vadd.f32 0.0, %v1728
      %v1730 = vpop.f32.mrb[0].mxu0
      %v1731 = vpop.f32.mrb[0].mxu0
      %v1732 = vadd.f32 0.0, %v1731
      %v1733 = vpop.f32.mrb[0].mxu0
      %1734 = vmatprep.mubr.bf16.mxu0 0
      %1735 = vmatmul.mubr.bf16.gmra.mrb[0].mxu0 %v1615
      %v1736 = vpop.f32.mrb[0].mxu0
      %v1737 = vadd.f32 0.0, %v1736
      %v1738 = vpop.f32.mrb[0].mxu0
      %v1739 = vpop.f32.mrb[0].mxu0
      %v1740 = vadd.f32 0.0, %v1739
      %v1741 = vpop.f32.mrb[0].mxu0
      %1742 = vmatprep.mubr.bf16.mxu0 0
      %1743 = vmatmul.mubr.bf16.gmra.mrb[0].mxu0 %v1616
      %v1744 = vpop.f32.mrb[0].mxu0
      %v1745 = vadd.f32 0.0, %v1744
      %v1746 = vpop.f32.mrb[0].mxu0
      %v1747 = vpop.f32.mrb[0].mxu0
      %v1748 = vadd.f32 0.0, %v1747
      %v1749 = vpop.f32.mrb[0].mxu0
      %1750 = vmatprep.mubr.bf16.mxu0 0
      %1751 = vmatmul.mubr.bf16.gmra.mrb[0].mxu0 %v1617
      %v1752 = vpop.f32.mrb[0].mxu0
      %v1753 = vadd.f32 0.0, %v1752
      %v1754 = vpop.f32.mrb[0].mxu0
      %v1755 = vpop.f32.mrb[0].mxu0
      %v1756 = vadd.f32 0.0, %v1755
      %v1757 = vpop.f32.mrb[0].mxu0
      %1758 = vmatprep.mubr.bf16.mxu0 0
      %1759 = vmatmul.mubr.bf16.gmra.mrb[0].mxu0 %v1618
      %v1760 = vpop.f32.mrb[0].mxu0
      %v1761 = vadd.f32 0.0, %v1760
      %v1762 = vpop.f32.mrb[0].mxu0
      %v1763 = vpop.f32.mrb[0].mxu0
      %v1764 = vadd.f32 0.0, %v1763
      %v1765 = vpop.f32.mrb[0].mxu0
      %1766 = vmatprep.mubr.bf16.mxu0 0
      %1767 = vmatmul.mubr.bf16.gmra.mrb[0].mxu0 %v1619
      %v1768 = vpop.f32.mrb[0].mxu0
      %v1769 = vadd.f32 0.0, %v1768
      %v1770 = vpop.f32.mrb[0].mxu0
      %v1771 = vpop.f32.mrb[0].mxu0
      %v1772 = vadd.f32 0.0, %v1771
      %v1773 = vpop.f32.mrb[0].mxu0
      %1774 = vmatprep.mubr.bf16.mxu0 0
      %1775 = vmatmul.mubr.bf16.gmra.mrb[0].mxu0 %v1620
      %v1776 = vpop.f32.mrb[0].mxu0
      %v1777 = vadd.f32 0.0, %v1776
      %v1778 = vpop.f32.mrb[0].mxu0
      %v1779 = vpop.f32.mrb[0].mxu0
      %v1780 = vadd.f32 0.0, %v1779
      %v1781 = vpop.f32.mrb[0].mxu0
      %1782 = vdwg.mxu0
      %v1783 = vadd.f32 %v1551, %v1721
      %v1784 = vadd.f32 %v1554, %v1724
      %v1785 = vadd.f32 %v1559, %v1729
      %v1786 = vadd.f32 %v1562, %v1732
      %v1787 = vadd.f32 %v1567, %v1737
      %v1788 = vadd.f32 %v1570, %v1740
      %v1789 = vadd.f32 %v1575, %v1745
      %v1790 = vadd.f32 %v1578, %v1748
      %v1791 = vadd.f32 %v1583, %v1753
      %v1792 = vadd.f32 %v1586, %v1756
      %v1793 = vadd.f32 %v1591, %v1761
      %v1794 = vadd.f32 %v1594, %v1764
      %v1795 = vadd.f32 %v1599, %v1769
      %v1796 = vadd.f32 %v1602, %v1772
      %v1797 = vadd.f32 %v1607, %v1777
      %v1798 = vadd.f32 %v1610, %v1780
      %v1799 = vmax.f32 %v1783, 0.0
      %v1800 = vmax.f32 %v1784, 0.0
      %v1801 = vmax.f32 %v1785, 0.0
      %v1802 = vmax.f32 %v1786, 0.0
      %v1803 = vmax.f32 %v1787, 0.0
      %v1804 = vmax.f32 %v1788, 0.0
      %v1805 = vmax.f32 %v1789, 0.0
      %v1806 = vmax.f32 %v1790, 0.0
      %v1807 = vmax.f32 %v1791, 0.0
      %v1808 = vmax.f32 %v1792, 0.0
      %v1809 = vmax.f32 %v1793, 0.0
      %v1810 = vmax.f32 %v1794, 0.0
      %v1811 = vmax.f32 %v1795, 0.0
      %v1812 = vmax.f32 %v1796, 0.0
      %v1813 = vmax.f32 %v1797, 0.0
      %v1814 = vmax.f32 %v1798, 0.0
      %v1815 = vadd.f32 %v1799, %v1492
      %v1816 = vadd.f32 %v1800, %v1493
      %v1817 = vadd.f32 %v1801, %v1494
      %v1818 = vadd.f32 %v1802, %v1495
      %v1819 = vadd.f32 %v1803, %v1496
      %v1820 = vadd.f32 %v1804, %v1497
      %v1821 = vadd.f32 %v1805, %v1498
      %v1822 = vadd.f32 %v1806, %v1499
      %v1823 = vadd.f32 %v1807, %v1500
      %v1824 = vadd.f32 %v1808, %v1501
      %v1825 = vadd.f32 %v1809, %v1502
      %v1826 = vadd.f32 %v1810, %v1503
      %v1827 = vadd.f32 %v1811, %v1504
      %v1828 = vadd.f32 %v1812, %v1505
      %v1829 = vadd.f32 %v1813, %v1506
      %v1830 = vadd.f32 %v1814, %v1507
      %v1831 = vpack.c.bf16 %v1816, %v1815
      %v1832 = vpack.c.bf16 %v1818, %v1817
      %v1833 = vpack.c.bf16 %v1820, %v1819
      %v1834 = vpack.c.bf16 %v1822, %v1821
      %v1835 = vpack.c.bf16 %v1824, %v1823
      %v1836 = vpack.c.bf16 %v1826, %v1825
      %v1837 = vpack.c.bf16 %v1828, %v1827
      %v1838 = vpack.c.bf16 %v1830, %v1829
      %v1839 = vld [vmem:[%s530] sm:$0xf]
      %v1840 = vld [vmem:[%s530 + $0x4] sm:$0xf]
      %v1841 = vld [vmem:[%s530 + $0x8] sm:$0xf]
      %v1842 = vld [vmem:[%s530 + $0xc] sm:$0xf]
      %v1843 = vld [vmem:[%s530 + $0x10] sm:$0xf]
      %v1844 = vld [vmem:[%s530 + $0x14] sm:$0xf]
      %v1845 = vld [vmem:[%s530 + $0x18] sm:$0xf]
      %v1846 = vld [vmem:[%s530 + $0x1c] sm:$0xf]
      %v1847 = vld [vmem:[%s530 + $0x20] sm:$0xf]
      %v1848 = vld [vmem:[%s530 + $0x24] sm:$0xf]
      %v1849 = vld [vmem:[%s530 + $0x28] sm:$0xf]
      %v1850 = vld [vmem:[%s530 + $0x2c] sm:$0xf]
      %v1851 = vld [vmem:[%s530 + $0x30] sm:$0xf]
      %v1852 = vld [vmem:[%s530 + $0x34] sm:$0xf]
      %v1853 = vld [vmem:[%s530 + $0x38] sm:$0xf]
      %v1854 = vld [vmem:[%s530 + $0x3c] sm:$0xf]
      %v1855 = vld [vmem:[%s533] sm:$0x1]
      %v1857 = vlaneseq
      %v1858 = vshrl.u32 %v1857, 7
      %v1859 = vsub.s32 0, %v1858
      %v1860 = vrot.slane %v1855, %v1859
      %v1878 = vunpack.c.l.b16 %v1839
      %v1879 = vunpack.c.l.b16 %v1840
      %v1880 = vunpack.c.l.b16 %v1841
      %v1881 = vunpack.c.l.b16 %v1842
      %v1882 = vunpack.c.l.b16 %v1843
      %v1883 = vunpack.c.l.b16 %v1844
      %v1884 = vunpack.c.l.b16 %v1845
      %v1885 = vunpack.c.l.b16 %v1846
      %v1886 = vunpack.c.l.b16 %v1847
      %v1887 = vunpack.c.l.b16 %v1848
      %v1888 = vunpack.c.l.b16 %v1849
      %v1889 = vunpack.c.l.b16 %v1850
      %v1890 = vunpack.c.l.b16 %v1851
      %v1891 = vunpack.c.l.b16 %v1852
      %v1892 = vunpack.c.l.b16 %v1853
      %v1893 = vunpack.c.l.b16 %v1854
      %v1894 = vpack.c.b16 %v1879, %v1878
      %v1895 = vpack.c.b16 %v1881, %v1880
      %v1896 = vpack.c.b16 %v1883, %v1882
      %v1897 = vpack.c.b16 %v1885, %v1884
      %v1898 = vpack.c.b16 %v1887, %v1886
      %v1899 = vpack.c.b16 %v1889, %v1888
      %v1900 = vpack.c.b16 %v1891, %v1890
      %v1901 = vpack.c.b16 %v1893, %v1892
      %1910 = vmatprep.subr.bf16.mxu0 0
      %1911 = vmatpush1.bf16.msra.mxu0 %v1894
      %1912 = vmatprep.subr.bf16.mxu0 0
      %1913 = vmatpush1.bf16.msra.mxu0 %v1895
      %1914 = vmatprep.subr.bf16.mxu0 0
      %1915 = vmatpush1.bf16.msra.mxu0 %v1896
      %1916 = vmatprep.subr.bf16.mxu0 0
      %1917 = vmatpush1.bf16.msra.mxu0 %v1897
      %1918 = vmatprep.subr.bf16.mxu0 0
      %1919 = vmatpush1.bf16.msra.mxu0 %v1898
      %1920 = vmatprep.subr.bf16.mxu0 0
      %1921 = vmatpush1.bf16.msra.mxu0 %v1899
      %1922 = vmatprep.subr.bf16.mxu0 0
      %1923 = vmatpush1.bf16.msra.mxu0 %v1900
      %1924 = vmatprep.subr.bf16.mxu0 0
      %1925 = vmatpush1.bf16.msra.mxu0 %v1901
      %1926 = vmatprep.subr.bf16.mxu0 0
      %1927 = vmatpush1.bf16.msra.mxu0 0
      %1928 = vmatprep.subr.bf16.mxu0 0
      %1929 = vmatpush1.bf16.msra.mxu0 0
      %1930 = vmatprep.subr.bf16.mxu0 0
      %1931 = vmatpush1.bf16.msra.mxu0 0
      %1932 = vmatprep.subr.bf16.mxu0 0
      %1933 = vmatpush1.bf16.msra.mxu0 0
      %1934 = vmatprep.subr.bf16.mxu0 0
      %1935 = vmatpush1.bf16.msra.mxu0 0
      %1936 = vmatprep.subr.bf16.mxu0 0
      %1937 = vmatpush1.bf16.msra.mxu0 0
      %1938 = vmatprep.subr.bf16.mxu0 0
      %1939 = vmatpush1.bf16.msra.mxu0 0
      %1940 = vmatprep.subr.bf16.mxu0 0
      %1941 = vmatpush1.bf16.msra.mxu0 0
      %1942 = vmatprep.mubr.bf16.mxu0 0
      %1943 = vmatmul.mubr.bf16.gmra.mrb[0].mxu0 %v1831
      %v1944 = vpop.f32.mrb[0].mxu0
      %v1945 = vadd.f32 %v1860, %v1944
      %v1946 = vpop.f32.mrb[0].mxu0
      %v1947 = vpop.f32.mrb[0].mxu0
      %v1948 = vadd.f32 %v1860, %v1947
      %v1949 = vpop.f32.mrb[0].mxu0
      %1950 = vmatprep.mubr.bf16.mxu0 0
      %1951 = vmatmul.mubr.bf16.gmra.mrb[0].mxu0 %v1832
      %v1952 = vpop.f32.mrb[0].mxu0
      %v1953 = vadd.f32 %v1860, %v1952
      %v1954 = vpop.f32.mrb[0].mxu0
      %v1955 = vpop.f32.mrb[0].mxu0
      %v1956 = vadd.f32 %v1860, %v1955
      %v1957 = vpop.f32.mrb[0].mxu0
      %1958 = vmatprep.mubr.bf16.mxu0 0
      %1959 = vmatmul.mubr.bf16.gmra.mrb[0].mxu0 %v1833
      %v1960 = vpop.f32.mrb[0].mxu0
      %v1961 = vadd.f32 %v1860, %v1960
      %v1962 = vpop.f32.mrb[0].mxu0
      %v1963 = vpop.f32.mrb[0].mxu0
      %v1964 = vadd.f32 %v1860, %v1963
      %v1965 = vpop.f32.mrb[0].mxu0
      %1966 = vmatprep.mubr.bf16.mxu0 0
      %1967 = vmatmul.mubr.bf16.gmra.mrb[0].mxu0 %v1834
      %v1968 = vpop.f32.mrb[0].mxu0
      %v1969 = vadd.f32 %v1860, %v1968
      %v1970 = vpop.f32.mrb[0].mxu0
      %v1971 = vpop.f32.mrb[0].mxu0
      %v1972 = vadd.f32 %v1860, %v1971
      %v1973 = vpop.f32.mrb[0].mxu0
      %1974 = vmatprep.mubr.bf16.mxu0 0
      %1975 = vmatmul.mubr.bf16.gmra.mrb[0].mxu0 %v1835
      %v1976 = vpop.f32.mrb[0].mxu0
      %v1977 = vadd.f32 %v1860, %v1976
      %v1978 = vpop.f32.mrb[0].mxu0
      %v1979 = vpop.f32.mrb[0].mxu0
      %v1980 = vadd.f32 %v1860, %v1979
      %v1981 = vpop.f32.mrb[0].mxu0
      %1982 = vmatprep.mubr.bf16.mxu0 0
      %1983 = vmatmul.mubr.bf16.gmra.mrb[0].mxu0 %v1836
      %v1984 = vpop.f32.mrb[0].mxu0
      %v1985 = vadd.f32 %v1860, %v1984
      %v1986 = vpop.f32.mrb[0].mxu0
      %v1987 = vpop.f32.mrb[0].mxu0
      %v1988 = vadd.f32 %v1860, %v1987
      %v1989 = vpop.f32.mrb[0].mxu0
      %1990 = vmatprep.mubr.bf16.mxu0 0
      %1991 = vmatmul.mubr.bf16.gmra.mrb[0].mxu0 %v1837
      %v1992 = vpop.f32.mrb[0].mxu0
      %v1993 = vadd.f32 %v1860, %v1992
      %v1994 = vpop.f32.mrb[0].mxu0
      %v1995 = vpop.f32.mrb[0].mxu0
      %v1996 = vadd.f32 %v1860, %v1995
      %v1997 = vpop.f32.mrb[0].mxu0
      %1998 = vmatprep.mubr.bf16.mxu0 0
      %1999 = vmatmul.mubr.bf16.gmra.mrb[0].mxu0 %v1838
      %v2000 = vpop.f32.mrb[0].mxu0
      %v2001 = vadd.f32 %v1860, %v2000
      %v2002 = vpop.f32.mrb[0].mxu0
      %v2003 = vpop.f32.mrb[0].mxu0
      %v2004 = vadd.f32 %v1860, %v2003
      %v2005 = vpop.f32.mrb[0].mxu0
      %2006 = vdwg.mxu0
      %s2007 = smul.u32 %s24, 128
      %s2008 = scalar_lea.vmem [#allocation2], %s2007
      %2009 = vst [vmem:[%s2008] sm:$0xff] %v1945
      %2010 = vst [vmem:[%s2008 + $0x8] sm:$0xff] %v1948
      %2011 = vst [vmem:[%s2008 + $0x10] sm:$0xff] %v1953
      %2012 = vst [vmem:[%s2008 + $0x18] sm:$0xff] %v1956
      %2013 = vst [vmem:[%s2008 + $0x20] sm:$0xff] %v1961
      %2014 = vst [vmem:[%s2008 + $0x28] sm:$0xff] %v1964
      %2015 = vst [vmem:[%s2008 + $0x30] sm:$0xff] %v1969
      %2016 = vst [vmem:[%s2008 + $0x38] sm:$0xff] %v1972
      %2017 = vst [vmem:[%s2008 + $0x40] sm:$0xff] %v1977
      %2018 = vst [vmem:[%s2008 + $0x48] sm:$0xff] %v1980
      %2019 = vst [vmem:[%s2008 + $0x50] sm:$0xff] %v1985
      %2020 = vst [vmem:[%s2008 + $0x58] sm:$0xff] %v1988
      %2021 = vst [vmem:[%s2008 + $0x60] sm:$0xff] %v1993
      %2022 = vst [vmem:[%s2008 + $0x68] sm:$0xff] %v1996
      %2023 = vst [vmem:[%s2008 + $0x70] sm:$0xff] %v2001
      %2024 = vst [vmem:[%s2008 + $0x78] sm:$0xff] %v2004
      %p2025 = scmp.eq.s32.totalorder %s24, 1
      // Predicated region
      $region73: #{gcnii_dense_model.1} parent=71 // pred_check
        %p2026 = pneg %p2025
      $region74: #{gcnii_dense_model.1} parent=71 // pred_check_branch
        %2028 = sbr.rel (%p2026) target = $region76
      $region75: #{gcnii_dense_model.1} parent=71 // pred_region
        %v2029 = vld [vmem:[#allocation2] sm:$0xff]
        %v2030 = vld [vmem:[#allocation2 + $0x8] sm:$0xff]
        %v2031 = vld [vmem:[#allocation2 + $0x10] sm:$0xff]
        %v2032 = vld [vmem:[#allocation2 + $0x18] sm:$0xff]
        %v2033 = vld [vmem:[#allocation2 + $0x20] sm:$0xff]
        %v2034 = vld [vmem:[#allocation2 + $0x28] sm:$0xff]
        %v2035 = vld [vmem:[#allocation2 + $0x30] sm:$0xff]
        %v2036 = vld [vmem:[#allocation2 + $0x38] sm:$0xff]
        %v2037 = vld [vmem:[#allocation2 + $0x40] sm:$0xff]
        %v2038 = vld [vmem:[#allocation2 + $0x48] sm:$0xff]
        %v2039 = vld [vmem:[#allocation2 + $0x50] sm:$0xff]
        %v2040 = vld [vmem:[#allocation2 + $0x58] sm:$0xff]
        %v2041 = vld [vmem:[#allocation2 + $0x60] sm:$0xff]
        %v2042 = vld [vmem:[#allocation2 + $0x68] sm:$0xff]
        %v2043 = vld [vmem:[#allocation2 + $0x70] sm:$0xff]
        %v2044 = vld [vmem:[#allocation2 + $0x78] sm:$0xff]
        %v2045 = vpack.c.bf16 %v2030, %v2029
        %v2046 = vpack.c.bf16 %v2032, %v2031
        %v2047 = vpack.c.bf16 %v2034, %v2033
        %v2048 = vpack.c.bf16 %v2036, %v2035
        %v2049 = vpack.c.bf16 %v2038, %v2037
        %v2050 = vpack.c.bf16 %v2040, %v2039
        %v2051 = vpack.c.bf16 %v2042, %v2041
        %v2052 = vpack.c.bf16 %v2044, %v2043
        %s2053 = scalar_lea.vmem [#allocation2], 128
        %v2054 = vld [vmem:[%s2053] sm:$0xff]
        %v2055 = vld [vmem:[%s2053 + $0x8] sm:$0xff]
        %v2056 = vld [vmem:[%s2053 + $0x10] sm:$0xff]
        %v2057 = vld [vmem:[%s2053 + $0x18] sm:$0xff]
        %v2058 = vld [vmem:[%s2053 + $0x20] sm:$0xff]
        %v2059 = vld [vmem:[%s2053 + $0x28] sm:$0xff]
        %v2060 = vld [vmem:[%s2053 + $0x30] sm:$0xff]
        %v2061 = vld [vmem:[%s2053 + $0x38] sm:$0xff]
        %v2062 = vld [vmem:[%s2053 + $0x40] sm:$0xff]
        %v2063 = vld [vmem:[%s2053 + $0x48] sm:$0xff]
        %v2064 = vld [vmem:[%s2053 + $0x50] sm:$0xff]
        %v2065 = vld [vmem:[%s2053 + $0x58] sm:$0xff]
        %v2066 = vld [vmem:[%s2053 + $0x60] sm:$0xff]
        %v2067 = vld [vmem:[%s2053 + $0x68] sm:$0xff]
        %v2068 = vld [vmem:[%s2053 + $0x70] sm:$0xff]
        %v2069 = vld [vmem:[%s2053 + $0x78] sm:$0xff]
        %v2070 = vpack.c.bf16 %v2055, %v2054
        %v2071 = vpack.c.bf16 %v2057, %v2056
        %v2072 = vpack.c.bf16 %v2059, %v2058
        %v2073 = vpack.c.bf16 %v2061, %v2060
        %v2074 = vpack.c.bf16 %v2063, %v2062
        %v2075 = vpack.c.bf16 %v2065, %v2064
        %v2076 = vpack.c.bf16 %v2067, %v2066
        %v2077 = vpack.c.bf16 %v2069, %v2068
        %v2078 = vld [vmem:[%s7] sm:$0xf]
        %v2079 = vld [vmem:[%s7 + $0x4] sm:$0xf]
        %v2080 = vld [vmem:[%s7 + $0x8] sm:$0xf]
        %v2081 = vld [vmem:[%s7 + $0xc] sm:$0xf]
        %v2082 = vld [vmem:[%s7 + $0x10] sm:$0xf]
        %v2083 = vld [vmem:[%s7 + $0x14] sm:$0xf]
        %v2084 = vld [vmem:[%s7 + $0x18] sm:$0xf]
        %v2085 = vld [vmem:[%s7 + $0x1c] sm:$0xf]
        %v2086 = vld [vmem:[%s7 + $0x20] sm:$0xf]
        %v2087 = vld [vmem:[%s7 + $0x24] sm:$0xf]
        %v2088 = vld [vmem:[%s7 + $0x28] sm:$0xf]
        %v2089 = vld [vmem:[%s7 + $0x2c] sm:$0xf]
        %v2090 = vld [vmem:[%s7 + $0x30] sm:$0xf]
        %v2091 = vld [vmem:[%s7 + $0x34] sm:$0xf]
        %v2092 = vld [vmem:[%s7 + $0x38] sm:$0xf]
        %v2093 = vld [vmem:[%s7 + $0x3c] sm:$0xf]
        %s2094 = scalar_lea.vmem %s7, 64
        %v2095 = vld [vmem:[%s2094] sm:$0xf]
        %v2096 = vld [vmem:[%s2094 + $0x4] sm:$0xf]
        %v2097 = vld [vmem:[%s2094 + $0x8] sm:$0xf]
        %v2098 = vld [vmem:[%s2094 + $0xc] sm:$0xf]
        %v2099 = vld [vmem:[%s2094 + $0x10] sm:$0xf]
        %v2100 = vld [vmem:[%s2094 + $0x14] sm:$0xf]
        %v2101 = vld [vmem:[%s2094 + $0x18] sm:$0xf]
        %v2102 = vld [vmem:[%s2094 + $0x1c] sm:$0xf]
        %v2103 = vld [vmem:[%s2094 + $0x20] sm:$0xf]
        %v2104 = vld [vmem:[%s2094 + $0x24] sm:$0xf]
        %v2105 = vld [vmem:[%s2094 + $0x28] sm:$0xf]
        %v2106 = vld [vmem:[%s2094 + $0x2c] sm:$0xf]
        %v2107 = vld [vmem:[%s2094 + $0x30] sm:$0xf]
        %v2108 = vld [vmem:[%s2094 + $0x34] sm:$0xf]
        %v2109 = vld [vmem:[%s2094 + $0x38] sm:$0xf]
        %v2110 = vld [vmem:[%s2094 + $0x3c] sm:$0xf]
        %v2127 = vunpack.c.l.b16 %v2095
        %v2128 = vunpack.c.l.b16 %v2096
        %v2129 = vunpack.c.l.b16 %v2097
        %v2130 = vunpack.c.l.b16 %v2098
        %v2131 = vunpack.c.l.b16 %v2099
        %v2132 = vunpack.c.l.b16 %v2100
        %v2133 = vunpack.c.l.b16 %v2101
        %v2134 = vunpack.c.l.b16 %v2102
        %v2135 = vunpack.c.l.b16 %v2103
        %v2136 = vunpack.c.l.b16 %v2104
        %v2137 = vunpack.c.l.b16 %v2105
        %v2138 = vunpack.c.l.b16 %v2106
        %v2139 = vunpack.c.l.b16 %v2107
        %v2140 = vunpack.c.l.b16 %v2108
        %v2141 = vunpack.c.l.b16 %v2109
        %v2142 = vunpack.c.l.b16 %v2110
        %v2143 = vpack.c.b16 %v2128, %v2127
        %v2144 = vpack.c.b16 %v2130, %v2129
        %v2145 = vpack.c.b16 %v2132, %v2131
        %v2146 = vpack.c.b16 %v2134, %v2133
        %v2147 = vpack.c.b16 %v2136, %v2135
        %v2148 = vpack.c.b16 %v2138, %v2137
        %v2149 = vpack.c.b16 %v2140, %v2139
        %v2150 = vpack.c.b16 %v2142, %v2141
        %2159 = vmatprep.subr.bf16.mxu0 0
        %2160 = vmatpush1.bf16.msra.mxu0 %v2143
        %2161 = vmatprep.subr.bf16.mxu0 0
        %2162 = vmatpush1.bf16.msra.mxu0 %v2144
        %2163 = vmatprep.subr.bf16.mxu0 0
        %2164 = vmatpush1.bf16.msra.mxu0 %v2145
        %2165 = vmatprep.subr.bf16.mxu0 0
        %2166 = vmatpush1.bf16.msra.mxu0 %v2146
        %2167 = vmatprep.subr.bf16.mxu0 0
        %2168 = vmatpush1.bf16.msra.mxu0 %v2147
        %2169 = vmatprep.subr.bf16.mxu0 0
        %2170 = vmatpush1.bf16.msra.mxu0 %v2148
        %2171 = vmatprep.subr.bf16.mxu0 0
        %2172 = vmatpush1.bf16.msra.mxu0 %v2149
        %2173 = vmatprep.subr.bf16.mxu0 0
        %2174 = vmatpush1.bf16.msra.mxu0 %v2150
        %2175 = vmatprep.subr.bf16.mxu0 0
        %2176 = vmatpush1.bf16.msra.mxu0 0
        %2177 = vmatprep.subr.bf16.mxu0 0
        %2178 = vmatpush1.bf16.msra.mxu0 0
        %2179 = vmatprep.subr.bf16.mxu0 0
        %2180 = vmatpush1.bf16.msra.mxu0 0
        %2181 = vmatprep.subr.bf16.mxu0 0
        %2182 = vmatpush1.bf16.msra.mxu0 0
        %2183 = vmatprep.subr.bf16.mxu0 0
        %2184 = vmatpush1.bf16.msra.mxu0 0
        %2185 = vmatprep.subr.bf16.mxu0 0
        %2186 = vmatpush1.bf16.msra.mxu0 0
        %2187 = vmatprep.subr.bf16.mxu0 0
        %2188 = vmatpush1.bf16.msra.mxu0 0
        %2189 = vmatprep.subr.bf16.mxu0 0
        %2190 = vmatpush1.bf16.msra.mxu0 0
        %2191 = vmatprep.mubr.bf16.mxu0 0
        %2192 = vmatmul.mubr.bf16.gmra.mrb[0].mxu0 %v2070
        %v2193 = vpop.f32.mrb[0].mxu0
        %v2194 = vadd.f32 0.0, %v2193
        %v2195 = vpop.f32.mrb[0].mxu0
        %v2196 = vpop.f32.mrb[0].mxu0
        %v2197 = vadd.f32 0.0, %v2196
        %v2198 = vpop.f32.mrb[0].mxu0
        %2199 = vmatprep.mubr.bf16.mxu0 0
        %2200 = vmatmul.mubr.bf16.gmra.mrb[0].mxu0 %v2071
        %v2201 = vpop.f32.mrb[0].mxu0
        %v2202 = vadd.f32 0.0, %v2201
        %v2203 = vpop.f32.mrb[0].mxu0
        %v2204 = vpop.f32.mrb[0].mxu0
        %v2205 = vadd.f32 0.0, %v2204
        %v2206 = vpop.f32.mrb[0].mxu0
        %2207 = vmatprep.mubr.bf16.mxu0 0
        %2208 = vmatmul.mubr.bf16.gmra.mrb[0].mxu0 %v2072
        %v2209 = vpop.f32.mrb[0].mxu0
        %v2210 = vadd.f32 0.0, %v2209
        %v2211 = vpop.f32.mrb[0].mxu0
        %v2212 = vpop.f32.mrb[0].mxu0
        %v2213 = vadd.f32 0.0, %v2212
        %v2214 = vpop.f32.mrb[0].mxu0
        %2215 = vmatprep.mubr.bf16.mxu0 0
        %2216 = vmatmul.mubr.bf16.gmra.mrb[0].mxu0 %v2073
        %v2217 = vpop.f32.mrb[0].mxu0
        %v2218 = vadd.f32 0.0, %v2217
        %v2219 = vpop.f32.mrb[0].mxu0
        %v2220 = vpop.f32.mrb[0].mxu0
        %v2221 = vadd.f32 0.0, %v2220
        %v2222 = vpop.f32.mrb[0].mxu0
        %2223 = vmatprep.mubr.bf16.mxu0 0
        %2224 = vmatmul.mubr.bf16.gmra.mrb[0].mxu0 %v2074
        %v2225 = vpop.f32.mrb[0].mxu0
        %v2226 = vadd.f32 0.0, %v2225
        %v2227 = vpop.f32.mrb[0].mxu0
        %v2228 = vpop.f32.mrb[0].mxu0
        %v2229 = vadd.f32 0.0, %v2228
        %v2230 = vpop.f32.mrb[0].mxu0
        %2231 = vmatprep.mubr.bf16.mxu0 0
        %2232 = vmatmul.mubr.bf16.gmra.mrb[0].mxu0 %v2075
        %v2233 = vpop.f32.mrb[0].mxu0
        %v2234 = vadd.f32 0.0, %v2233
        %v2235 = vpop.f32.mrb[0].mxu0
        %v2236 = vpop.f32.mrb[0].mxu0
        %v2237 = vadd.f32 0.0, %v2236
        %v2238 = vpop.f32.mrb[0].mxu0
        %2239 = vmatprep.mubr.bf16.mxu0 0
        %2240 = vmatmul.mubr.bf16.gmra.mrb[0].mxu0 %v2076
        %v2241 = vpop.f32.mrb[0].mxu0
        %v2242 = vadd.f32 0.0, %v2241
        %v2243 = vpop.f32.mrb[0].mxu0
        %v2244 = vpop.f32.mrb[0].mxu0
        %v2245 = vadd.f32 0.0, %v2244
        %v2246 = vpop.f32.mrb[0].mxu0
        %2247 = vmatprep.mubr.bf16.mxu0 0
        %2248 = vmatmul.mubr.bf16.gmra.mrb[0].mxu0 %v2077
        %v2249 = vpop.f32.mrb[0].mxu0
        %v2250 = vadd.f32 0.0, %v2249
        %v2251 = vpop.f32.mrb[0].mxu0
        %v2252 = vpop.f32.mrb[0].mxu0
        %v2253 = vadd.f32 0.0, %v2252
        %v2254 = vpop.f32.mrb[0].mxu0
        %2255 = vdwg.mxu0
        %v2272 = vunpack.c.l.b16 %v2078
        %v2273 = vunpack.c.l.b16 %v2079
        %v2274 = vunpack.c.l.b16 %v2080
        %v2275 = vunpack.c.l.b16 %v2081
        %v2276 = vunpack.c.l.b16 %v2082
        %v2277 = vunpack.c.l.b16 %v2083
        %v2278 = vunpack.c.l.b16 %v2084
        %v2279 = vunpack.c.l.b16 %v2085
        %v2280 = vunpack.c.l.b16 %v2086
        %v2281 = vunpack.c.l.b16 %v2087
        %v2282 = vunpack.c.l.b16 %v2088
        %v2283 = vunpack.c.l.b16 %v2089
        %v2284 = vunpack.c.l.b16 %v2090
        %v2285 = vunpack.c.l.b16 %v2091
        %v2286 = vunpack.c.l.b16 %v2092
        %v2287 = vunpack.c.l.b16 %v2093
        %v2288 = vpack.c.b16 %v2273, %v2272
        %v2289 = vpack.c.b16 %v2275, %v2274
        %v2290 = vpack.c.b16 %v2277, %v2276
        %v2291 = vpack.c.b16 %v2279, %v2278
        %v2292 = vpack.c.b16 %v2281, %v2280
        %v2293 = vpack.c.b16 %v2283, %v2282
        %v2294 = vpack.c.b16 %v2285, %v2284
        %v2295 = vpack.c.b16 %v2287, %v2286
        %2304 = vmatprep.subr.bf16.mxu0 0
        %2305 = vmatpush1.bf16.msra.mxu0 %v2288
        %2306 = vmatprep.subr.bf16.mxu0 0
        %2307 = vmatpush1.bf16.msra.mxu0 %v2289
        %2308 = vmatprep.subr.bf16.mxu0 0
        %2309 = vmatpush1.bf16.msra.mxu0 %v2290
        %2310 = vmatprep.subr.bf16.mxu0 0
        %2311 = vmatpush1.bf16.msra.mxu0 %v2291
        %2312 = vmatprep.subr.bf16.mxu0 0
        %2313 = vmatpush1.bf16.msra.mxu0 %v2292
        %2314 = vmatprep.subr.bf16.mxu0 0
        %2315 = vmatpush1.bf16.msra.mxu0 %v2293
        %2316 = vmatprep.subr.bf16.mxu0 0
        %2317 = vmatpush1.bf16.msra.mxu0 %v2294
        %2318 = vmatprep.subr.bf16.mxu0 0
        %2319 = vmatpush1.bf16.msra.mxu0 %v2295
        %2320 = vmatprep.subr.bf16.mxu0 0
        %2321 = vmatpush1.bf16.msra.mxu0 0
        %2322 = vmatprep.subr.bf16.mxu0 0
        %2323 = vmatpush1.bf16.msra.mxu0 0
        %2324 = vmatprep.subr.bf16.mxu0 0
        %2325 = vmatpush1.bf16.msra.mxu0 0
        %2326 = vmatprep.subr.bf16.mxu0 0
        %2327 = vmatpush1.bf16.msra.mxu0 0
        %2328 = vmatprep.subr.bf16.mxu0 0
        %2329 = vmatpush1.bf16.msra.mxu0 0
        %2330 = vmatprep.subr.bf16.mxu0 0
        %2331 = vmatpush1.bf16.msra.mxu0 0
        %2332 = vmatprep.subr.bf16.mxu0 0
        %2333 = vmatpush1.bf16.msra.mxu0 0
        %2334 = vmatprep.subr.bf16.mxu0 0
        %2335 = vmatpush1.bf16.msra.mxu0 0
        %2336 = vmatprep.mubr.bf16.mxu0 0
        %2337 = vmatmul.mubr.bf16.gmra.mrb[0].mxu0 %v2045
        %v2338 = vpop.f32.mrb[0].mxu0
        %v2339 = vadd.f32 %v2194, %v2338
        %v2340 = vpop.f32.mrb[0].mxu0
        %v2341 = vpop.f32.mrb[0].mxu0
        %v2342 = vadd.f32 %v2197, %v2341
        %v2343 = vpop.f32.mrb[0].mxu0
        %2344 = vmatprep.mubr.bf16.mxu0 0
        %2345 = vmatmul.mubr.bf16.gmra.mrb[0].mxu0 %v2046
        %v2346 = vpop.f32.mrb[0].mxu0
        %v2347 = vadd.f32 %v2202, %v2346
        %v2348 = vpop.f32.mrb[0].mxu0
        %v2349 = vpop.f32.mrb[0].mxu0
        %v2350 = vadd.f32 %v2205, %v2349
        %v2351 = vpop.f32.mrb[0].mxu0
        %2352 = vmatprep.mubr.bf16.mxu0 0
        %2353 = vmatmul.mubr.bf16.gmra.mrb[0].mxu0 %v2047
        %v2354 = vpop.f32.mrb[0].mxu0
        %v2355 = vadd.f32 %v2210, %v2354
        %v2356 = vpop.f32.mrb[0].mxu0
        %v2357 = vpop.f32.mrb[0].mxu0
        %v2358 = vadd.f32 %v2213, %v2357
        %v2359 = vpop.f32.mrb[0].mxu0
        %2360 = vmatprep.mubr.bf16.mxu0 0
        %2361 = vmatmul.mubr.bf16.gmra.mrb[0].mxu0 %v2048
        %v2362 = vpop.f32.mrb[0].mxu0
        %v2363 = vadd.f32 %v2218, %v2362
        %v2364 = vpop.f32.mrb[0].mxu0
        %v2365 = vpop.f32.mrb[0].mxu0
        %v2366 = vadd.f32 %v2221, %v2365
        %v2367 = vpop.f32.mrb[0].mxu0
        %2368 = vmatprep.mubr.bf16.mxu0 0
        %2369 = vmatmul.mubr.bf16.gmra.mrb[0].mxu0 %v2049
        %v2370 = vpop.f32.mrb[0].mxu0
        %v2371 = vadd.f32 %v2226, %v2370
        %v2372 = vpop.f32.mrb[0].mxu0
        %v2373 = vpop.f32.mrb[0].mxu0
        %v2374 = vadd.f32 %v2229, %v2373
        %v2375 = vpop.f32.mrb[0].mxu0
        %2376 = vmatprep.mubr.bf16.mxu0 0
        %2377 = vmatmul.mubr.bf16.gmra.mrb[0].mxu0 %v2050
        %v2378 = vpop.f32.mrb[0].mxu0
        %v2379 = vadd.f32 %v2234, %v2378
        %v2380 = vpop.f32.mrb[0].mxu0
        %v2381 = vpop.f32.mrb[0].mxu0
        %v2382 = vadd.f32 %v2237, %v2381
        %v2383 = vpop.f32.mrb[0].mxu0
        %2384 = vmatprep.mubr.bf16.mxu0 0
        %2385 = vmatmul.mubr.bf16.gmra.mrb[0].mxu0 %v2051
        %v2386 = vpop.f32.mrb[0].mxu0
        %v2387 = vadd.f32 %v2242, %v2386
        %v2388 = vpop.f32.mrb[0].mxu0
        %v2389 = vpop.f32.mrb[0].mxu0
        %v2390 = vadd.f32 %v2245, %v2389
        %v2391 = vpop.f32.mrb[0].mxu0
        %2392 = vmatprep.mubr.bf16.mxu0 0
        %2393 = vmatmul.mubr.bf16.gmra.mrb[0].mxu0 %v2052
        %v2394 = vpop.f32.mrb[0].mxu0
        %v2395 = vadd.f32 %v2250, %v2394
        %v2396 = vpop.f32.mrb[0].mxu0
        %v2397 = vpop.f32.mrb[0].mxu0
        %v2398 = vadd.f32 %v2253, %v2397
        %v2399 = vpop.f32.mrb[0].mxu0
        %2400 = vdwg.mxu0
        %v2401 = vld [vmem:[%s8] sm:$0x1]
        %v2403 = vlaneseq
        %v2404 = vshrl.u32 %v2403, 7
        %v2405 = vsub.s32 0, %v2404
        %v2406 = vrot.slane %v2401, %v2405
        %v2408 = vadd.f32 %v2339, %v2406
        %v2409 = vadd.f32 %v2342, %v2406
        %v2410 = vadd.f32 %v2347, %v2406
        %v2411 = vadd.f32 %v2350, %v2406
        %v2412 = vadd.f32 %v2355, %v2406
        %v2413 = vadd.f32 %v2358, %v2406
        %v2414 = vadd.f32 %v2363, %v2406
        %v2415 = vadd.f32 %v2366, %v2406
        %v2416 = vadd.f32 %v2371, %v2406
        %v2417 = vadd.f32 %v2374, %v2406
        %v2418 = vadd.f32 %v2379, %v2406
        %v2419 = vadd.f32 %v2382, %v2406
        %v2420 = vadd.f32 %v2387, %v2406
        %v2421 = vadd.f32 %v2390, %v2406
        %v2422 = vadd.f32 %v2395, %v2406
        %v2423 = vadd.f32 %v2398, %v2406
        %v2424 = vmax.f32 %v2408, 0.0
        %v2425 = vmax.f32 %v2409, 0.0
        %v2426 = vmax.f32 %v2410, 0.0
        %v2427 = vmax.f32 %v2411, 0.0
        %v2428 = vmax.f32 %v2412, 0.0
        %v2429 = vmax.f32 %v2413, 0.0
        %v2430 = vmax.f32 %v2414, 0.0
        %v2431 = vmax.f32 %v2415, 0.0
        %v2432 = vmax.f32 %v2416, 0.0
        %v2433 = vmax.f32 %v2417, 0.0
        %v2434 = vmax.f32 %v2418, 0.0
        %v2435 = vmax.f32 %v2419, 0.0
        %v2436 = vmax.f32 %v2420, 0.0
        %v2437 = vmax.f32 %v2421, 0.0
        %v2438 = vmax.f32 %v2422, 0.0
        %v2439 = vmax.f32 %v2423, 0.0
        %v2440 = vpack.c.bf16 %v2425, %v2424
        %v2441 = vpack.c.bf16 %v2427, %v2426
        %v2442 = vpack.c.bf16 %v2429, %v2428
        %v2443 = vpack.c.bf16 %v2431, %v2430
        %v2444 = vpack.c.bf16 %v2433, %v2432
        %v2445 = vpack.c.bf16 %v2435, %v2434
        %v2446 = vpack.c.bf16 %v2437, %v2436
        %v2447 = vpack.c.bf16 %v2439, %v2438
        %v2448 = vld [vmem:[%s9] sm:$0xf]
        %v2449 = vld [vmem:[%s9 + $0x4] sm:$0xf]
        %v2450 = vld [vmem:[%s9 + $0x8] sm:$0xf]
        %v2451 = vld [vmem:[%s9 + $0xc] sm:$0xf]
        %v2452 = vld [vmem:[%s9 + $0x10] sm:$0xf]
        %v2453 = vld [vmem:[%s9 + $0x14] sm:$0xf]
        %v2454 = vld [vmem:[%s9 + $0x18] sm:$0xf]
        %v2455 = vld [vmem:[%s9 + $0x1c] sm:$0xf]
        %v2456 = vld [vmem:[%s9 + $0x20] sm:$0xf]
        %v2457 = vld [vmem:[%s9 + $0x24] sm:$0xf]
        %v2458 = vld [vmem:[%s9 + $0x28] sm:$0xf]
        %v2459 = vld [vmem:[%s9 + $0x2c] sm:$0xf]
        %v2460 = vld [vmem:[%s9 + $0x30] sm:$0xf]
        %v2461 = vld [vmem:[%s9 + $0x34] sm:$0xf]
        %v2462 = vld [vmem:[%s9 + $0x38] sm:$0xf]
        %v2463 = vld [vmem:[%s9 + $0x3c] sm:$0xf]
        %v2464 = vld [vmem:[%s10] sm:$0x1]
        %v2466 = vlaneseq
        %v2467 = vshrl.u32 %v2466, 7
        %v2468 = vsub.s32 0, %v2467
        %v2469 = vrot.slane %v2464, %v2468
        %v2487 = vunpack.c.l.b16 %v2448
        %v2488 = vunpack.c.l.b16 %v2449
        %v2489 = vunpack.c.l.b16 %v2450
        %v2490 = vunpack.c.l.b16 %v2451
        %v2491 = vunpack.c.l.b16 %v2452
        %v2492 = vunpack.c.l.b16 %v2453
        %v2493 = vunpack.c.l.b16 %v2454
        %v2494 = vunpack.c.l.b16 %v2455
        %v2495 = vunpack.c.l.b16 %v2456
        %v2496 = vunpack.c.l.b16 %v2457
        %v2497 = vunpack.c.l.b16 %v2458
        %v2498 = vunpack.c.l.b16 %v2459
        %v2499 = vunpack.c.l.b16 %v2460
        %v2500 = vunpack.c.l.b16 %v2461
        %v2501 = vunpack.c.l.b16 %v2462
        %v2502 = vunpack.c.l.b16 %v2463
        %v2503 = vpack.c.b16 %v2488, %v2487
        %v2504 = vpack.c.b16 %v2490, %v2489
        %v2505 = vpack.c.b16 %v2492, %v2491
        %v2506 = vpack.c.b16 %v2494, %v2493
        %v2507 = vpack.c.b16 %v2496, %v2495
        %v2508 = vpack.c.b16 %v2498, %v2497
        %v2509 = vpack.c.b16 %v2500, %v2499
        %v2510 = vpack.c.b16 %v2502, %v2501
        %2519 = vmatprep.subr.bf16.mxu0 0
        %2520 = vmatpush1.bf16.msra.mxu0 %v2503
        %2521 = vmatprep.subr.bf16.mxu0 0
        %2522 = vmatpush1.bf16.msra.mxu0 %v2504
        %2523 = vmatprep.subr.bf16.mxu0 0
        %2524 = vmatpush1.bf16.msra.mxu0 %v2505
        %2525 = vmatprep.subr.bf16.mxu0 0
        %2526 = vmatpush1.bf16.msra.mxu0 %v2506
        %2527 = vmatprep.subr.bf16.mxu0 0
        %2528 = vmatpush1.bf16.msra.mxu0 %v2507
        %2529 = vmatprep.subr.bf16.mxu0 0
        %2530 = vmatpush1.bf16.msra.mxu0 %v2508
        %2531 = vmatprep.subr.bf16.mxu0 0
        %2532 = vmatpush1.bf16.msra.mxu0 %v2509
        %2533 = vmatprep.subr.bf16.mxu0 0
        %2534 = vmatpush1.bf16.msra.mxu0 %v2510
        %2535 = vmatprep.subr.bf16.mxu0 0
        %2536 = vmatpush1.bf16.msra.mxu0 0
        %2537 = vmatprep.subr.bf16.mxu0 0
        %2538 = vmatpush1.bf16.msra.mxu0 0
        %2539 = vmatprep.subr.bf16.mxu0 0
        %2540 = vmatpush1.bf16.msra.mxu0 0
        %2541 = vmatprep.subr.bf16.mxu0 0
        %2542 = vmatpush1.bf16.msra.mxu0 0
        %2543 = vmatprep.subr.bf16.mxu0 0
        %2544 = vmatpush1.bf16.msra.mxu0 0
        %2545 = vmatprep.subr.bf16.mxu0 0
        %2546 = vmatpush1.bf16.msra.mxu0 0
        %2547 = vmatprep.subr.bf16.mxu0 0
        %2548 = vmatpush1.bf16.msra.mxu0 0
        %2549 = vmatprep.subr.bf16.mxu0 0
        %2550 = vmatpush1.bf16.msra.mxu0 0
        %2551 = vmatprep.mubr.bf16.mxu0 0
        %2552 = vmatmul.mubr.bf16.gmra.mrb[0].mxu0 %v2440
        %v2553 = vpop.f32.mrb[0].mxu0
        %v2554 = vadd.f32 %v2469, %v2553
        %v2555 = vpop.f32.mrb[0].mxu0
        %v2556 = vpop.f32.mrb[0].mxu0
        %v2557 = vadd.f32 %v2469, %v2556
        %v2558 = vpop.f32.mrb[0].mxu0
        %2559 = vmatprep.mubr.bf16.mxu0 0
        %2560 = vmatmul.mubr.bf16.gmra.mrb[0].mxu0 %v2441
        %v2561 = vpop.f32.mrb[0].mxu0
        %v2562 = vadd.f32 %v2469, %v2561
        %v2563 = vpop.f32.mrb[0].mxu0
        %v2564 = vpop.f32.mrb[0].mxu0
        %v2565 = vadd.f32 %v2469, %v2564
        %v2566 = vpop.f32.mrb[0].mxu0
        %2567 = vmatprep.mubr.bf16.mxu0 0
        %2568 = vmatmul.mubr.bf16.gmra.mrb[0].mxu0 %v2442
        %v2569 = vpop.f32.mrb[0].mxu0
        %v2570 = vadd.f32 %v2469, %v2569
        %v2571 = vpop.f32.mrb[0].mxu0
        %v2572 = vpop.f32.mrb[0].mxu0
        %v2573 = vadd.f32 %v2469, %v2572
        %v2574 = vpop.f32.mrb[0].mxu0
        %2575 = vmatprep.mubr.bf16.mxu0 0
        %2576 = vmatmul.mubr.bf16.gmra.mrb[0].mxu0 %v2443
        %v2577 = vpop.f32.mrb[0].mxu0
        %v2578 = vadd.f32 %v2469, %v2577
        %v2579 = vpop.f32.mrb[0].mxu0
        %v2580 = vpop.f32.mrb[0].mxu0
        %v2581 = vadd.f32 %v2469, %v2580
        %v2582 = vpop.f32.mrb[0].mxu0
        %2583 = vmatprep.mubr.bf16.mxu0 0
        %2584 = vmatmul.mubr.bf16.gmra.mrb[0].mxu0 %v2444
        %v2585 = vpop.f32.mrb[0].mxu0
        %v2586 = vadd.f32 %v2469, %v2585
        %v2587 = vpop.f32.mrb[0].mxu0
        %v2588 = vpop.f32.mrb[0].mxu0
        %v2589 = vadd.f32 %v2469, %v2588
        %v2590 = vpop.f32.mrb[0].mxu0
        %2591 = vmatprep.mubr.bf16.mxu0 0
        %2592 = vmatmul.mubr.bf16.gmra.mrb[0].mxu0 %v2445
        %v2593 = vpop.f32.mrb[0].mxu0
        %v2594 = vadd.f32 %v2469, %v2593
        %v2595 = vpop.f32.mrb[0].mxu0
        %v2596 = vpop.f32.mrb[0].mxu0
        %v2597 = vadd.f32 %v2469, %v2596
        %v2598 = vpop.f32.mrb[0].mxu0
        %2599 = vmatprep.mubr.bf16.mxu0 0
        %2600 = vmatmul.mubr.bf16.gmra.mrb[0].mxu0 %v2446
        %v2601 = vpop.f32.mrb[0].mxu0
        %v2602 = vadd.f32 %v2469, %v2601
        %v2603 = vpop.f32.mrb[0].mxu0
        %v2604 = vpop.f32.mrb[0].mxu0
        %v2605 = vadd.f32 %v2469, %v2604
        %v2606 = vpop.f32.mrb[0].mxu0
        %2607 = vmatprep.mubr.bf16.mxu0 0
        %2608 = vmatmul.mubr.bf16.gmra.mrb[0].mxu0 %v2447
        %v2609 = vpop.f32.mrb[0].mxu0
        %v2610 = vadd.f32 %v2469, %v2609
        %v2611 = vpop.f32.mrb[0].mxu0
        %v2612 = vpop.f32.mrb[0].mxu0
        %v2613 = vadd.f32 %v2469, %v2612
        %v2614 = vpop.f32.mrb[0].mxu0
        %2615 = vdwg.mxu0
        %v2616 = vmax.f32 %v2554, 0.0
        %v2617 = vmax.f32 %v2557, 0.0
        %v2618 = vmax.f32 %v2562, 0.0
        %v2619 = vmax.f32 %v2565, 0.0
        %v2620 = vmax.f32 %v2570, 0.0
        %v2621 = vmax.f32 %v2573, 0.0
        %v2622 = vmax.f32 %v2578, 0.0
        %v2623 = vmax.f32 %v2581, 0.0
        %v2624 = vmax.f32 %v2586, 0.0
        %v2625 = vmax.f32 %v2589, 0.0
        %v2626 = vmax.f32 %v2594, 0.0
        %v2627 = vmax.f32 %v2597, 0.0
        %v2628 = vmax.f32 %v2602, 0.0
        %v2629 = vmax.f32 %v2605, 0.0
        %v2630 = vmax.f32 %v2610, 0.0
        %v2631 = vmax.f32 %v2613, 0.0
        %v2632 = vpack.c.bf16 %v2617, %v2616
        %v2633 = vpack.c.bf16 %v2619, %v2618
        %v2634 = vpack.c.bf16 %v2621, %v2620
        %v2635 = vpack.c.bf16 %v2623, %v2622
        %v2636 = vpack.c.bf16 %v2625, %v2624
        %v2637 = vpack.c.bf16 %v2627, %v2626
        %v2638 = vpack.c.bf16 %v2629, %v2628
        %v2639 = vpack.c.bf16 %v2631, %v2630
        %v2640 = vld [vmem:[%s11] sm:$0xf]
        %v2641 = vld [vmem:[%s11 + $0x4] sm:$0xf]
        %v2642 = vld [vmem:[%s11 + $0x8] sm:$0xf]
        %v2643 = vld [vmem:[%s11 + $0xc] sm:$0xf]
        %v2644 = vld [vmem:[%s11 + $0x10] sm:$0xf]
        %v2645 = vld [vmem:[%s11 + $0x14] sm:$0xf]
        %v2646 = vld [vmem:[%s11 + $0x18] sm:$0xf]
        %v2647 = vld [vmem:[%s11 + $0x1c] sm:$0xf]
        %v2648 = vld [vmem:[%s11 + $0x20] sm:$0xf]
        %v2649 = vld [vmem:[%s11 + $0x24] sm:$0xf]
        %v2650 = vld [vmem:[%s11 + $0x28] sm:$0xf]
        %v2651 = vld [vmem:[%s11 + $0x2c] sm:$0xf]
        %v2652 = vld [vmem:[%s11 + $0x30] sm:$0xf]
        %v2653 = vld [vmem:[%s11 + $0x34] sm:$0xf]
        %v2654 = vld [vmem:[%s11 + $0x38] sm:$0xf]
        %v2655 = vld [vmem:[%s11 + $0x3c] sm:$0xf]
        %v2656 = vld [vmem:[%s12] sm:$0x1]
        %v2658 = vlaneseq
        %v2659 = vshrl.u32 %v2658, 7
        %v2660 = vsub.s32 0, %v2659
        %v2661 = vrot.slane %v2656, %v2660
        %v2679 = vunpack.c.l.b16 %v2640
        %v2680 = vunpack.c.l.b16 %v2641
        %v2681 = vunpack.c.l.b16 %v2642
        %v2682 = vunpack.c.l.b16 %v2643
        %v2683 = vunpack.c.l.b16 %v2644
        %v2684 = vunpack.c.l.b16 %v2645
        %v2685 = vunpack.c.l.b16 %v2646
        %v2686 = vunpack.c.l.b16 %v2647
        %v2687 = vunpack.c.l.b16 %v2648
        %v2688 = vunpack.c.l.b16 %v2649
        %v2689 = vunpack.c.l.b16 %v2650
        %v2690 = vunpack.c.l.b16 %v2651
        %v2691 = vunpack.c.l.b16 %v2652
        %v2692 = vunpack.c.l.b16 %v2653
        %v2693 = vunpack.c.l.b16 %v2654
        %v2694 = vunpack.c.l.b16 %v2655
        %v2695 = vpack.c.b16 %v2680, %v2679
        %v2696 = vpack.c.b16 %v2682, %v2681
        %v2697 = vpack.c.b16 %v2684, %v2683
        %v2698 = vpack.c.b16 %v2686, %v2685
        %v2699 = vpack.c.b16 %v2688, %v2687
        %v2700 = vpack.c.b16 %v2690, %v2689
        %v2701 = vpack.c.b16 %v2692, %v2691
        %v2702 = vpack.c.b16 %v2694, %v2693
        %2711 = vmatprep.subr.bf16.mxu0 0
        %2712 = vmatpush1.bf16.msra.mxu0 %v2695
        %2713 = vmatprep.subr.bf16.mxu0 0
        %2714 = vmatpush1.bf16.msra.mxu0 %v2696
        %2715 = vmatprep.subr.bf16.mxu0 0
        %2716 = vmatpush1.bf16.msra.mxu0 %v2697
        %2717 = vmatprep.subr.bf16.mxu0 0
        %2718 = vmatpush1.bf16.msra.mxu0 %v2698
        %2719 = vmatprep.subr.bf16.mxu0 0
        %2720 = vmatpush1.bf16.msra.mxu0 %v2699
        %2721 = vmatprep.subr.bf16.mxu0 0
        %2722 = vmatpush1.bf16.msra.mxu0 %v2700
        %2723 = vmatprep.subr.bf16.mxu0 0
        %2724 = vmatpush1.bf16.msra.mxu0 %v2701
        %2725 = vmatprep.subr.bf16.mxu0 0
        %2726 = vmatpush1.bf16.msra.mxu0 %v2702
        %2727 = vmatprep.subr.bf16.mxu0 0
        %2728 = vmatpush1.bf16.msra.mxu0 0
        %2729 = vmatprep.subr.bf16.mxu0 0
        %2730 = vmatpush1.bf16.msra.mxu0 0
        %2731 = vmatprep.subr.bf16.mxu0 0
        %2732 = vmatpush1.bf16.msra.mxu0 0
        %2733 = vmatprep.subr.bf16.mxu0 0
        %2734 = vmatpush1.bf16.msra.mxu0 0
        %2735 = vmatprep.subr.bf16.mxu0 0
        %2736 = vmatpush1.bf16.msra.mxu0 0
        %2737 = vmatprep.subr.bf16.mxu0 0
        %2738 = vmatpush1.bf16.msra.mxu0 0
        %2739 = vmatprep.subr.bf16.mxu0 0
        %2740 = vmatpush1.bf16.msra.mxu0 0
        %2741 = vmatprep.subr.bf16.mxu0 0
        %2742 = vmatpush1.bf16.msra.mxu0 0
        %2743 = vmatprep.mubr.bf16.mxu0 0
        %2744 = vmatmul.mubr.bf16.gmra.mrb[0].mxu0 %v2632
        %v2745 = vpop.f32.mrb[0].mxu0
        %v2746 = vadd.f32 %v2661, %v2745
        %v2747 = vpop.f32.mrb[0].mxu0
        %v2748 = vpop.f32.mrb[0].mxu0
        %v2749 = vadd.f32 %v2661, %v2748
        %v2750 = vpop.f32.mrb[0].mxu0
        %2751 = vmatprep.mubr.bf16.mxu0 0
        %2752 = vmatmul.mubr.bf16.gmra.mrb[0].mxu0 %v2633
        %v2753 = vpop.f32.mrb[0].mxu0
        %v2754 = vadd.f32 %v2661, %v2753
        %v2755 = vpop.f32.mrb[0].mxu0
        %v2756 = vpop.f32.mrb[0].mxu0
        %v2757 = vadd.f32 %v2661, %v2756
        %v2758 = vpop.f32.mrb[0].mxu0
        %2759 = vmatprep.mubr.bf16.mxu0 0
        %2760 = vmatmul.mubr.bf16.gmra.mrb[0].mxu0 %v2634
        %v2761 = vpop.f32.mrb[0].mxu0
        %v2762 = vadd.f32 %v2661, %v2761
        %v2763 = vpop.f32.mrb[0].mxu0
        %v2764 = vpop.f32.mrb[0].mxu0
        %v2765 = vadd.f32 %v2661, %v2764
        %v2766 = vpop.f32.mrb[0].mxu0
        %2767 = vmatprep.mubr.bf16.mxu0 0
        %2768 = vmatmul.mubr.bf16.gmra.mrb[0].mxu0 %v2635
        %v2769 = vpop.f32.mrb[0].mxu0
        %v2770 = vadd.f32 %v2661, %v2769
        %v2771 = vpop.f32.mrb[0].mxu0
        %v2772 = vpop.f32.mrb[0].mxu0
        %v2773 = vadd.f32 %v2661, %v2772
        %v2774 = vpop.f32.mrb[0].mxu0
        %2775 = vmatprep.mubr.bf16.mxu0 0
        %2776 = vmatmul.mubr.bf16.gmra.mrb[0].mxu0 %v2636
        %v2777 = vpop.f32.mrb[0].mxu0
        %v2778 = vadd.f32 %v2661, %v2777
        %v2779 = vpop.f32.mrb[0].mxu0
        %v2780 = vpop.f32.mrb[0].mxu0
        %v2781 = vadd.f32 %v2661, %v2780
        %v2782 = vpop.f32.mrb[0].mxu0
        %2783 = vmatprep.mubr.bf16.mxu0 0
        %2784 = vmatmul.mubr.bf16.gmra.mrb[0].mxu0 %v2637
        %v2785 = vpop.f32.mrb[0].mxu0
        %v2786 = vadd.f32 %v2661, %v2785
        %v2787 = vpop.f32.mrb[0].mxu0
        %v2788 = vpop.f32.mrb[0].mxu0
        %v2789 = vadd.f32 %v2661, %v2788
        %v2790 = vpop.f32.mrb[0].mxu0
        %2791 = vmatprep.mubr.bf16.mxu0 0
        %2792 = vmatmul.mubr.bf16.gmra.mrb[0].mxu0 %v2638
        %v2793 = vpop.f32.mrb[0].mxu0
        %v2794 = vadd.f32 %v2661, %v2793
        %v2795 = vpop.f32.mrb[0].mxu0
        %v2796 = vpop.f32.mrb[0].mxu0
        %v2797 = vadd.f32 %v2661, %v2796
        %v2798 = vpop.f32.mrb[0].mxu0
        %2799 = vmatprep.mubr.bf16.mxu0 0
        %2800 = vmatmul.mubr.bf16.gmra.mrb[0].mxu0 %v2639
        %v2801 = vpop.f32.mrb[0].mxu0
        %v2802 = vadd.f32 %v2661, %v2801
        %v2803 = vpop.f32.mrb[0].mxu0
        %v2804 = vpop.f32.mrb[0].mxu0
        %v2805 = vadd.f32 %v2661, %v2804
        %v2806 = vpop.f32.mrb[0].mxu0
        %2807 = vdwg.mxu0
        %2808 = vst [vmem:[%s13] sm:$0xff] %v2746
        %2809 = vst [vmem:[%s13 + $0x8] sm:$0xff] %v2749
        %2810 = vst [vmem:[%s13 + $0x10] sm:$0xff] %v2754
        %2811 = vst [vmem:[%s13 + $0x18] sm:$0xff] %v2757
        %2812 = vst [vmem:[%s13 + $0x20] sm:$0xff] %v2762
        %2813 = vst [vmem:[%s13 + $0x28] sm:$0xff] %v2765
        %2814 = vst [vmem:[%s13 + $0x30] sm:$0xff] %v2770
        %2815 = vst [vmem:[%s13 + $0x38] sm:$0xff] %v2773
        %2816 = vst [vmem:[%s13 + $0x40] sm:$0xff] %v2778
        %2817 = vst [vmem:[%s13 + $0x48] sm:$0xff] %v2781
        %2818 = vst [vmem:[%s13 + $0x50] sm:$0xff] %v2786
        %2819 = vst [vmem:[%s13 + $0x58] sm:$0xff] %v2789
        %2820 = vst [vmem:[%s13 + $0x60] sm:$0xff] %v2794
        %2821 = vst [vmem:[%s13 + $0x68] sm:$0xff] %v2797
        %2822 = vst [vmem:[%s13 + $0x70] sm:$0xff] %v2802
        %2823 = vst [vmem:[%s13 + $0x78] sm:$0xff] %v2805
      $region76: #{gcnii_dense_model.1} parent=71 // pred_fallthru
        _
      // Predicated region
      $region77: #{gcnii_dense_model.1} parent=71 // pred_check
        %p2824 = pneg %p345
      $region78: #{gcnii_dense_model.1} parent=71 // pred_check_branch
        %2826 = sbr.rel (%p2824) target = $region80
      $region79: #{gcnii_dense_model.1} parent=71 // pred_region
        _
      $region80: #{gcnii_dense_model.1} parent=71 // pred_fallthru
        _
      // Predicated region
      $region81: #{gcnii_dense_model.1} parent=71 // pred_check
        %p2827 = pneg %p345
      $region82: #{gcnii_dense_model.1} parent=71 // pred_check_branch
        %2829 = sbr.rel (%p2827) target = $region84
      $region83: #{gcnii_dense_model.1} parent=71 // pred_region
        _
      $region84: #{gcnii_dense_model.1} parent=71 // pred_fallthru
        _
    $region72: #{gcnii_dense_model.1} parent=5 // pred_fallthru
      _
    %p2830 = scmp.le.s32.totalorder 2, %s19
    // Predicated region
    $region85: #{gcnii_dense_model.1} parent=5 // pred_check
      %p2831 = pneg %p2830
    $region86: #{gcnii_dense_model.1} parent=5 // pred_check_branch
      %2833 = sbr.rel (%p2831) target = $region88
    $region87: #{gcnii_dense_model.1} parent=5 // pred_region
      %s2834 = ssub.s32 %s19, 2
    $region88: #{gcnii_dense_model.1} parent=5 // pred_fallthru
      _
  $region6: #{gcnii_dense_model.1} parent=0 // loop_footer
    %s23 = sadd.s32 1, %s19
  $region7: #{gcnii_dense_model.1} parent=0 // loop_footer_branch
    %18 = sbr.rel target = $region3
  $region8: #{gcnii_dense_model.1} parent=0 // loop_exit
    _

</llo_original>
